<compile_context>
chip_gen: v5e
topology: v5e:2x2
jax: 0.10.0
libtpu: 0.0.40
codegen_flags: <defaults>
</compile_context>

<pallas_src>
import math

import jax
import jax.numpy as jnp
from jax import lax
from jax.experimental import pallas as pl
from jax.experimental.pallas import tpu as pltpu

# ----------------------------- model configuration (small, deterministic) ----
IMAGE_SIZE = 16
PATCH_SIZE = 4
CHANNELS = 4
DIM = 32
DEPTH = 2
HEADS = 2
DIM_HEAD = 16
MLP_RATIO = 2
NUM_CLASSES = 10
BATCH = 2

NUM_PATCHES = (IMAGE_SIZE // PATCH_SIZE) * (IMAGE_SIZE // PATCH_SIZE)  # 16
PATCH_DIM = CHANNELS * PATCH_SIZE * PATCH_SIZE                         # 64
SEQ = NUM_PATCHES + 1                                                  # 17 (cls token)
SEQ_PAD = 24                                                           # padded to 8-multiple
HIDDEN = DIM * MLP_RATIO                                               # 64
INNER = HEADS * DIM_HEAD                                               # 32
EPS = 1e-5
SCALE = DIM_HEAD ** -0.5
NEG_BIG = -1e30                                                        # masked-key score


# ----------------------------- exact GELU (erf) helpers ----------------------
# nn.GELU() default is the exact erf-based GELU; erf uses XLA's f32 rational
# polynomial (mul/add/clip + one EUP reciprocal -> always lowers).
_ERF_ALPHA = (-2.72614225801306e-10, 2.77068142495902e-08, -2.10102402082508e-06,
              -5.69250639462346e-05, -7.34990630326855e-04, -2.95459980854025e-03,
              -1.60960333262415e-02)
_ERF_BETA = (-1.45660718464996e-05, -2.13374055278905e-04, -1.68282697438203e-03,
             -7.37332916720468e-03, -1.42647390514189e-02)
_ERF_CLIP = 3.832506856900231  # kErfInvOneMinusHalfULP (matches XLA/PyTorch erf)


def _erf_f32(x):
    x = jnp.clip(x, -_ERF_CLIP, _ERF_CLIP)
    x2 = x * x
    p = jnp.full_like(x2, _ERF_ALPHA[0])
    for c in _ERF_ALPHA[1:]:
        p = p * x2 + c
    q = jnp.full_like(x2, _ERF_BETA[0])
    for c in _ERF_BETA[1:]:
        q = q * x2 + c
    # EUP reciprocal instead of a VALU divide (VALU is nearer the critical path)
    return x * p * pl.reciprocal(q)


def _gelu_exact(x):
    return 0.5 * x * (1.0 + _erf_f32(x * (1.0 / math.sqrt(2.0))))


def _layernorm(x, g, b):
    mu = jnp.mean(x, axis=-1, keepdims=True)
    var = jnp.mean((x - mu) ** 2, axis=-1, keepdims=True)
    return (x - mu) * lax.rsqrt(var + EPS) * g + b


# ----------------------------- fused forward kernel --------------------------
def _slvit_kernel(patches_ref, pw_ref, addbias_ref,
                  ln1g_ref, ln1b_ref, wq_ref, wk_ref, wv_ref, wo_ref, bo_ref,
                  ln2g_ref, ln2b_ref, w1_ref, b1_ref, w2_ref, b2_ref,
                  hg_ref, hb_ref, hw_ref, hbias_ref,
                  o_ref):
    rows = BATCH * SEQ_PAD

    # ---- patch embedding straight into the padded slab --------------------
    # cls/pad rows of patches are zero, so emb is zero there; addbias carries
    # (cls + pos[0]) on cls rows, (patch_bias + pos[r]) on patch rows, 0 on pads.
    x = jnp.dot(patches_ref[...], pw_ref[...],
                preferred_element_type=jnp.float32) + addbias_ref[...]   # (rows, DIM)

    # ---- transformer blocks (static unroll; x stays resident in vregs/VMEM) ----
    for d in range(DEPTH):
        # PreNorm + LocalitySelfAttention (is_LSA=False path)
        xn = _layernorm(x, ln1g_ref[d], ln1b_ref[d])                     # (rows, DIM)

        # head-major projections: leading-dim indexing, no lane slicing
        q = [jnp.dot(xn, wq_ref[d * HEADS + h], preferred_element_type=jnp.float32)
             for h in range(HEADS)]                                      # each (rows, DH)
        k = [jnp.dot(xn, wk_ref[d * HEADS + h], preferred_element_type=jnp.float32)
             for h in range(HEADS)]
        v = [jnp.dot(xn, wv_ref[d * HEADS + h], preferred_element_type=jnp.float32)
             for h in range(HEADS)]

        # per-(batch, head) QK^T blocks, sublane-stacked (all offsets 8-aligned)
        dots_blocks = []
        for b in range(BATCH):
            r0 = b * SEQ_PAD
            for h in range(HEADS):
                dots_blocks.append(lax.dot_general(
                    q[h][r0:r0 + SEQ_PAD, :], k[h][r0:r0 + SEQ_PAD, :],
                    (((1,), (1,)), ((), ())),
                    preferred_element_type=jnp.float32))                 # (SEQ_PAD, SEQ_PAD)
        dots = jnp.concatenate(dots_blocks, axis=0) * SCALE              # (B*H*SEQ_PAD, SEQ_PAD)

        # mask padded key columns, then ONE batched softmax for all (b, h)
        col = lax.broadcasted_iota(jnp.int32, dots.shape, 1)
        dots = jnp.where(col < SEQ, dots, NEG_BIG)
        dots = dots - jnp.max(dots, axis=-1, keepdims=True)
        e = jnp.exp(dots)
        attn = e * pl.reciprocal(jnp.sum(e, axis=-1, keepdims=True), approx=True)

        # AV + per-head output projection (sum over heads == concat + single Wo)
        out_blocks = []
        for b in range(BATCH):
            r0 = b * SEQ_PAD
            acc = None
            for h in range(HEADS):
                blk = (b * HEADS + h) * SEQ_PAD
                a_bh = attn[blk:blk + SEQ_PAD, :]                        # (SEQ_PAD, SEQ_PAD)
                o_bh = jnp.dot(a_bh, v[h][r0:r0 + SEQ_PAD, :],
                               preferred_element_type=jnp.float32)       # (SEQ_PAD, DH)
                contrib = jnp.dot(o_bh, wo_ref[d * HEADS + h],
                                  preferred_element_type=jnp.float32)    # (SEQ_PAD, DIM)
                acc = contrib if acc is None else acc + contrib
            out_blocks.append(acc)
        x = x + jnp.concatenate(out_blocks, axis=0) + bo_ref[d]          # (rows, DIM)

        # PreNorm + FeedForward (Linear -> GELU -> Linear); dropout = identity
        xn2 = _layernorm(x, ln2g_ref[d], ln2b_ref[d])
        hdn = jnp.dot(xn2, w1_ref[d], preferred_element_type=jnp.float32) + b1_ref[d]
        hdn = _gelu_exact(hdn)
        x = x + jnp.dot(hdn, w2_ref[d], preferred_element_type=jnp.float32) + b2_ref[d]

    # ---- classification head on the cls rows (8-aligned row offsets) ----------
    cls_rows = jnp.concatenate(
        [x[b * SEQ_PAD:b * SEQ_PAD + 1, :] for b in range(BATCH)], axis=0)  # (B, DIM)
    cn = _layernorm(cls_rows, hg_ref[...], hb_ref[...])
    o_ref[...] = (jnp.dot(cn, hw_ref[...], preferred_element_type=jnp.float32)
                  + hbias_ref[...])


# ----------------------------- wrappers ---------------------------------------
def extract_patches(img):
    # Rearrange('b c (h p1) (w p2) -> b (h w) (p1 p2 c)') — pure glue (no compute).
    bsz, c, hgt, wid = img.shape
    h, w = hgt // PATCH_SIZE, wid // PATCH_SIZE
    x = img.reshape(bsz, c, h, PATCH_SIZE, w, PATCH_SIZE)
    x = x.transpose(0, 2, 4, 3, 5, 1)          # b h w p1 p2 c
    return x.reshape(bsz, h * w, PATCH_SIZE * PATCH_SIZE * c)


@jax.jit
def slvit_forward(img, params):
    bsz = img.shape[0]

    # (B*SEQ_PAD, PATCH_DIM) slab with zero rows at the cls and pad positions
    patches = extract_patches(img)                                   # (B, NP, PATCH_DIM)
    patches_slab = jnp.pad(
        patches, ((0, 0), (1, SEQ_PAD - SEQ), (0, 0))
    ).reshape(bsz * SEQ_PAD, PATCH_DIM)

    L = params["layers"]

    # head-major weight layouts (wrapper-side plumbing, removes in-kernel lane slices)
    wqkv = L["wqkv"].reshape(DEPTH, DIM, 3, HEADS, DIM_HEAD).transpose(2, 0, 3, 1, 4)
    wq = wqkv[0].reshape(DEPTH * HEADS, DIM, DIM_HEAD)
    wk = wqkv[1].reshape(DEPTH * HEADS, DIM, DIM_HEAD)
    wv = wqkv[2].reshape(DEPTH * HEADS, DIM, DIM_HEAD)
    wo = L["wo"].reshape(DEPTH * HEADS, DIM_HEAD, DIM)

    # additive slab: cls+pos on cls rows, patch_bias+pos on patch rows, 0 on pads
    add_blk = jnp.concatenate(
        [params["cls"] + params["pos"][0:1],
         params["pos"][1:SEQ] + params["patch_b"],
         jnp.zeros((SEQ_PAD - SEQ, DIM), jnp.float32)], axis=0)      # (SEQ_PAD, DIM)
    add_slab = jnp.tile(add_blk, (bsz, 1))                           # (B*SEQ_PAD, DIM)

    args = [patches_slab, params["patch_w"], add_slab,
            L["ln1_g"], L["ln1_b"], wq, wk, wv, wo, L["bo"],
            L["ln2_g"], L["ln2_b"], L["w1"], L["b1"], L["w2"], L["b2"],
            params["head_g"], params["head_b"], params["head_w"], params["head_bias"]]
    vspec = pl.BlockSpec(memory_space=pltpu.MemorySpace.VMEM)
    return pl.pallas_call(
        _slvit_kernel,
        out_shape=jax.ShapeDtypeStruct((bsz, NUM_CLASSES), jnp.float32),
        in_specs=[vspec] * len(args),
        out_specs=vspec,
    )(*args)


# ----------------------------- deterministic parameter init -------------------
def init_params(key):
    keys = iter(jax.random.split(key, 8 + DEPTH * 8))

    def nrm(shape, scale=0.02):
        return (scale * jax.random.normal(next(keys), shape)).astype(jnp.float32)

    params = {
        "patch_w": nrm((PATCH_DIM, DIM)),
        "patch_b": nrm((1, DIM)),
        "cls": nrm((1, DIM), 1.0),          # torch: randn
        "pos": nrm((SEQ, DIM), 1.0),        # torch: randn
        "head_g": jnp.ones((1, DIM), jnp.float32),
        "head_b": jnp.zeros((1, DIM), jnp.float32),
        "head_w": nrm((DIM, NUM_CLASSES)),
        "head_bias": nrm((1, NUM_CLASSES)),
    }
    per_layer = []
    for _ in range(DEPTH):
        per_layer.append(dict(
            ln1_g=jnp.ones((1, DIM), jnp.float32),
            ln1_b=jnp.zeros((1, DIM), jnp.float32),
            wqkv=nrm((DIM, 3 * INNER)),     # to_qkv has bias=False
            wo=nrm((INNER, DIM)),
            bo=nrm((1, DIM)),
            ln2_g=jnp.ones((1, DIM), jnp.float32),
            ln2_b=jnp.zeros((1, DIM), jnp.float32),
            w1=nrm((DIM, HIDDEN)),
            b1=nrm((1, HIDDEN)),
            w2=nrm((HIDDEN, DIM)),
            b2=nrm((1, DIM)),
        ))
    # stack per-layer params into (DEPTH, ...) arrays for the fused kernel
    params["layers"] = {k: jnp.stack([lp[k] for lp in per_layer], axis=0)
                        for k in per_layer[0]}
    return params


if __name__ == "__main__":
    key = jax.random.PRNGKey(0)
    k_img, k_par = jax.random.split(key)
    img = jax.random.normal(k_img, (BATCH, CHANNELS, IMAGE_SIZE, IMAGE_SIZE), jnp.float32)
    params = init_params(k_par)

    logits = slvit_forward(img, params)
    jax.block_until_ready(logits)
    assert logits.shape == (BATCH, NUM_CLASSES), logits.shape
    assert bool(jnp.all(jnp.isfinite(logits)))
    # TODO(synk): dropout / DropPath are identity (eval mode, drop_prob=0); is_LSA / is_SPT branches not exercised.
    print("KERNEL_OK")
</pallas_src>

<mosaic_0001>
module attributes {stable_mosaic.version = 11 : i64} {
  func.func @_slvit_kernel(%arg0: memref<48x64xf32, #tpu.memory_space<vmem>>, %arg1: memref<64x32xf32, #tpu.memory_space<vmem>>, %arg2: memref<48x32xf32, #tpu.memory_space<vmem>>, %arg3: memref<2x1x32xf32, #tpu.memory_space<vmem>>, %arg4: memref<2x1x32xf32, #tpu.memory_space<vmem>>, %arg5: memref<4x32x16xf32, #tpu.memory_space<vmem>>, %arg6: memref<4x32x16xf32, #tpu.memory_space<vmem>>, %arg7: memref<4x32x16xf32, #tpu.memory_space<vmem>>, %arg8: memref<4x16x32xf32, #tpu.memory_space<vmem>>, %arg9: memref<2x1x32xf32, #tpu.memory_space<vmem>>, %arg10: memref<2x1x32xf32, #tpu.memory_space<vmem>>, %arg11: memref<2x1x32xf32, #tpu.memory_space<vmem>>, %arg12: memref<2x32x64xf32, #tpu.memory_space<vmem>>, %arg13: memref<2x1x64xf32, #tpu.memory_space<vmem>>, %arg14: memref<2x64x32xf32, #tpu.memory_space<vmem>>, %arg15: memref<2x1x32xf32, #tpu.memory_space<vmem>>, %arg16: memref<1x32xf32, #tpu.memory_space<vmem>>, %arg17: memref<1x32xf32, #tpu.memory_space<vmem>>, %arg18: memref<32x10xf32, #tpu.memory_space<vmem>>, %arg19: memref<1x10xf32, #tpu.memory_space<vmem>>, %arg20: memref<2x10xf32, #tpu.memory_space<vmem>>) attributes {dimension_semantics = [], scalar_prefetch = 0 : i64, scratch_operands = 0 : i64, tpu.core_type = #tpu.core_type<tc>} {
    %c0 = arith.constant 0 : index
    %c0_0 = arith.constant 0 : index
    %0 = vector.load %arg0[%c0, %c0_0] : memref<48x64xf32, #tpu.memory_space<vmem>>, vector<48x64xf32>
    %c0_1 = arith.constant 0 : index
    %c0_2 = arith.constant 0 : index
    %1 = vector.load %arg1[%c0_1, %c0_2] : memref<64x32xf32, #tpu.memory_space<vmem>>, vector<64x32xf32>
    %cst = arith.constant dense<0.000000e+00> : vector<48x32xf32>
    %2 = tpu.matmul %0, %1, %cst {dimension_numbers = #tpu.dot_dimension_numbers<[1], [0], [0], [1], [0, 0, 1, 1], [], []>} : vector<48x64xf32>, vector<64x32xf32>, vector<48x32xf32> -> vector<48x32xf32>
    %c0_3 = arith.constant 0 : index
    %c0_4 = arith.constant 0 : index
    %3 = vector.load %arg2[%c0_3, %c0_4] : memref<48x32xf32, #tpu.memory_space<vmem>>, vector<48x32xf32>
    %4 = arith.addf %2, %3 : vector<48x32xf32>
    %c0_5 = arith.constant 0 : index
    %c0_6 = arith.constant 0 : index
    %c0_7 = arith.constant 0 : index
    %5 = vector.load %arg3[%c0_5, %c0_6, %c0_7] : memref<2x1x32xf32, #tpu.memory_space<vmem>>, vector<1x1x32xf32>
    %6 = vector.shape_cast %5 : vector<1x1x32xf32> to vector<1x32xf32>
    %c0_8 = arith.constant 0 : index
    %c0_9 = arith.constant 0 : index
    %c0_10 = arith.constant 0 : index
    %7 = vector.load %arg4[%c0_8, %c0_9, %c0_10] : memref<2x1x32xf32, #tpu.memory_space<vmem>>, vector<1x1x32xf32>
    %8 = vector.shape_cast %7 : vector<1x1x32xf32> to vector<1x32xf32>
    %cst_11 = arith.constant dense<0.000000e+00> : vector<48xf32>
    %9 = vector.multi_reduction <add>, %4, %cst_11 [1] : vector<48x32xf32> to vector<48xf32>
    %10 = vector.shape_cast %9 : vector<48xf32> to vector<48x1xf32>
    %cst_12 = arith.constant 3.200000e+01 : f32
    %11 = vector.broadcast %cst_12 : f32 to vector<48x1xf32>
    %12 = arith.divf %10, %11 : vector<48x1xf32>
    %13 = vector.broadcast %12 : vector<48x1xf32> to vector<48x32xf32>
    %14 = arith.subf %4, %13 : vector<48x32xf32>
    %15 = arith.mulf %14, %14 : vector<48x32xf32>
    %cst_13 = arith.constant dense<0.000000e+00> : vector<48xf32>
    %16 = vector.multi_reduction <add>, %15, %cst_13 [1] : vector<48x32xf32> to vector<48xf32>
    %17 = vector.shape_cast %16 : vector<48xf32> to vector<48x1xf32>
    %cst_14 = arith.constant 3.200000e+01 : f32
    %18 = vector.broadcast %cst_14 : f32 to vector<48x1xf32>
    %19 = arith.divf %17, %18 : vector<48x1xf32>
    %20 = vector.broadcast %12 : vector<48x1xf32> to vector<48x32xf32>
    %21 = arith.subf %4, %20 : vector<48x32xf32>
    %cst_15 = arith.constant 9.99999974E-6 : f32
    %22 = vector.broadcast %cst_15 : f32 to vector<48x1xf32>
    %23 = arith.addf %19, %22 : vector<48x1xf32>
    %24 = math.rsqrt %23 : vector<48x1xf32>
    %25 = vector.broadcast %24 : vector<48x1xf32> to vector<48x32xf32>
    %26 = arith.mulf %21, %25 : vector<48x32xf32>
    %27 = vector.broadcast %6 : vector<1x32xf32> to vector<48x32xf32>
    %28 = arith.mulf %26, %27 : vector<48x32xf32>
    %29 = vector.broadcast %8 : vector<1x32xf32> to vector<48x32xf32>
    %30 = arith.addf %28, %29 : vector<48x32xf32>
    %c0_16 = arith.constant 0 : index
    %c0_17 = arith.constant 0 : index
    %c0_18 = arith.constant 0 : index
    %31 = vector.load %arg5[%c0_16, %c0_17, %c0_18] : memref<4x32x16xf32, #tpu.memory_space<vmem>>, vector<1x32x16xf32>
    %32 = vector.shape_cast %31 : vector<1x32x16xf32> to vector<32x16xf32>
    %cst_19 = arith.constant dense<0.000000e+00> : vector<48x16xf32>
    %33 = tpu.matmul %30, %32, %cst_19 {dimension_numbers = #tpu.dot_dimension_numbers<[1], [0], [0], [1], [0, 0, 1, 1], [], []>} : vector<48x32xf32>, vector<32x16xf32>, vector<48x16xf32> -> vector<48x16xf32>
    %c1 = arith.constant 1 : index
    %c0_20 = arith.constant 0 : index
    %c0_21 = arith.constant 0 : index
    %34 = vector.load %arg5[%c1, %c0_20, %c0_21] : memref<4x32x16xf32, #tpu.memory_space<vmem>>, vector<1x32x16xf32>
    %35 = vector.shape_cast %34 : vector<1x32x16xf32> to vector<32x16xf32>
    %cst_22 = arith.constant dense<0.000000e+00> : vector<48x16xf32>
    %36 = tpu.matmul %30, %35, %cst_22 {dimension_numbers = #tpu.dot_dimension_numbers<[1], [0], [0], [1], [0, 0, 1, 1], [], []>} : vector<48x32xf32>, vector<32x16xf32>, vector<48x16xf32> -> vector<48x16xf32>
    %c0_23 = arith.constant 0 : index
    %c0_24 = arith.constant 0 : index
    %c0_25 = arith.constant 0 : index
    %37 = vector.load %arg6[%c0_23, %c0_24, %c0_25] : memref<4x32x16xf32, #tpu.memory_space<vmem>>, vector<1x32x16xf32>
    %38 = vector.shape_cast %37 : vector<1x32x16xf32> to vector<32x16xf32>
    %cst_26 = arith.constant dense<0.000000e+00> : vector<48x16xf32>
    %39 = tpu.matmul %30, %38, %cst_26 {dimension_numbers = #tpu.dot_dimension_numbers<[1], [0], [0], [1], [0, 0, 1, 1], [], []>} : vector<48x32xf32>, vector<32x16xf32>, vector<48x16xf32> -> vector<48x16xf32>
    %c1_27 = arith.constant 1 : index
    %c0_28 = arith.constant 0 : index
    %c0_29 = arith.constant 0 : index
    %40 = vector.load %arg6[%c1_27, %c0_28, %c0_29] : memref<4x32x16xf32, #tpu.memory_space<vmem>>, vector<1x32x16xf32>
    %41 = vector.shape_cast %40 : vector<1x32x16xf32> to vector<32x16xf32>
    %cst_30 = arith.constant dense<0.000000e+00> : vector<48x16xf32>
    %42 = tpu.matmul %30, %41, %cst_30 {dimension_numbers = #tpu.dot_dimension_numbers<[1], [0], [0], [1], [0, 0, 1, 1], [], []>} : vector<48x32xf32>, vector<32x16xf32>, vector<48x16xf32> -> vector<48x16xf32>
    %c0_31 = arith.constant 0 : index
    %c0_32 = arith.constant 0 : index
    %c0_33 = arith.constant 0 : index
    %43 = vector.load %arg7[%c0_31, %c0_32, %c0_33] : memref<4x32x16xf32, #tpu.memory_space<vmem>>, vector<1x32x16xf32>
    %44 = vector.shape_cast %43 : vector<1x32x16xf32> to vector<32x16xf32>
    %cst_34 = arith.constant dense<0.000000e+00> : vector<48x16xf32>
    %45 = tpu.matmul %30, %44, %cst_34 {dimension_numbers = #tpu.dot_dimension_numbers<[1], [0], [0], [1], [0, 0, 1, 1], [], []>} : vector<48x32xf32>, vector<32x16xf32>, vector<48x16xf32> -> vector<48x16xf32>
    %c1_35 = arith.constant 1 : index
    %c0_36 = arith.constant 0 : index
    %c0_37 = arith.constant 0 : index
    %46 = vector.load %arg7[%c1_35, %c0_36, %c0_37] : memref<4x32x16xf32, #tpu.memory_space<vmem>>, vector<1x32x16xf32>
    %47 = vector.shape_cast %46 : vector<1x32x16xf32> to vector<32x16xf32>
    %cst_38 = arith.constant dense<0.000000e+00> : vector<48x16xf32>
    %48 = tpu.matmul %30, %47, %cst_38 {dimension_numbers = #tpu.dot_dimension_numbers<[1], [0], [0], [1], [0, 0, 1, 1], [], []>} : vector<48x32xf32>, vector<32x16xf32>, vector<48x16xf32> -> vector<48x16xf32>
    %49 = vector.extract_strided_slice %33 {offsets = [0, 0], sizes = [24, 16], strides = [1, 1]} : vector<48x16xf32> to vector<24x16xf32>
    %50 = vector.extract_strided_slice %39 {offsets = [0, 0], sizes = [24, 16], strides = [1, 1]} : vector<48x16xf32> to vector<24x16xf32>
    %cst_39 = arith.constant dense<0.000000e+00> : vector<24x24xf32>
    %51 = tpu.matmul %49, %50, %cst_39 {dimension_numbers = #tpu.dot_dimension_numbers<[1], [1], [0], [0], [0, 0, 1, 0], [], []>} : vector<24x16xf32>, vector<24x16xf32>, vector<24x24xf32> -> vector<24x24xf32>
    %52 = vector.extract_strided_slice %36 {offsets = [0, 0], sizes = [24, 16], strides = [1, 1]} : vector<48x16xf32> to vector<24x16xf32>
    %53 = vector.extract_strided_slice %42 {offsets = [0, 0], sizes = [24, 16], strides = [1, 1]} : vector<48x16xf32> to vector<24x16xf32>
    %cst_40 = arith.constant dense<0.000000e+00> : vector<24x24xf32>
    %54 = tpu.matmul %52, %53, %cst_40 {dimension_numbers = #tpu.dot_dimension_numbers<[1], [1], [0], [0], [0, 0, 1, 0], [], []>} : vector<24x16xf32>, vector<24x16xf32>, vector<24x24xf32> -> vector<24x24xf32>
    %55 = vector.extract_strided_slice %33 {offsets = [24, 0], sizes = [24, 16], strides = [1, 1]} : vector<48x16xf32> to vector<24x16xf32>
    %56 = vector.extract_strided_slice %39 {offsets = [24, 0], sizes = [24, 16], strides = [1, 1]} : vector<48x16xf32> to vector<24x16xf32>
    %cst_41 = arith.constant dense<0.000000e+00> : vector<24x24xf32>
    %57 = tpu.matmul %55, %56, %cst_41 {dimension_numbers = #tpu.dot_dimension_numbers<[1], [1], [0], [0], [0, 0, 1, 0], [], []>} : vector<24x16xf32>, vector<24x16xf32>, vector<24x24xf32> -> vector<24x24xf32>
    %58 = vector.extract_strided_slice %36 {offsets = [24, 0], sizes = [24, 16], strides = [1, 1]} : vector<48x16xf32> to vector<24x16xf32>
    %59 = vector.extract_strided_slice %42 {offsets = [24, 0], sizes = [24, 16], strides = [1, 1]} : vector<48x16xf32> to vector<24x16xf32>
    %cst_42 = arith.constant dense<0.000000e+00> : vector<24x24xf32>
    %60 = tpu.matmul %58, %59, %cst_42 {dimension_numbers = #tpu.dot_dimension_numbers<[1], [1], [0], [0], [0, 0, 1, 0], [], []>} : vector<24x16xf32>, vector<24x16xf32>, vector<24x24xf32> -> vector<24x24xf32>
    %61 = tpu.concatenate %51, %54, %57, %60 in 0 : vector<24x24xf32>, vector<24x24xf32>, vector<24x24xf32>, vector<24x24xf32> -> vector<96x24xf32>
    %cst_43 = arith.constant 2.500000e-01 : f32
    %62 = vector.broadcast %cst_43 : f32 to vector<96x24xf32>
    %63 = arith.mulf %61, %62 : vector<96x24xf32>
    %64 = tpu.iota {dimensions = array<i32: 1>} : vector<96x24xi32>
    %c17_i32 = arith.constant 17 : i32
    %65 = vector.broadcast %c17_i32 : i32 to vector<96x24xi32>
    %66 = arith.cmpi slt, %64, %65 : vector<96x24xi32>
    %cst_44 = arith.constant -1.000000e+30 : f32
    %67 = vector.broadcast %cst_44 : f32 to vector<96x24xf32>
    %68 = arith.select %66, %63, %67 : vector<96x24xi1>, vector<96x24xf32>
    %cst_45 = arith.constant dense<0xFF800000> : vector<96xf32>
    %69 = vector.multi_reduction <maximumf>, %68, %cst_45 [1] : vector<96x24xf32> to vector<96xf32>
    %70 = vector.shape_cast %69 : vector<96xf32> to vector<96x1xf32>
    %71 = vector.broadcast %70 : vector<96x1xf32> to vector<96x24xf32>
    %72 = arith.subf %68, %71 : vector<96x24xf32>
    %73 = math.exp %72 : vector<96x24xf32>
    %cst_46 = arith.constant dense<0.000000e+00> : vector<96xf32>
    %74 = vector.multi_reduction <add>, %73, %cst_46 [1] : vector<96x24xf32> to vector<96xf32>
    %75 = vector.shape_cast %74 : vector<96xf32> to vector<96x1xf32>
    %76 = tpu.reciprocal %75 {approx = true} : vector<96x1xf32> -> vector<96x1xf32>
    %77 = vector.broadcast %76 : vector<96x1xf32> to vector<96x24xf32>
    %78 = arith.mulf %73, %77 : vector<96x24xf32>
    %79 = vector.extract_strided_slice %78 {offsets = [0, 0], sizes = [24, 24], strides = [1, 1]} : vector<96x24xf32> to vector<24x24xf32>
    %80 = vector.extract_strided_slice %45 {offsets = [0, 0], sizes = [24, 16], strides = [1, 1]} : vector<48x16xf32> to vector<24x16xf32>
    %cst_47 = arith.constant dense<0.000000e+00> : vector<24x16xf32>
    %81 = tpu.matmul %79, %80, %cst_47 {dimension_numbers = #tpu.dot_dimension_numbers<[1], [0], [0], [1], [0, 0, 1, 1], [], []>} : vector<24x24xf32>, vector<24x16xf32>, vector<24x16xf32> -> vector<24x16xf32>
    %c0_48 = arith.constant 0 : index
    %c0_49 = arith.constant 0 : index
    %c0_50 = arith.constant 0 : index
    %82 = vector.load %arg8[%c0_48, %c0_49, %c0_50] : memref<4x16x32xf32, #tpu.memory_space<vmem>>, vector<1x16x32xf32>
    %83 = vector.shape_cast %82 : vector<1x16x32xf32> to vector<16x32xf32>
    %cst_51 = arith.constant dense<0.000000e+00> : vector<24x32xf32>
    %84 = tpu.matmul %81, %83, %cst_51 {dimension_numbers = #tpu.dot_dimension_numbers<[1], [0], [0], [1], [0, 0, 1, 1], [], []>} : vector<24x16xf32>, vector<16x32xf32>, vector<24x32xf32> -> vector<24x32xf32>
    %85 = vector.extract_strided_slice %78 {offsets = [24, 0], sizes = [24, 24], strides = [1, 1]} : vector<96x24xf32> to vector<24x24xf32>
    %86 = vector.extract_strided_slice %48 {offsets = [0, 0], sizes = [24, 16], strides = [1, 1]} : vector<48x16xf32> to vector<24x16xf32>
    %cst_52 = arith.constant dense<0.000000e+00> : vector<24x16xf32>
    %87 = tpu.matmul %85, %86, %cst_52 {dimension_numbers = #tpu.dot_dimension_numbers<[1], [0], [0], [1], [0, 0, 1, 1], [], []>} : vector<24x24xf32>, vector<24x16xf32>, vector<24x16xf32> -> vector<24x16xf32>
    %c1_53 = arith.constant 1 : index
    %c0_54 = arith.constant 0 : index
    %c0_55 = arith.constant 0 : index
    %88 = vector.load %arg8[%c1_53, %c0_54, %c0_55] : memref<4x16x32xf32, #tpu.memory_space<vmem>>, vector<1x16x32xf32>
    %89 = vector.shape_cast %88 : vector<1x16x32xf32> to vector<16x32xf32>
    %cst_56 = arith.constant dense<0.000000e+00> : vector<24x32xf32>
    %90 = tpu.matmul %87, %89, %cst_56 {dimension_numbers = #tpu.dot_dimension_numbers<[1], [0], [0], [1], [0, 0, 1, 1], [], []>} : vector<24x16xf32>, vector<16x32xf32>, vector<24x32xf32> -> vector<24x32xf32>
    %91 = arith.addf %84, %90 : vector<24x32xf32>
    %92 = vector.extract_strided_slice %78 {offsets = [48, 0], sizes = [24, 24], strides = [1, 1]} : vector<96x24xf32> to vector<24x24xf32>
    %93 = vector.extract_strided_slice %45 {offsets = [24, 0], sizes = [24, 16], strides = [1, 1]} : vector<48x16xf32> to vector<24x16xf32>
    %cst_57 = arith.constant dense<0.000000e+00> : vector<24x16xf32>
    %94 = tpu.matmul %92, %93, %cst_57 {dimension_numbers = #tpu.dot_dimension_numbers<[1], [0], [0], [1], [0, 0, 1, 1], [], []>} : vector<24x24xf32>, vector<24x16xf32>, vector<24x16xf32> -> vector<24x16xf32>
    %c0_58 = arith.constant 0 : index
    %c0_59 = arith.constant 0 : index
    %c0_60 = arith.constant 0 : index
    %95 = vector.load %arg8[%c0_58, %c0_59, %c0_60] : memref<4x16x32xf32, #tpu.memory_space<vmem>>, vector<1x16x32xf32>
    %96 = vector.shape_cast %95 : vector<1x16x32xf32> to vector<16x32xf32>
    %cst_61 = arith.constant dense<0.000000e+00> : vector<24x32xf32>
    %97 = tpu.matmul %94, %96, %cst_61 {dimension_numbers = #tpu.dot_dimension_numbers<[1], [0], [0], [1], [0, 0, 1, 1], [], []>} : vector<24x16xf32>, vector<16x32xf32>, vector<24x32xf32> -> vector<24x32xf32>
    %98 = vector.extract_strided_slice %78 {offsets = [72, 0], sizes = [24, 24], strides = [1, 1]} : vector<96x24xf32> to vector<24x24xf32>
    %99 = vector.extract_strided_slice %48 {offsets = [24, 0], sizes = [24, 16], strides = [1, 1]} : vector<48x16xf32> to vector<24x16xf32>
    %cst_62 = arith.constant dense<0.000000e+00> : vector<24x16xf32>
    %100 = tpu.matmul %98, %99, %cst_62 {dimension_numbers = #tpu.dot_dimension_numbers<[1], [0], [0], [1], [0, 0, 1, 1], [], []>} : vector<24x24xf32>, vector<24x16xf32>, vector<24x16xf32> -> vector<24x16xf32>
    %c1_63 = arith.constant 1 : index
    %c0_64 = arith.constant 0 : index
    %c0_65 = arith.constant 0 : index
    %101 = vector.load %arg8[%c1_63, %c0_64, %c0_65] : memref<4x16x32xf32, #tpu.memory_space<vmem>>, vector<1x16x32xf32>
    %102 = vector.shape_cast %101 : vector<1x16x32xf32> to vector<16x32xf32>
    %cst_66 = arith.constant dense<0.000000e+00> : vector<24x32xf32>
    %103 = tpu.matmul %100, %102, %cst_66 {dimension_numbers = #tpu.dot_dimension_numbers<[1], [0], [0], [1], [0, 0, 1, 1], [], []>} : vector<24x16xf32>, vector<16x32xf32>, vector<24x32xf32> -> vector<24x32xf32>
    %104 = arith.addf %97, %103 : vector<24x32xf32>
    %105 = tpu.concatenate %91, %104 in 0 : vector<24x32xf32>, vector<24x32xf32> -> vector<48x32xf32>
    %106 = arith.addf %4, %105 : vector<48x32xf32>
    %c0_67 = arith.constant 0 : index
    %c0_68 = arith.constant 0 : index
    %c0_69 = arith.constant 0 : index
    %107 = vector.load %arg9[%c0_67, %c0_68, %c0_69] : memref<2x1x32xf32, #tpu.memory_space<vmem>>, vector<1x1x32xf32>
    %108 = vector.shape_cast %107 : vector<1x1x32xf32> to vector<1x32xf32>
    %109 = vector.broadcast %108 : vector<1x32xf32> to vector<48x32xf32>
    %110 = arith.addf %106, %109 : vector<48x32xf32>
    %c0_70 = arith.constant 0 : index
    %c0_71 = arith.constant 0 : index
    %c0_72 = arith.constant 0 : index
    %111 = vector.load %arg10[%c0_70, %c0_71, %c0_72] : memref<2x1x32xf32, #tpu.memory_space<vmem>>, vector<1x1x32xf32>
    %112 = vector.shape_cast %111 : vector<1x1x32xf32> to vector<1x32xf32>
    %c0_73 = arith.constant 0 : index
    %c0_74 = arith.constant 0 : index
    %c0_75 = arith.constant 0 : index
    %113 = vector.load %arg11[%c0_73, %c0_74, %c0_75] : memref<2x1x32xf32, #tpu.memory_space<vmem>>, vector<1x1x32xf32>
    %114 = vector.shape_cast %113 : vector<1x1x32xf32> to vector<1x32xf32>
    %cst_76 = arith.constant dense<0.000000e+00> : vector<48xf32>
    %115 = vector.multi_reduction <add>, %110, %cst_76 [1] : vector<48x32xf32> to vector<48xf32>
    %116 = vector.shape_cast %115 : vector<48xf32> to vector<48x1xf32>
    %cst_77 = arith.constant 3.200000e+01 : f32
    %117 = vector.broadcast %cst_77 : f32 to vector<48x1xf32>
    %118 = arith.divf %116, %117 : vector<48x1xf32>
    %119 = vector.broadcast %118 : vector<48x1xf32> to vector<48x32xf32>
    %120 = arith.subf %110, %119 : vector<48x32xf32>
    %121 = arith.mulf %120, %120 : vector<48x32xf32>
    %cst_78 = arith.constant dense<0.000000e+00> : vector<48xf32>
    %122 = vector.multi_reduction <add>, %121, %cst_78 [1] : vector<48x32xf32> to vector<48xf32>
    %123 = vector.shape_cast %122 : vector<48xf32> to vector<48x1xf32>
    %cst_79 = arith.constant 3.200000e+01 : f32
    %124 = vector.broadcast %cst_79 : f32 to vector<48x1xf32>
    %125 = arith.divf %123, %124 : vector<48x1xf32>
    %126 = vector.broadcast %118 : vector<48x1xf32> to vector<48x32xf32>
    %127 = arith.subf %110, %126 : vector<48x32xf32>
    %cst_80 = arith.constant 9.99999974E-6 : f32
    %128 = vector.broadcast %cst_80 : f32 to vector<48x1xf32>
    %129 = arith.addf %125, %128 : vector<48x1xf32>
    %130 = math.rsqrt %129 : vector<48x1xf32>
    %131 = vector.broadcast %130 : vector<48x1xf32> to vector<48x32xf32>
    %132 = arith.mulf %127, %131 : vector<48x32xf32>
    %133 = vector.broadcast %112 : vector<1x32xf32> to vector<48x32xf32>
    %134 = arith.mulf %132, %133 : vector<48x32xf32>
    %135 = vector.broadcast %114 : vector<1x32xf32> to vector<48x32xf32>
    %136 = arith.addf %134, %135 : vector<48x32xf32>
    %c0_81 = arith.constant 0 : index
    %c0_82 = arith.constant 0 : index
    %c0_83 = arith.constant 0 : index
    %137 = vector.load %arg12[%c0_81, %c0_82, %c0_83] : memref<2x32x64xf32, #tpu.memory_space<vmem>>, vector<1x32x64xf32>
    %138 = vector.shape_cast %137 : vector<1x32x64xf32> to vector<32x64xf32>
    %cst_84 = arith.constant dense<0.000000e+00> : vector<48x64xf32>
    %139 = tpu.matmul %136, %138, %cst_84 {dimension_numbers = #tpu.dot_dimension_numbers<[1], [0], [0], [1], [0, 0, 1, 1], [], []>} : vector<48x32xf32>, vector<32x64xf32>, vector<48x64xf32> -> vector<48x64xf32>
    %c0_85 = arith.constant 0 : index
    %c0_86 = arith.constant 0 : index
    %c0_87 = arith.constant 0 : index
    %140 = vector.load %arg13[%c0_85, %c0_86, %c0_87] : memref<2x1x64xf32, #tpu.memory_space<vmem>>, vector<1x1x64xf32>
    %141 = vector.shape_cast %140 : vector<1x1x64xf32> to vector<1x64xf32>
    %142 = vector.broadcast %141 : vector<1x64xf32> to vector<48x64xf32>
    %143 = arith.addf %139, %142 : vector<48x64xf32>
    %cst_88 = arith.constant 5.000000e-01 : f32
    %144 = vector.broadcast %cst_88 : f32 to vector<48x64xf32>
    %145 = arith.mulf %144, %143 : vector<48x64xf32>
    %cst_89 = arith.constant 0.707106769 : f32
    %146 = vector.broadcast %cst_89 : f32 to vector<48x64xf32>
    %147 = arith.mulf %143, %146 : vector<48x64xf32>
    %cst_90 = arith.constant -3.8325069 : f32
    %cst_91 = arith.constant 3.8325069 : f32
    %148 = vector.broadcast %cst_90 : f32 to vector<48x64xf32>
    %149 = arith.maximumf %148, %147 : vector<48x64xf32>
    %150 = vector.broadcast %cst_91 : f32 to vector<48x64xf32>
    %151 = arith.minimumf %150, %149 : vector<48x64xf32>
    %152 = arith.mulf %151, %151 : vector<48x64xf32>
    %cst_92 = arith.constant -2.72614237E-10 : f32
    %153 = vector.broadcast %cst_92 : f32 to vector<48x64xf32>
    %154 = arith.mulf %153, %152 : vector<48x64xf32>
    %cst_93 = arith.constant 2.77068146E-8 : f32
    %155 = vector.broadcast %cst_93 : f32 to vector<48x64xf32>
    %156 = arith.addf %154, %155 : vector<48x64xf32>
    %157 = arith.mulf %156, %152 : vector<48x64xf32>
    %cst_94 = arith.constant -2.10102394E-6 : f32
    %158 = vector.broadcast %cst_94 : f32 to vector<48x64xf32>
    %159 = arith.addf %157, %158 : vector<48x64xf32>
    %160 = arith.mulf %159, %152 : vector<48x64xf32>
    %cst_95 = arith.constant -5.69250624E-5 : f32
    %161 = vector.broadcast %cst_95 : f32 to vector<48x64xf32>
    %162 = arith.addf %160, %161 : vector<48x64xf32>
    %163 = arith.mulf %162, %152 : vector<48x64xf32>
    %cst_96 = arith.constant -7.34990637E-4 : f32
    %164 = vector.broadcast %cst_96 : f32 to vector<48x64xf32>
    %165 = arith.addf %163, %164 : vector<48x64xf32>
    %166 = arith.mulf %165, %152 : vector<48x64xf32>
    %cst_97 = arith.constant -2.954600e-03 : f32
    %167 = vector.broadcast %cst_97 : f32 to vector<48x64xf32>
    %168 = arith.addf %166, %167 : vector<48x64xf32>
    %169 = arith.mulf %168, %152 : vector<48x64xf32>
    %cst_98 = arith.constant -0.0160960332 : f32
    %170 = vector.broadcast %cst_98 : f32 to vector<48x64xf32>
    %171 = arith.addf %169, %170 : vector<48x64xf32>
    %cst_99 = arith.constant -1.45660715E-5 : f32
    %172 = vector.broadcast %cst_99 : f32 to vector<48x64xf32>
    %173 = arith.mulf %172, %152 : vector<48x64xf32>
    %cst_100 = arith.constant -2.13374049E-4 : f32
    %174 = vector.broadcast %cst_100 : f32 to vector<48x64xf32>
    %175 = arith.addf %173, %174 : vector<48x64xf32>
    %176 = arith.mulf %175, %152 : vector<48x64xf32>
    %cst_101 = arith.constant -0.00168282702 : f32
    %177 = vector.broadcast %cst_101 : f32 to vector<48x64xf32>
    %178 = arith.addf %176, %177 : vector<48x64xf32>
    %179 = arith.mulf %178, %152 : vector<48x64xf32>
    %cst_102 = arith.constant -0.00737332925 : f32
    %180 = vector.broadcast %cst_102 : f32 to vector<48x64xf32>
    %181 = arith.addf %179, %180 : vector<48x64xf32>
    %182 = arith.mulf %181, %152 : vector<48x64xf32>
    %cst_103 = arith.constant -0.0142647391 : f32
    %183 = vector.broadcast %cst_103 : f32 to vector<48x64xf32>
    %184 = arith.addf %182, %183 : vector<48x64xf32>
    %185 = arith.mulf %151, %171 : vector<48x64xf32>
    %186 = tpu.reciprocal %184 : vector<48x64xf32> -> vector<48x64xf32>
    %187 = arith.mulf %185, %186 : vector<48x64xf32>
    %cst_104 = arith.constant 1.000000e+00 : f32
    %188 = vector.broadcast %cst_104 : f32 to vector<48x64xf32>
    %189 = arith.addf %188, %187 : vector<48x64xf32>
    %190 = arith.mulf %145, %189 : vector<48x64xf32>
    %c0_105 = arith.constant 0 : index
    %c0_106 = arith.constant 0 : index
    %c0_107 = arith.constant 0 : index
    %191 = vector.load %arg14[%c0_105, %c0_106, %c0_107] : memref<2x64x32xf32, #tpu.memory_space<vmem>>, vector<1x64x32xf32>
    %192 = vector.shape_cast %191 : vector<1x64x32xf32> to vector<64x32xf32>
    %cst_108 = arith.constant dense<0.000000e+00> : vector<48x32xf32>
    %193 = tpu.matmul %190, %192, %cst_108 {dimension_numbers = #tpu.dot_dimension_numbers<[1], [0], [0], [1], [0, 0, 1, 1], [], []>} : vector<48x64xf32>, vector<64x32xf32>, vector<48x32xf32> -> vector<48x32xf32>
    %194 = arith.addf %110, %193 : vector<48x32xf32>
    %c0_109 = arith.constant 0 : index
    %c0_110 = arith.constant 0 : index
    %c0_111 = arith.constant 0 : index
    %195 = vector.load %arg15[%c0_109, %c0_110, %c0_111] : memref<2x1x32xf32, #tpu.memory_space<vmem>>, vector<1x1x32xf32>
    %196 = vector.shape_cast %195 : vector<1x1x32xf32> to vector<1x32xf32>
    %197 = vector.broadcast %196 : vector<1x32xf32> to vector<48x32xf32>
    %198 = arith.addf %194, %197 : vector<48x32xf32>
    %c1_112 = arith.constant 1 : index
    %c0_113 = arith.constant 0 : index
    %c0_114 = arith.constant 0 : index
    %199 = vector.load %arg3[%c1_112, %c0_113, %c0_114] : memref<2x1x32xf32, #tpu.memory_space<vmem>>, vector<1x1x32xf32>
    %200 = vector.shape_cast %199 : vector<1x1x32xf32> to vector<1x32xf32>
    %c1_115 = arith.constant 1 : index
    %c0_116 = arith.constant 0 : index
    %c0_117 = arith.constant 0 : index
    %201 = vector.load %arg4[%c1_115, %c0_116, %c0_117] : memref<2x1x32xf32, #tpu.memory_space<vmem>>, vector<1x1x32xf32>
    %202 = vector.shape_cast %201 : vector<1x1x32xf32> to vector<1x32xf32>
    %cst_118 = arith.constant dense<0.000000e+00> : vector<48xf32>
    %203 = vector.multi_reduction <add>, %198, %cst_118 [1] : vector<48x32xf32> to vector<48xf32>
    %204 = vector.shape_cast %203 : vector<48xf32> to vector<48x1xf32>
    %cst_119 = arith.constant 3.200000e+01 : f32
    %205 = vector.broadcast %cst_119 : f32 to vector<48x1xf32>
    %206 = arith.divf %204, %205 : vector<48x1xf32>
    %207 = vector.broadcast %206 : vector<48x1xf32> to vector<48x32xf32>
    %208 = arith.subf %198, %207 : vector<48x32xf32>
    %209 = arith.mulf %208, %208 : vector<48x32xf32>
    %cst_120 = arith.constant dense<0.000000e+00> : vector<48xf32>
    %210 = vector.multi_reduction <add>, %209, %cst_120 [1] : vector<48x32xf32> to vector<48xf32>
    %211 = vector.shape_cast %210 : vector<48xf32> to vector<48x1xf32>
    %cst_121 = arith.constant 3.200000e+01 : f32
    %212 = vector.broadcast %cst_121 : f32 to vector<48x1xf32>
    %213 = arith.divf %211, %212 : vector<48x1xf32>
    %214 = vector.broadcast %206 : vector<48x1xf32> to vector<48x32xf32>
    %215 = arith.subf %198, %214 : vector<48x32xf32>
    %cst_122 = arith.constant 9.99999974E-6 : f32
    %216 = vector.broadcast %cst_122 : f32 to vector<48x1xf32>
    %217 = arith.addf %213, %216 : vector<48x1xf32>
    %218 = math.rsqrt %217 : vector<48x1xf32>
    %219 = vector.broadcast %218 : vector<48x1xf32> to vector<48x32xf32>
    %220 = arith.mulf %215, %219 : vector<48x32xf32>
    %221 = vector.broadcast %200 : vector<1x32xf32> to vector<48x32xf32>
    %222 = arith.mulf %220, %221 : vector<48x32xf32>
    %223 = vector.broadcast %202 : vector<1x32xf32> to vector<48x32xf32>
    %224 = arith.addf %222, %223 : vector<48x32xf32>
    %c2 = arith.constant 2 : index
    %c0_123 = arith.constant 0 : index
    %c0_124 = arith.constant 0 : index
    %225 = vector.load %arg5[%c2, %c0_123, %c0_124] : memref<4x32x16xf32, #tpu.memory_space<vmem>>, vector<1x32x16xf32>
    %226 = vector.shape_cast %225 : vector<1x32x16xf32> to vector<32x16xf32>
    %cst_125 = arith.constant dense<0.000000e+00> : vector<48x16xf32>
    %227 = tpu.matmul %224, %226, %cst_125 {dimension_numbers = #tpu.dot_dimension_numbers<[1], [0], [0], [1], [0, 0, 1, 1], [], []>} : vector<48x32xf32>, vector<32x16xf32>, vector<48x16xf32> -> vector<48x16xf32>
    %c3 = arith.constant 3 : index
    %c0_126 = arith.constant 0 : index
    %c0_127 = arith.constant 0 : index
    %228 = vector.load %arg5[%c3, %c0_126, %c0_127] : memref<4x32x16xf32, #tpu.memory_space<vmem>>, vector<1x32x16xf32>
    %229 = vector.shape_cast %228 : vector<1x32x16xf32> to vector<32x16xf32>
    %cst_128 = arith.constant dense<0.000000e+00> : vector<48x16xf32>
    %230 = tpu.matmul %224, %229, %cst_128 {dimension_numbers = #tpu.dot_dimension_numbers<[1], [0], [0], [1], [0, 0, 1, 1], [], []>} : vector<48x32xf32>, vector<32x16xf32>, vector<48x16xf32> -> vector<48x16xf32>
    %c2_129 = arith.constant 2 : index
    %c0_130 = arith.constant 0 : index
    %c0_131 = arith.constant 0 : index
    %231 = vector.load %arg6[%c2_129, %c0_130, %c0_131] : memref<4x32x16xf32, #tpu.memory_space<vmem>>, vector<1x32x16xf32>
    %232 = vector.shape_cast %231 : vector<1x32x16xf32> to vector<32x16xf32>
    %cst_132 = arith.constant dense<0.000000e+00> : vector<48x16xf32>
    %233 = tpu.matmul %224, %232, %cst_132 {dimension_numbers = #tpu.dot_dimension_numbers<[1], [0], [0], [1], [0, 0, 1, 1], [], []>} : vector<48x32xf32>, vector<32x16xf32>, vector<48x16xf32> -> vector<48x16xf32>
    %c3_133 = arith.constant 3 : index
    %c0_134 = arith.constant 0 : index
    %c0_135 = arith.constant 0 : index
    %234 = vector.load %arg6[%c3_133, %c0_134, %c0_135] : memref<4x32x16xf32, #tpu.memory_space<vmem>>, vector<1x32x16xf32>
    %235 = vector.shape_cast %234 : vector<1x32x16xf32> to vector<32x16xf32>
    %cst_136 = arith.constant dense<0.000000e+00> : vector<48x16xf32>
    %236 = tpu.matmul %224, %235, %cst_136 {dimension_numbers = #tpu.dot_dimension_numbers<[1], [0], [0], [1], [0, 0, 1, 1], [], []>} : vector<48x32xf32>, vector<32x16xf32>, vector<48x16xf32> -> vector<48x16xf32>
    %c2_137 = arith.constant 2 : index
    %c0_138 = arith.constant 0 : index
    %c0_139 = arith.constant 0 : index
    %237 = vector.load %arg7[%c2_137, %c0_138, %c0_139] : memref<4x32x16xf32, #tpu.memory_space<vmem>>, vector<1x32x16xf32>
    %238 = vector.shape_cast %237 : vector<1x32x16xf32> to vector<32x16xf32>
    %cst_140 = arith.constant dense<0.000000e+00> : vector<48x16xf32>
    %239 = tpu.matmul %224, %238, %cst_140 {dimension_numbers = #tpu.dot_dimension_numbers<[1], [0], [0], [1], [0, 0, 1, 1], [], []>} : vector<48x32xf32>, vector<32x16xf32>, vector<48x16xf32> -> vector<48x16xf32>
    %c3_141 = arith.constant 3 : index
    %c0_142 = arith.constant 0 : index
    %c0_143 = arith.constant 0 : index
    %240 = vector.load %arg7[%c3_141, %c0_142, %c0_143] : memref<4x32x16xf32, #tpu.memory_space<vmem>>, vector<1x32x16xf32>
    %241 = vector.shape_cast %240 : vector<1x32x16xf32> to vector<32x16xf32>
    %cst_144 = arith.constant dense<0.000000e+00> : vector<48x16xf32>
    %242 = tpu.matmul %224, %241, %cst_144 {dimension_numbers = #tpu.dot_dimension_numbers<[1], [0], [0], [1], [0, 0, 1, 1], [], []>} : vector<48x32xf32>, vector<32x16xf32>, vector<48x16xf32> -> vector<48x16xf32>
    %243 = vector.extract_strided_slice %227 {offsets = [0, 0], sizes = [24, 16], strides = [1, 1]} : vector<48x16xf32> to vector<24x16xf32>
    %244 = vector.extract_strided_slice %233 {offsets = [0, 0], sizes = [24, 16], strides = [1, 1]} : vector<48x16xf32> to vector<24x16xf32>
    %cst_145 = arith.constant dense<0.000000e+00> : vector<24x24xf32>
    %245 = tpu.matmul %243, %244, %cst_145 {dimension_numbers = #tpu.dot_dimension_numbers<[1], [1], [0], [0], [0, 0, 1, 0], [], []>} : vector<24x16xf32>, vector<24x16xf32>, vector<24x24xf32> -> vector<24x24xf32>
    %246 = vector.extract_strided_slice %230 {offsets = [0, 0], sizes = [24, 16], strides = [1, 1]} : vector<48x16xf32> to vector<24x16xf32>
    %247 = vector.extract_strided_slice %236 {offsets = [0, 0], sizes = [24, 16], strides = [1, 1]} : vector<48x16xf32> to vector<24x16xf32>
    %cst_146 = arith.constant dense<0.000000e+00> : vector<24x24xf32>
    %248 = tpu.matmul %246, %247, %cst_146 {dimension_numbers = #tpu.dot_dimension_numbers<[1], [1], [0], [0], [0, 0, 1, 0], [], []>} : vector<24x16xf32>, vector<24x16xf32>, vector<24x24xf32> -> vector<24x24xf32>
    %249 = vector.extract_strided_slice %227 {offsets = [24, 0], sizes = [24, 16], strides = [1, 1]} : vector<48x16xf32> to vector<24x16xf32>
    %250 = vector.extract_strided_slice %233 {offsets = [24, 0], sizes = [24, 16], strides = [1, 1]} : vector<48x16xf32> to vector<24x16xf32>
    %cst_147 = arith.constant dense<0.000000e+00> : vector<24x24xf32>
    %251 = tpu.matmul %249, %250, %cst_147 {dimension_numbers = #tpu.dot_dimension_numbers<[1], [1], [0], [0], [0, 0, 1, 0], [], []>} : vector<24x16xf32>, vector<24x16xf32>, vector<24x24xf32> -> vector<24x24xf32>
    %252 = vector.extract_strided_slice %230 {offsets = [24, 0], sizes = [24, 16], strides = [1, 1]} : vector<48x16xf32> to vector<24x16xf32>
    %253 = vector.extract_strided_slice %236 {offsets = [24, 0], sizes = [24, 16], strides = [1, 1]} : vector<48x16xf32> to vector<24x16xf32>
    %cst_148 = arith.constant dense<0.000000e+00> : vector<24x24xf32>
    %254 = tpu.matmul %252, %253, %cst_148 {dimension_numbers = #tpu.dot_dimension_numbers<[1], [1], [0], [0], [0, 0, 1, 0], [], []>} : vector<24x16xf32>, vector<24x16xf32>, vector<24x24xf32> -> vector<24x24xf32>
    %255 = tpu.concatenate %245, %248, %251, %254 in 0 : vector<24x24xf32>, vector<24x24xf32>, vector<24x24xf32>, vector<24x24xf32> -> vector<96x24xf32>
    %cst_149 = arith.constant 2.500000e-01 : f32
    %256 = vector.broadcast %cst_149 : f32 to vector<96x24xf32>
    %257 = arith.mulf %255, %256 : vector<96x24xf32>
    %258 = tpu.iota {dimensions = array<i32: 1>} : vector<96x24xi32>
    %c17_i32_150 = arith.constant 17 : i32
    %259 = vector.broadcast %c17_i32_150 : i32 to vector<96x24xi32>
    %260 = arith.cmpi slt, %258, %259 : vector<96x24xi32>
    %cst_151 = arith.constant -1.000000e+30 : f32
    %261 = vector.broadcast %cst_151 : f32 to vector<96x24xf32>
    %262 = arith.select %260, %257, %261 : vector<96x24xi1>, vector<96x24xf32>
    %cst_152 = arith.constant dense<0xFF800000> : vector<96xf32>
    %263 = vector.multi_reduction <maximumf>, %262, %cst_152 [1] : vector<96x24xf32> to vector<96xf32>
    %264 = vector.shape_cast %263 : vector<96xf32> to vector<96x1xf32>
    %265 = vector.broadcast %264 : vector<96x1xf32> to vector<96x24xf32>
    %266 = arith.subf %262, %265 : vector<96x24xf32>
    %267 = math.exp %266 : vector<96x24xf32>
    %cst_153 = arith.constant dense<0.000000e+00> : vector<96xf32>
    %268 = vector.multi_reduction <add>, %267, %cst_153 [1] : vector<96x24xf32> to vector<96xf32>
    %269 = vector.shape_cast %268 : vector<96xf32> to vector<96x1xf32>
    %270 = tpu.reciprocal %269 {approx = true} : vector<96x1xf32> -> vector<96x1xf32>
    %271 = vector.broadcast %270 : vector<96x1xf32> to vector<96x24xf32>
    %272 = arith.mulf %267, %271 : vector<96x24xf32>
    %273 = vector.extract_strided_slice %272 {offsets = [0, 0], sizes = [24, 24], strides = [1, 1]} : vector<96x24xf32> to vector<24x24xf32>
    %274 = vector.extract_strided_slice %239 {offsets = [0, 0], sizes = [24, 16], strides = [1, 1]} : vector<48x16xf32> to vector<24x16xf32>
    %cst_154 = arith.constant dense<0.000000e+00> : vector<24x16xf32>
    %275 = tpu.matmul %273, %274, %cst_154 {dimension_numbers = #tpu.dot_dimension_numbers<[1], [0], [0], [1], [0, 0, 1, 1], [], []>} : vector<24x24xf32>, vector<24x16xf32>, vector<24x16xf32> -> vector<24x16xf32>
    %c2_155 = arith.constant 2 : index
    %c0_156 = arith.constant 0 : index
    %c0_157 = arith.constant 0 : index
    %276 = vector.load %arg8[%c2_155, %c0_156, %c0_157] : memref<4x16x32xf32, #tpu.memory_space<vmem>>, vector<1x16x32xf32>
    %277 = vector.shape_cast %276 : vector<1x16x32xf32> to vector<16x32xf32>
    %cst_158 = arith.constant dense<0.000000e+00> : vector<24x32xf32>
    %278 = tpu.matmul %275, %277, %cst_158 {dimension_numbers = #tpu.dot_dimension_numbers<[1], [0], [0], [1], [0, 0, 1, 1], [], []>} : vector<24x16xf32>, vector<16x32xf32>, vector<24x32xf32> -> vector<24x32xf32>
    %279 = vector.extract_strided_slice %272 {offsets = [24, 0], sizes = [24, 24], strides = [1, 1]} : vector<96x24xf32> to vector<24x24xf32>
    %280 = vector.extract_strided_slice %242 {offsets = [0, 0], sizes = [24, 16], strides = [1, 1]} : vector<48x16xf32> to vector<24x16xf32>
    %cst_159 = arith.constant dense<0.000000e+00> : vector<24x16xf32>
    %281 = tpu.matmul %279, %280, %cst_159 {dimension_numbers = #tpu.dot_dimension_numbers<[1], [0], [0], [1], [0, 0, 1, 1], [], []>} : vector<24x24xf32>, vector<24x16xf32>, vector<24x16xf32> -> vector<24x16xf32>
    %c3_160 = arith.constant 3 : index
    %c0_161 = arith.constant 0 : index
    %c0_162 = arith.constant 0 : index
    %282 = vector.load %arg8[%c3_160, %c0_161, %c0_162] : memref<4x16x32xf32, #tpu.memory_space<vmem>>, vector<1x16x32xf32>
    %283 = vector.shape_cast %282 : vector<1x16x32xf32> to vector<16x32xf32>
    %cst_163 = arith.constant dense<0.000000e+00> : vector<24x32xf32>
    %284 = tpu.matmul %281, %283, %cst_163 {dimension_numbers = #tpu.dot_dimension_numbers<[1], [0], [0], [1], [0, 0, 1, 1], [], []>} : vector<24x16xf32>, vector<16x32xf32>, vector<24x32xf32> -> vector<24x32xf32>
    %285 = arith.addf %278, %284 : vector<24x32xf32>
    %286 = vector.extract_strided_slice %272 {offsets = [48, 0], sizes = [24, 24], strides = [1, 1]} : vector<96x24xf32> to vector<24x24xf32>
    %287 = vector.extract_strided_slice %239 {offsets = [24, 0], sizes = [24, 16], strides = [1, 1]} : vector<48x16xf32> to vector<24x16xf32>
    %cst_164 = arith.constant dense<0.000000e+00> : vector<24x16xf32>
    %288 = tpu.matmul %286, %287, %cst_164 {dimension_numbers = #tpu.dot_dimension_numbers<[1], [0], [0], [1], [0, 0, 1, 1], [], []>} : vector<24x24xf32>, vector<24x16xf32>, vector<24x16xf32> -> vector<24x16xf32>
    %c2_165 = arith.constant 2 : index
    %c0_166 = arith.constant 0 : index
    %c0_167 = arith.constant 0 : index
    %289 = vector.load %arg8[%c2_165, %c0_166, %c0_167] : memref<4x16x32xf32, #tpu.memory_space<vmem>>, vector<1x16x32xf32>
    %290 = vector.shape_cast %289 : vector<1x16x32xf32> to vector<16x32xf32>
    %cst_168 = arith.constant dense<0.000000e+00> : vector<24x32xf32>
    %291 = tpu.matmul %288, %290, %cst_168 {dimension_numbers = #tpu.dot_dimension_numbers<[1], [0], [0], [1], [0, 0, 1, 1], [], []>} : vector<24x16xf32>, vector<16x32xf32>, vector<24x32xf32> -> vector<24x32xf32>
    %292 = vector.extract_strided_slice %272 {offsets = [72, 0], sizes = [24, 24], strides = [1, 1]} : vector<96x24xf32> to vector<24x24xf32>
    %293 = vector.extract_strided_slice %242 {offsets = [24, 0], sizes = [24, 16], strides = [1, 1]} : vector<48x16xf32> to vector<24x16xf32>
    %cst_169 = arith.constant dense<0.000000e+00> : vector<24x16xf32>
    %294 = tpu.matmul %292, %293, %cst_169 {dimension_numbers = #tpu.dot_dimension_numbers<[1], [0], [0], [1], [0, 0, 1, 1], [], []>} : vector<24x24xf32>, vector<24x16xf32>, vector<24x16xf32> -> vector<24x16xf32>
    %c3_170 = arith.constant 3 : index
    %c0_171 = arith.constant 0 : index
    %c0_172 = arith.constant 0 : index
    %295 = vector.load %arg8[%c3_170, %c0_171, %c0_172] : memref<4x16x32xf32, #tpu.memory_space<vmem>>, vector<1x16x32xf32>
    %296 = vector.shape_cast %295 : vector<1x16x32xf32> to vector<16x32xf32>
    %cst_173 = arith.constant dense<0.000000e+00> : vector<24x32xf32>
    %297 = tpu.matmul %294, %296, %cst_173 {dimension_numbers = #tpu.dot_dimension_numbers<[1], [0], [0], [1], [0, 0, 1, 1], [], []>} : vector<24x16xf32>, vector<16x32xf32>, vector<24x32xf32> -> vector<24x32xf32>
    %298 = arith.addf %291, %297 : vector<24x32xf32>
    %299 = tpu.concatenate %285, %298 in 0 : vector<24x32xf32>, vector<24x32xf32> -> vector<48x32xf32>
    %300 = arith.addf %198, %299 : vector<48x32xf32>
    %c1_174 = arith.constant 1 : index
    %c0_175 = arith.constant 0 : index
    %c0_176 = arith.constant 0 : index
    %301 = vector.load %arg9[%c1_174, %c0_175, %c0_176] : memref<2x1x32xf32, #tpu.memory_space<vmem>>, vector<1x1x32xf32>
    %302 = vector.shape_cast %301 : vector<1x1x32xf32> to vector<1x32xf32>
    %303 = vector.broadcast %302 : vector<1x32xf32> to vector<48x32xf32>
    %304 = arith.addf %300, %303 : vector<48x32xf32>
    %c1_177 = arith.constant 1 : index
    %c0_178 = arith.constant 0 : index
    %c0_179 = arith.constant 0 : index
    %305 = vector.load %arg10[%c1_177, %c0_178, %c0_179] : memref<2x1x32xf32, #tpu.memory_space<vmem>>, vector<1x1x32xf32>
    %306 = vector.shape_cast %305 : vector<1x1x32xf32> to vector<1x32xf32>
    %c1_180 = arith.constant 1 : index
    %c0_181 = arith.constant 0 : index
    %c0_182 = arith.constant 0 : index
    %307 = vector.load %arg11[%c1_180, %c0_181, %c0_182] : memref<2x1x32xf32, #tpu.memory_space<vmem>>, vector<1x1x32xf32>
    %308 = vector.shape_cast %307 : vector<1x1x32xf32> to vector<1x32xf32>
    %cst_183 = arith.constant dense<0.000000e+00> : vector<48xf32>
    %309 = vector.multi_reduction <add>, %304, %cst_183 [1] : vector<48x32xf32> to vector<48xf32>
    %310 = vector.shape_cast %309 : vector<48xf32> to vector<48x1xf32>
    %cst_184 = arith.constant 3.200000e+01 : f32
    %311 = vector.broadcast %cst_184 : f32 to vector<48x1xf32>
    %312 = arith.divf %310, %311 : vector<48x1xf32>
    %313 = vector.broadcast %312 : vector<48x1xf32> to vector<48x32xf32>
    %314 = arith.subf %304, %313 : vector<48x32xf32>
    %315 = arith.mulf %314, %314 : vector<48x32xf32>
    %cst_185 = arith.constant dense<0.000000e+00> : vector<48xf32>
    %316 = vector.multi_reduction <add>, %315, %cst_185 [1] : vector<48x32xf32> to vector<48xf32>
    %317 = vector.shape_cast %316 : vector<48xf32> to vector<48x1xf32>
    %cst_186 = arith.constant 3.200000e+01 : f32
    %318 = vector.broadcast %cst_186 : f32 to vector<48x1xf32>
    %319 = arith.divf %317, %318 : vector<48x1xf32>
    %320 = vector.broadcast %312 : vector<48x1xf32> to vector<48x32xf32>
    %321 = arith.subf %304, %320 : vector<48x32xf32>
    %cst_187 = arith.constant 9.99999974E-6 : f32
    %322 = vector.broadcast %cst_187 : f32 to vector<48x1xf32>
    %323 = arith.addf %319, %322 : vector<48x1xf32>
    %324 = math.rsqrt %323 : vector<48x1xf32>
    %325 = vector.broadcast %324 : vector<48x1xf32> to vector<48x32xf32>
    %326 = arith.mulf %321, %325 : vector<48x32xf32>
    %327 = vector.broadcast %306 : vector<1x32xf32> to vector<48x32xf32>
    %328 = arith.mulf %326, %327 : vector<48x32xf32>
    %329 = vector.broadcast %308 : vector<1x32xf32> to vector<48x32xf32>
    %330 = arith.addf %328, %329 : vector<48x32xf32>
    %c1_188 = arith.constant 1 : index
    %c0_189 = arith.constant 0 : index
    %c0_190 = arith.constant 0 : index
    %331 = vector.load %arg12[%c1_188, %c0_189, %c0_190] : memref<2x32x64xf32, #tpu.memory_space<vmem>>, vector<1x32x64xf32>
    %332 = vector.shape_cast %331 : vector<1x32x64xf32> to vector<32x64xf32>
    %cst_191 = arith.constant dense<0.000000e+00> : vector<48x64xf32>
    %333 = tpu.matmul %330, %332, %cst_191 {dimension_numbers = #tpu.dot_dimension_numbers<[1], [0], [0], [1], [0, 0, 1, 1], [], []>} : vector<48x32xf32>, vector<32x64xf32>, vector<48x64xf32> -> vector<48x64xf32>
    %c1_192 = arith.constant 1 : index
    %c0_193 = arith.constant 0 : index
    %c0_194 = arith.constant 0 : index
    %334 = vector.load %arg13[%c1_192, %c0_193, %c0_194] : memref<2x1x64xf32, #tpu.memory_space<vmem>>, vector<1x1x64xf32>
    %335 = vector.shape_cast %334 : vector<1x1x64xf32> to vector<1x64xf32>
    %336 = vector.broadcast %335 : vector<1x64xf32> to vector<48x64xf32>
    %337 = arith.addf %333, %336 : vector<48x64xf32>
    %cst_195 = arith.constant 5.000000e-01 : f32
    %338 = vector.broadcast %cst_195 : f32 to vector<48x64xf32>
    %339 = arith.mulf %338, %337 : vector<48x64xf32>
    %cst_196 = arith.constant 0.707106769 : f32
    %340 = vector.broadcast %cst_196 : f32 to vector<48x64xf32>
    %341 = arith.mulf %337, %340 : vector<48x64xf32>
    %cst_197 = arith.constant -3.8325069 : f32
    %cst_198 = arith.constant 3.8325069 : f32
    %342 = vector.broadcast %cst_197 : f32 to vector<48x64xf32>
    %343 = arith.maximumf %342, %341 : vector<48x64xf32>
    %344 = vector.broadcast %cst_198 : f32 to vector<48x64xf32>
    %345 = arith.minimumf %344, %343 : vector<48x64xf32>
    %346 = arith.mulf %345, %345 : vector<48x64xf32>
    %cst_199 = arith.constant -2.72614237E-10 : f32
    %347 = vector.broadcast %cst_199 : f32 to vector<48x64xf32>
    %348 = arith.mulf %347, %346 : vector<48x64xf32>
    %cst_200 = arith.constant 2.77068146E-8 : f32
    %349 = vector.broadcast %cst_200 : f32 to vector<48x64xf32>
    %350 = arith.addf %348, %349 : vector<48x64xf32>
    %351 = arith.mulf %350, %346 : vector<48x64xf32>
    %cst_201 = arith.constant -2.10102394E-6 : f32
    %352 = vector.broadcast %cst_201 : f32 to vector<48x64xf32>
    %353 = arith.addf %351, %352 : vector<48x64xf32>
    %354 = arith.mulf %353, %346 : vector<48x64xf32>
    %cst_202 = arith.constant -5.69250624E-5 : f32
    %355 = vector.broadcast %cst_202 : f32 to vector<48x64xf32>
    %356 = arith.addf %354, %355 : vector<48x64xf32>
    %357 = arith.mulf %356, %346 : vector<48x64xf32>
    %cst_203 = arith.constant -7.34990637E-4 : f32
    %358 = vector.broadcast %cst_203 : f32 to vector<48x64xf32>
    %359 = arith.addf %357, %358 : vector<48x64xf32>
    %360 = arith.mulf %359, %346 : vector<48x64xf32>
    %cst_204 = arith.constant -2.954600e-03 : f32
    %361 = vector.broadcast %cst_204 : f32 to vector<48x64xf32>
    %362 = arith.addf %360, %361 : vector<48x64xf32>
    %363 = arith.mulf %362, %346 : vector<48x64xf32>
    %cst_205 = arith.constant -0.0160960332 : f32
    %364 = vector.broadcast %cst_205 : f32 to vector<48x64xf32>
    %365 = arith.addf %363, %364 : vector<48x64xf32>
    %cst_206 = arith.constant -1.45660715E-5 : f32
    %366 = vector.broadcast %cst_206 : f32 to vector<48x64xf32>
    %367 = arith.mulf %366, %346 : vector<48x64xf32>
    %cst_207 = arith.constant -2.13374049E-4 : f32
    %368 = vector.broadcast %cst_207 : f32 to vector<48x64xf32>
    %369 = arith.addf %367, %368 : vector<48x64xf32>
    %370 = arith.mulf %369, %346 : vector<48x64xf32>
    %cst_208 = arith.constant -0.00168282702 : f32
    %371 = vector.broadcast %cst_208 : f32 to vector<48x64xf32>
    %372 = arith.addf %370, %371 : vector<48x64xf32>
    %373 = arith.mulf %372, %346 : vector<48x64xf32>
    %cst_209 = arith.constant -0.00737332925 : f32
    %374 = vector.broadcast %cst_209 : f32 to vector<48x64xf32>
    %375 = arith.addf %373, %374 : vector<48x64xf32>
    %376 = arith.mulf %375, %346 : vector<48x64xf32>
    %cst_210 = arith.constant -0.0142647391 : f32
    %377 = vector.broadcast %cst_210 : f32 to vector<48x64xf32>
    %378 = arith.addf %376, %377 : vector<48x64xf32>
    %379 = arith.mulf %345, %365 : vector<48x64xf32>
    %380 = tpu.reciprocal %378 : vector<48x64xf32> -> vector<48x64xf32>
    %381 = arith.mulf %379, %380 : vector<48x64xf32>
    %cst_211 = arith.constant 1.000000e+00 : f32
    %382 = vector.broadcast %cst_211 : f32 to vector<48x64xf32>
    %383 = arith.addf %382, %381 : vector<48x64xf32>
    %384 = arith.mulf %339, %383 : vector<48x64xf32>
    %c1_212 = arith.constant 1 : index
    %c0_213 = arith.constant 0 : index
    %c0_214 = arith.constant 0 : index
    %385 = vector.load %arg14[%c1_212, %c0_213, %c0_214] : memref<2x64x32xf32, #tpu.memory_space<vmem>>, vector<1x64x32xf32>
    %386 = vector.shape_cast %385 : vector<1x64x32xf32> to vector<64x32xf32>
    %cst_215 = arith.constant dense<0.000000e+00> : vector<48x32xf32>
    %387 = tpu.matmul %384, %386, %cst_215 {dimension_numbers = #tpu.dot_dimension_numbers<[1], [0], [0], [1], [0, 0, 1, 1], [], []>} : vector<48x64xf32>, vector<64x32xf32>, vector<48x32xf32> -> vector<48x32xf32>
    %388 = arith.addf %304, %387 : vector<48x32xf32>
    %c1_216 = arith.constant 1 : index
    %c0_217 = arith.constant 0 : index
    %c0_218 = arith.constant 0 : index
    %389 = vector.load %arg15[%c1_216, %c0_217, %c0_218] : memref<2x1x32xf32, #tpu.memory_space<vmem>>, vector<1x1x32xf32>
    %390 = vector.shape_cast %389 : vector<1x1x32xf32> to vector<1x32xf32>
    %391 = vector.broadcast %390 : vector<1x32xf32> to vector<48x32xf32>
    %392 = arith.addf %388, %391 : vector<48x32xf32>
    %393 = vector.extract_strided_slice %392 {offsets = [0, 0], sizes = [1, 32], strides = [1, 1]} : vector<48x32xf32> to vector<1x32xf32>
    %394 = vector.extract_strided_slice %392 {offsets = [24, 0], sizes = [1, 32], strides = [1, 1]} : vector<48x32xf32> to vector<1x32xf32>
    %395 = tpu.concatenate %393, %394 in 0 : vector<1x32xf32>, vector<1x32xf32> -> vector<2x32xf32>
    %c0_219 = arith.constant 0 : index
    %c0_220 = arith.constant 0 : index
    %396 = vector.load %arg16[%c0_219, %c0_220] : memref<1x32xf32, #tpu.memory_space<vmem>>, vector<1x32xf32>
    %c0_221 = arith.constant 0 : index
    %c0_222 = arith.constant 0 : index
    %397 = vector.load %arg17[%c0_221, %c0_222] : memref<1x32xf32, #tpu.memory_space<vmem>>, vector<1x32xf32>
    %cst_223 = arith.constant dense<0.000000e+00> : vector<2xf32>
    %398 = vector.multi_reduction <add>, %395, %cst_223 [1] : vector<2x32xf32> to vector<2xf32>
    %399 = vector.shape_cast %398 : vector<2xf32> to vector<2x1xf32>
    %cst_224 = arith.constant 3.200000e+01 : f32
    %400 = vector.broadcast %cst_224 : f32 to vector<2x1xf32>
    %401 = arith.divf %399, %400 : vector<2x1xf32>
    %402 = vector.broadcast %401 : vector<2x1xf32> to vector<2x32xf32>
    %403 = arith.subf %395, %402 : vector<2x32xf32>
    %404 = arith.mulf %403, %403 : vector<2x32xf32>
    %cst_225 = arith.constant dense<0.000000e+00> : vector<2xf32>
    %405 = vector.multi_reduction <add>, %404, %cst_225 [1] : vector<2x32xf32> to vector<2xf32>
    %406 = vector.shape_cast %405 : vector<2xf32> to vector<2x1xf32>
    %cst_226 = arith.constant 3.200000e+01 : f32
    %407 = vector.broadcast %cst_226 : f32 to vector<2x1xf32>
    %408 = arith.divf %406, %407 : vector<2x1xf32>
    %409 = vector.broadcast %401 : vector<2x1xf32> to vector<2x32xf32>
    %410 = arith.subf %395, %409 : vector<2x32xf32>
    %cst_227 = arith.constant 9.99999974E-6 : f32
    %411 = vector.broadcast %cst_227 : f32 to vector<2x1xf32>
    %412 = arith.addf %408, %411 : vector<2x1xf32>
    %413 = math.rsqrt %412 : vector<2x1xf32>
    %414 = vector.broadcast %413 : vector<2x1xf32> to vector<2x32xf32>
    %415 = arith.mulf %410, %414 : vector<2x32xf32>
    %416 = vector.broadcast %396 : vector<1x32xf32> to vector<2x32xf32>
    %417 = arith.mulf %415, %416 : vector<2x32xf32>
    %418 = vector.broadcast %397 : vector<1x32xf32> to vector<2x32xf32>
    %419 = arith.addf %417, %418 : vector<2x32xf32>
    %c0_228 = arith.constant 0 : index
    %c0_229 = arith.constant 0 : index
    %420 = vector.load %arg18[%c0_228, %c0_229] : memref<32x10xf32, #tpu.memory_space<vmem>>, vector<32x10xf32>
    %cst_230 = arith.constant dense<0.000000e+00> : vector<2x10xf32>
    %421 = tpu.matmul %419, %420, %cst_230 {dimension_numbers = #tpu.dot_dimension_numbers<[1], [0], [0], [1], [0, 0, 1, 1], [], []>} : vector<2x32xf32>, vector<32x10xf32>, vector<2x10xf32> -> vector<2x10xf32>
    %c0_231 = arith.constant 0 : index
    %c0_232 = arith.constant 0 : index
    %422 = vector.load %arg19[%c0_231, %c0_232] : memref<1x10xf32, #tpu.memory_space<vmem>>, vector<1x10xf32>
    %423 = vector.broadcast %422 : vector<1x10xf32> to vector<2x10xf32>
    %424 = arith.addf %421, %423 : vector<2x10xf32>
    %c0_233 = arith.constant 0 : index
    %c0_234 = arith.constant 0 : index
    %425 = vector.load %arg20[%c0_233, %c0_234] : memref<2x10xf32, #tpu.memory_space<vmem>>, vector<2x10xf32>
    tpu.vector_store %arg20[%c0_233, %c0_234], %424 {strides = array<i32>} : memref<2x10xf32, #tpu.memory_space<vmem>>, vector<2x10xf32>,
    return
  }
}

</mosaic_0001>

<llo_original>
// kernel: slvit_forward.1
$region0: #{slvit_forward.1}
  #allocation0 [shape = 'u32[]', space=smem, size = 0x4, offset = 0x4, fixed_abs, tag = 'smem constant byte address 0x4 - core index']
  #allocation1 [shape = 'u32[72,128]{1,0:T(1,128)}', space=vmem, size = 0x9000, scoped, tag = 'internal scratch']
  %s0 = inlined_call_operand.vmem [shape: f32[48,64], index: 0, kind: input, shape index: {}]
  %s1 = inlined_call_operand.vmem [shape: f32[64,32], index: 1, kind: input, shape index: {}]
  %s2 = inlined_call_operand.vmem [shape: f32[48,32], index: 2, kind: input, shape index: {}]
  %s3 = inlined_call_operand.vmem [shape: f32[2,1,32], index: 3, kind: input, shape index: {}]
  %s4 = inlined_call_operand.vmem [shape: f32[2,1,32], index: 4, kind: input, shape index: {}]
  %s5 = inlined_call_operand.vmem [shape: f32[4,32,16], index: 5, kind: input, shape index: {}]
  %s6 = inlined_call_operand.vmem [shape: f32[4,32,16], index: 6, kind: input, shape index: {}]
  %s7 = inlined_call_operand.vmem [shape: f32[4,32,16], index: 7, kind: input, shape index: {}]
  %s8 = inlined_call_operand.vmem [shape: f32[4,16,32], index: 8, kind: input, shape index: {}]
  %s9 = inlined_call_operand.vmem [shape: f32[2,1,32], index: 9, kind: input, shape index: {}]
  %s10 = inlined_call_operand.vmem [shape: f32[2,1,32], index: 10, kind: input, shape index: {}]
  %s11 = inlined_call_operand.vmem [shape: f32[2,1,32], index: 11, kind: input, shape index: {}]
  %s12 = inlined_call_operand.vmem [shape: f32[2,32,64], index: 12, kind: input, shape index: {}]
  %s13 = inlined_call_operand.vmem [shape: f32[2,1,64], index: 13, kind: input, shape index: {}]
  %s14 = inlined_call_operand.vmem [shape: f32[2,64,32], index: 14, kind: input, shape index: {}]
  %s15 = inlined_call_operand.vmem [shape: f32[2,1,32], index: 15, kind: input, shape index: {}]
  %s16 = inlined_call_operand.vmem [shape: f32[1,32], index: 16, kind: input, shape index: {}]
  %s17 = inlined_call_operand.vmem [shape: f32[1,32], index: 17, kind: input, shape index: {}]
  %s18 = inlined_call_operand.vmem [shape: f32[32,10], index: 18, kind: input, shape index: {}]
  %s19 = inlined_call_operand.vmem [shape: f32[1,10], index: 19, kind: input, shape index: {}]
  %s20 = inlined_call_operand.hbm [shape: f32[2,10], index: 20, kind: output, shape index: {}]
  %s21 = sld [smem:[#allocation0]]
  $region90: #{slvit_forward.1} parent=0
    _
  %s23 = ssub.s32 1, %s21
  %s24 = scalar_select 0, %s23, %s21
  $region1: #{slvit_forward.1} parent=0
    #allocation2 [shape = 'u8[1024]{0}', space=vmem, size = 0x400, scoped, tag = 'output window, operand 0, single buffered']
    #allocation3 [shape = 's32[1]{0}', space=sflag, size = 0x4, scoped, tag = 'scoped memory for slvit_forward.1']
    %25 = vsyncpa [#allocation3], 0
    // Predicated region
    $region2: #{slvit_forward.1} parent=1 // pred_check
      _
    $region3: #{slvit_forward.1} parent=1 // pred_check_branch
      %27 = sbr.rel (0) target = $region5
    $region4: #{slvit_forward.1} parent=1 // pred_region
      _
    $region5: #{slvit_forward.1} parent=1 // pred_fallthru
      _
    // Predicated region
    $region6: #{slvit_forward.1} parent=1 // pred_check
      _
    $region7: #{slvit_forward.1} parent=1 // pred_check_branch
      %29 = sbr.rel (0) target = $region9
    $region8: #{slvit_forward.1} parent=1 // pred_region
      _
    $region9: #{slvit_forward.1} parent=1 // pred_fallthru
      _
    // Predicated region
    $region10: #{slvit_forward.1} parent=1 // pred_check
      _
    $region11: #{slvit_forward.1} parent=1 // pred_check_branch
      %31 = sbr.rel (0) target = $region13
    $region12: #{slvit_forward.1} parent=1 // pred_region
      _
    $region13: #{slvit_forward.1} parent=1 // pred_fallthru
      _
    // Predicated region
    $region14: #{slvit_forward.1} parent=1 // pred_check
      _
    $region15: #{slvit_forward.1} parent=1 // pred_check_branch
      %33 = sbr.rel (0) target = $region17
    $region16: #{slvit_forward.1} parent=1 // pred_region
      _
    $region17: #{slvit_forward.1} parent=1 // pred_fallthru
      _
    // Predicated region
    $region18: #{slvit_forward.1} parent=1 // pred_check
      _
    $region19: #{slvit_forward.1} parent=1 // pred_check_branch
      %35 = sbr.rel (0) target = $region21
    $region20: #{slvit_forward.1} parent=1 // pred_region
      _
    $region21: #{slvit_forward.1} parent=1 // pred_fallthru
      _
    // Predicated region
    $region22: #{slvit_forward.1} parent=1 // pred_check
      _
    $region23: #{slvit_forward.1} parent=1 // pred_check_branch
      %37 = sbr.rel (0) target = $region25
    $region24: #{slvit_forward.1} parent=1 // pred_region
      _
    $region25: #{slvit_forward.1} parent=1 // pred_fallthru
      _
    // Predicated region
    $region26: #{slvit_forward.1} parent=1 // pred_check
      _
    $region27: #{slvit_forward.1} parent=1 // pred_check_branch
      %39 = sbr.rel (0) target = $region29
    $region28: #{slvit_forward.1} parent=1 // pred_region
      _
    $region29: #{slvit_forward.1} parent=1 // pred_fallthru
      _
    // Predicated region
    $region30: #{slvit_forward.1} parent=1 // pred_check
      _
    $region31: #{slvit_forward.1} parent=1 // pred_check_branch
      %41 = sbr.rel (0) target = $region33
    $region32: #{slvit_forward.1} parent=1 // pred_region
      _
    $region33: #{slvit_forward.1} parent=1 // pred_fallthru
      _
    // Predicated region
    $region34: #{slvit_forward.1} parent=1 // pred_check
      _
    $region35: #{slvit_forward.1} parent=1 // pred_check_branch
      %43 = sbr.rel (0) target = $region37
    $region36: #{slvit_forward.1} parent=1 // pred_region
      _
    $region37: #{slvit_forward.1} parent=1 // pred_fallthru
      _
    // Predicated region
    $region38: #{slvit_forward.1} parent=1 // pred_check
      _
    $region39: #{slvit_forward.1} parent=1 // pred_check_branch
      %45 = sbr.rel (0) target = $region41
    $region40: #{slvit_forward.1} parent=1 // pred_region
      _
    $region41: #{slvit_forward.1} parent=1 // pred_fallthru
      _
    // Predicated region
    $region42: #{slvit_forward.1} parent=1 // pred_check
      _
    $region43: #{slvit_forward.1} parent=1 // pred_check_branch
      %47 = sbr.rel (0) target = $region45
    $region44: #{slvit_forward.1} parent=1 // pred_region
      _
    $region45: #{slvit_forward.1} parent=1 // pred_fallthru
      _
    // Predicated region
    $region46: #{slvit_forward.1} parent=1 // pred_check
      _
    $region47: #{slvit_forward.1} parent=1 // pred_check_branch
      %49 = sbr.rel (0) target = $region49
    $region48: #{slvit_forward.1} parent=1 // pred_region
      _
    $region49: #{slvit_forward.1} parent=1 // pred_fallthru
      _
    // Predicated region
    $region50: #{slvit_forward.1} parent=1 // pred_check
      _
    $region51: #{slvit_forward.1} parent=1 // pred_check_branch
      %51 = sbr.rel (0) target = $region53
    $region52: #{slvit_forward.1} parent=1 // pred_region
      _
    $region53: #{slvit_forward.1} parent=1 // pred_fallthru
      _
    // Predicated region
    $region54: #{slvit_forward.1} parent=1 // pred_check
      _
    $region55: #{slvit_forward.1} parent=1 // pred_check_branch
      %53 = sbr.rel (0) target = $region57
    $region56: #{slvit_forward.1} parent=1 // pred_region
      _
    $region57: #{slvit_forward.1} parent=1 // pred_fallthru
      _
    // Predicated region
    $region58: #{slvit_forward.1} parent=1 // pred_check
      _
    $region59: #{slvit_forward.1} parent=1 // pred_check_branch
      %55 = sbr.rel (0) target = $region61
    $region60: #{slvit_forward.1} parent=1 // pred_region
      _
    $region61: #{slvit_forward.1} parent=1 // pred_fallthru
      _
    // Predicated region
    $region62: #{slvit_forward.1} parent=1 // pred_check
      _
    $region63: #{slvit_forward.1} parent=1 // pred_check_branch
      %57 = sbr.rel (0) target = $region65
    $region64: #{slvit_forward.1} parent=1 // pred_region
      _
    $region65: #{slvit_forward.1} parent=1 // pred_fallthru
      _
    // Predicated region
    $region66: #{slvit_forward.1} parent=1 // pred_check
      _
    $region67: #{slvit_forward.1} parent=1 // pred_check_branch
      %59 = sbr.rel (0) target = $region69
    $region68: #{slvit_forward.1} parent=1 // pred_region
      _
    $region69: #{slvit_forward.1} parent=1 // pred_fallthru
      _
    // Predicated region
    $region70: #{slvit_forward.1} parent=1 // pred_check
      _
    $region71: #{slvit_forward.1} parent=1 // pred_check_branch
      %61 = sbr.rel (0) target = $region73
    $region72: #{slvit_forward.1} parent=1 // pred_region
      _
    $region73: #{slvit_forward.1} parent=1 // pred_fallthru
      _
    // Predicated region
    $region74: #{slvit_forward.1} parent=1 // pred_check
      _
    $region75: #{slvit_forward.1} parent=1 // pred_check_branch
      %63 = sbr.rel (0) target = $region77
    $region76: #{slvit_forward.1} parent=1 // pred_region
      _
    $region77: #{slvit_forward.1} parent=1 // pred_fallthru
      _
    // Predicated region
    $region78: #{slvit_forward.1} parent=1 // pred_check
      _
    $region79: #{slvit_forward.1} parent=1 // pred_check_branch
      %65 = sbr.rel (0) target = $region81
    $region80: #{slvit_forward.1} parent=1 // pred_region
      _
    $region81: #{slvit_forward.1} parent=1 // pred_fallthru
      _
    %v66 = vld [vmem:[%s0] sm:$0xff]
    %v67 = vld [vmem:[%s0 + $0x8] sm:$0xff]
    %v68 = vld [vmem:[%s0 + $0x10] sm:$0xff]
    %v69 = vld [vmem:[%s0 + $0x18] sm:$0xff]
    %v70 = vld [vmem:[%s0 + $0x20] sm:$0xff]
    %v71 = vld [vmem:[%s0 + $0x28] sm:$0xff]
    %v72 = vld [vmem:[%s1] sm:$0xff]
    %v73 = vld [vmem:[%s1 + $0x8] sm:$0xff]
    %v74 = vld [vmem:[%s1 + $0x10] sm:$0xff]
    %v75 = vld [vmem:[%s1 + $0x18] sm:$0xff]
    %v76 = vld [vmem:[%s1 + $0x20] sm:$0xff]
    %v77 = vld [vmem:[%s1 + $0x28] sm:$0xff]
    %v78 = vld [vmem:[%s1 + $0x30] sm:$0xff]
    %v79 = vld [vmem:[%s1 + $0x38] sm:$0xff]
    %v80 = vld [vmem:[%s2] sm:$0xff]
    %v81 = vld [vmem:[%s2 + $0x8] sm:$0xff]
    %v82 = vld [vmem:[%s2 + $0x10] sm:$0xff]
    %v83 = vld [vmem:[%s2 + $0x18] sm:$0xff]
    %v84 = vld [vmem:[%s2 + $0x20] sm:$0xff]
    %v85 = vld [vmem:[%s2 + $0x28] sm:$0xff]
    %vm86 = vcmask 523264
    %v88 = vsel %vm86, %v66, 0
    %v91 = vsel %vm86, %v67, 0
    %v94 = vsel %vm86, %v68, 0
    %v97 = vsel %vm86, %v69, 0
    %v100 = vsel %vm86, %v70, 0
    %v103 = vsel %vm86, %v71, 0
    %105 = vmatpush.msra.mxu0 0.0
    %106 = vmatpush.msra.mxu0 0.0
    %107 = vmatpush.msra.mxu0 0.0
    %108 = vmatpush.msra.mxu0 0.0
    %109 = vmatpush.msra.mxu0 0.0
    %110 = vmatpush.msra.mxu0 0.0
    %111 = vmatpush.msra.mxu0 0.0
    %112 = vmatpush.msra.mxu0 0.0
    %113 = vmatpush.msra.mxu0 %v79
    %114 = vmatpush.msra.mxu0 %v78
    %115 = vmatpush.msra.mxu0 %v77
    %116 = vmatpush.msra.mxu0 %v76
    %117 = vmatpush.msra.mxu0 %v75
    %118 = vmatpush.msra.mxu0 %v74
    %119 = vmatpush.msra.mxu0 %v73
    %120 = vmatpush.msra.mxu0 %v72
    %121 = vmatmul.f32.gmra.mxu0 %v88
    %v122 = vpop.f32.mrf.mxu0
    %v123 = vadd.f32 %v80, %v122
    %124 = vmatmul.f32.gmra.mxu0 %v91
    %v125 = vpop.f32.mrf.mxu0
    %v126 = vadd.f32 %v81, %v125
    %127 = vmatmul.f32.gmra.mxu0 %v94
    %v128 = vpop.f32.mrf.mxu0
    %v129 = vadd.f32 %v82, %v128
    %130 = vmatmul.f32.gmra.mxu0 %v97
    %v131 = vpop.f32.mrf.mxu0
    %v132 = vadd.f32 %v83, %v131
    %133 = vmatmul.f32.gmra.mxu0 %v100
    %v134 = vpop.f32.mrf.mxu0
    %v135 = vadd.f32 %v84, %v134
    %136 = vmatmul.f32.gmra.mxu0 %v103
    %v137 = vpop.f32.mrf.mxu0
    %v138 = vadd.f32 %v85, %v137
    %139 = vdwg.mxu0
    %v140 = vld [vmem:[%s3] sm:$0x1]
    %v141 = vld [vmem:[%s4] sm:$0x1]
    %vm142 = vcmask 261120
    %v143 = vsel %vm142, %v123, 0.0
    %144 = vadd.xlane.f32.xlu0 %v143
    %v145 = vpop.xlane.xlu0 %144
    %v146 = vsel %vm142, %v126, 0.0
    %147 = vadd.xlane.f32.xlu0 %v146
    %v148 = vpop.xlane.xlu0 %147
    %v149 = vsel %vm142, %v129, 0.0
    %150 = vadd.xlane.f32.xlu0 %v149
    %v151 = vpop.xlane.xlu0 %150
    %v152 = vsel %vm142, %v132, 0.0
    %153 = vadd.xlane.f32.xlu0 %v152
    %v154 = vpop.xlane.xlu0 %153
    %v155 = vsel %vm142, %v135, 0.0
    %156 = vadd.xlane.f32.xlu0 %v155
    %v157 = vpop.xlane.xlu0 %156
    %v158 = vsel %vm142, %v138, 0.0
    %159 = vadd.xlane.f32.xlu0 %v158
    %v160 = vpop.xlane.xlu0 %159
    %v161 = vrcp.pop 32.0
    %v162 = vmul.f32 32.0, %v161
    %v163 = vsub.f32 1.0, %v162
    %v164 = vmul.f32 %v161, %v163
    %v165 = vadd.f32 %v161, %v164
    %vm166 = vweird.f32 %v161
    %v167 = vsel %vm166, %v161, %v165
    %v168 = vmul.f32 %v145, %v167
    %v169 = vmul.f32 %v148, %v167
    %v170 = vmul.f32 %v151, %v167
    %v171 = vmul.f32 %v154, %v167
    %v172 = vmul.f32 %v157, %v167
    %v173 = vmul.f32 %v160, %v167
    %v174 = vsub.f32 %v123, %v168
    %v175 = vsub.f32 %v126, %v169
    %v176 = vsub.f32 %v129, %v170
    %v177 = vsub.f32 %v132, %v171
    %v178 = vsub.f32 %v135, %v172
    %v179 = vsub.f32 %v138, %v173
    %v180 = vmul.f32 %v174, %v174
    %v181 = vmul.f32 %v175, %v175
    %v182 = vmul.f32 %v176, %v176
    %v183 = vmul.f32 %v177, %v177
    %v184 = vmul.f32 %v178, %v178
    %v185 = vmul.f32 %v179, %v179
    %v186 = vsel %vm142, %v180, 0.0
    %187 = vadd.xlane.f32.xlu0 %v186
    %v188 = vpop.xlane.xlu0 %187
    %v189 = vsel %vm142, %v181, 0.0
    %190 = vadd.xlane.f32.xlu0 %v189
    %v191 = vpop.xlane.xlu0 %190
    %v192 = vsel %vm142, %v182, 0.0
    %193 = vadd.xlane.f32.xlu0 %v192
    %v194 = vpop.xlane.xlu0 %193
    %v195 = vsel %vm142, %v183, 0.0
    %196 = vadd.xlane.f32.xlu0 %v195
    %v197 = vpop.xlane.xlu0 %196
    %v198 = vsel %vm142, %v184, 0.0
    %199 = vadd.xlane.f32.xlu0 %v198
    %v200 = vpop.xlane.xlu0 %199
    %v201 = vsel %vm142, %v185, 0.0
    %202 = vadd.xlane.f32.xlu0 %v201
    %v203 = vpop.xlane.xlu0 %202
    %v204 = vmul.f32 %v188, %v167
    %v205 = vmul.f32 %v191, %v167
    %v206 = vmul.f32 %v194, %v167
    %v207 = vmul.f32 %v197, %v167
    %v208 = vmul.f32 %v200, %v167
    %v209 = vmul.f32 %v203, %v167
    %v210 = vadd.f32 %v204, 1e-05
    %v211 = vadd.f32 %v205, 1e-05
    %v212 = vadd.f32 %v206, 1e-05
    %v213 = vadd.f32 %v207, 1e-05
    %v214 = vadd.f32 %v208, 1e-05
    %v215 = vadd.f32 %v209, 1e-05
    %v216 = vrsqrt.pop %v210
    %v217 = vmul.f32 %v216, %v210
    %v218 = vmul.f32 %v217, %v216
    %v219 = vmul.f32 0.5, %v218
    %v220 = vsub.f32 1.5, %v219
    %v221 = vmul.f32 %v216, %v220
    %vm222 = vweird.f32 %v210
    %vm223 = vweird.f32 %v216
    %vm224 = vmor %vm222, %vm223
    %v225 = vsel %vm224, %v216, %v221
    %v226 = vrsqrt.pop %v211
    %v227 = vmul.f32 %v226, %v211
    %v228 = vmul.f32 %v227, %v226
    %v229 = vmul.f32 0.5, %v228
    %v230 = vsub.f32 1.5, %v229
    %v231 = vmul.f32 %v226, %v230
    %vm232 = vweird.f32 %v211
    %vm233 = vweird.f32 %v226
    %vm234 = vmor %vm232, %vm233
    %v235 = vsel %vm234, %v226, %v231
    %v236 = vrsqrt.pop %v212
    %v237 = vmul.f32 %v236, %v212
    %v238 = vmul.f32 %v237, %v236
    %v239 = vmul.f32 0.5, %v238
    %v240 = vsub.f32 1.5, %v239
    %v241 = vmul.f32 %v236, %v240
    %vm242 = vweird.f32 %v212
    %vm243 = vweird.f32 %v236
    %vm244 = vmor %vm242, %vm243
    %v245 = vsel %vm244, %v236, %v241
    %v246 = vrsqrt.pop %v213
    %v247 = vmul.f32 %v246, %v213
    %v248 = vmul.f32 %v247, %v246
    %v249 = vmul.f32 0.5, %v248
    %v250 = vsub.f32 1.5, %v249
    %v251 = vmul.f32 %v246, %v250
    %vm252 = vweird.f32 %v213
    %vm253 = vweird.f32 %v246
    %vm254 = vmor %vm252, %vm253
    %v255 = vsel %vm254, %v246, %v251
    %v256 = vrsqrt.pop %v214
    %v257 = vmul.f32 %v256, %v214
    %v258 = vmul.f32 %v257, %v256
    %v259 = vmul.f32 0.5, %v258
    %v260 = vsub.f32 1.5, %v259
    %v261 = vmul.f32 %v256, %v260
    %vm262 = vweird.f32 %v214
    %vm263 = vweird.f32 %v256
    %vm264 = vmor %vm262, %vm263
    %v265 = vsel %vm264, %v256, %v261
    %v266 = vrsqrt.pop %v215
    %v267 = vmul.f32 %v266, %v215
    %v268 = vmul.f32 %v267, %v266
    %v269 = vmul.f32 0.5, %v268
    %v270 = vsub.f32 1.5, %v269
    %v271 = vmul.f32 %v266, %v270
    %vm272 = vweird.f32 %v215
    %vm273 = vweird.f32 %v266
    %vm274 = vmor %vm272, %vm273
    %v275 = vsel %vm274, %v266, %v271
    %v276 = vmul.f32 %v174, %v225
    %v277 = vmul.f32 %v175, %v235
    %v278 = vmul.f32 %v176, %v245
    %v279 = vmul.f32 %v177, %v255
    %v280 = vmul.f32 %v178, %v265
    %v281 = vmul.f32 %v179, %v275
    %v283 = vperm.slane %v140, 0
    %v285 = vmul.f32 %v276, %v283
    %v286 = vmul.f32 %v277, %v283
    %v287 = vmul.f32 %v278, %v283
    %v288 = vmul.f32 %v279, %v283
    %v289 = vmul.f32 %v280, %v283
    %v290 = vmul.f32 %v281, %v283
    %v292 = vperm.slane %v141, 0
    %v294 = vadd.f32 %v285, %v292
    %v295 = vadd.f32 %v286, %v292
    %v296 = vadd.f32 %v287, %v292
    %v297 = vadd.f32 %v288, %v292
    %v298 = vadd.f32 %v289, %v292
    %v299 = vadd.f32 %v290, %v292
    %v300 = vld [vmem:[%s5] sm:$0xff]
    %v301 = vld [vmem:[%s5 + $0x8] sm:$0xff]
    %v302 = vld [vmem:[%s5 + $0x10] sm:$0xff]
    %v303 = vld [vmem:[%s5 + $0x18] sm:$0xff]
    %v305 = vsel %vm142, %v294, 0
    %v308 = vsel %vm142, %v295, 0
    %v311 = vsel %vm142, %v296, 0
    %v314 = vsel %vm142, %v297, 0
    %v317 = vsel %vm142, %v298, 0
    %v320 = vsel %vm142, %v299, 0
    %322 = vmatpush.msra.mxu0 0.0
    %323 = vmatpush.msra.mxu0 0.0
    %324 = vmatpush.msra.mxu0 0.0
    %325 = vmatpush.msra.mxu0 0.0
    %326 = vmatpush.msra.mxu0 0.0
    %327 = vmatpush.msra.mxu0 0.0
    %328 = vmatpush.msra.mxu0 0.0
    %329 = vmatpush.msra.mxu0 0.0
    %330 = vmatpush.msra.mxu0 0.0
    %331 = vmatpush.msra.mxu0 0.0
    %332 = vmatpush.msra.mxu0 0.0
    %333 = vmatpush.msra.mxu0 0.0
    %334 = vmatpush.msra.mxu0 %v303
    %335 = vmatpush.msra.mxu0 %v302
    %336 = vmatpush.msra.mxu0 %v301
    %337 = vmatpush.msra.mxu0 %v300
    %338 = vmatmul.f32.gmra.mxu0 %v305
    %v339 = vpop.f32.mrf.mxu0
    %v340 = vadd.f32 0.0, %v339
    %341 = vmatmul.f32.gmra.mxu0 %v308
    %v342 = vpop.f32.mrf.mxu0
    %v343 = vadd.f32 0.0, %v342
    %344 = vmatmul.f32.gmra.mxu0 %v311
    %v345 = vpop.f32.mrf.mxu0
    %v346 = vadd.f32 0.0, %v345
    %347 = vmatmul.f32.gmra.mxu0 %v314
    %v348 = vpop.f32.mrf.mxu0
    %v349 = vadd.f32 0.0, %v348
    %350 = vmatmul.f32.gmra.mxu0 %v317
    %v351 = vpop.f32.mrf.mxu0
    %v352 = vadd.f32 0.0, %v351
    %353 = vmatmul.f32.gmra.mxu0 %v320
    %v354 = vpop.f32.mrf.mxu0
    %v355 = vadd.f32 0.0, %v354
    %356 = vdwg.mxu0
    %s357 = scalar_lea.vmem %s5, 32
    %v358 = vld [vmem:[%s357] sm:$0xff]
    %v359 = vld [vmem:[%s357 + $0x8] sm:$0xff]
    %v360 = vld [vmem:[%s357 + $0x10] sm:$0xff]
    %v361 = vld [vmem:[%s357 + $0x18] sm:$0xff]
    %362 = vmatpush.msra.mxu0 0.0
    %363 = vmatpush.msra.mxu0 0.0
    %364 = vmatpush.msra.mxu0 0.0
    %365 = vmatpush.msra.mxu0 0.0
    %366 = vmatpush.msra.mxu0 0.0
    %367 = vmatpush.msra.mxu0 0.0
    %368 = vmatpush.msra.mxu0 0.0
    %369 = vmatpush.msra.mxu0 0.0
    %370 = vmatpush.msra.mxu0 0.0
    %371 = vmatpush.msra.mxu0 0.0
    %372 = vmatpush.msra.mxu0 0.0
    %373 = vmatpush.msra.mxu0 0.0
    %374 = vmatpush.msra.mxu0 %v361
    %375 = vmatpush.msra.mxu0 %v360
    %376 = vmatpush.msra.mxu0 %v359
    %377 = vmatpush.msra.mxu0 %v358
    %378 = vmatmul.f32.gmra.mxu0 %v305
    %v379 = vpop.f32.mrf.mxu0
    %v380 = vadd.f32 0.0, %v379
    %381 = vmatmul.f32.gmra.mxu0 %v308
    %v382 = vpop.f32.mrf.mxu0
    %v383 = vadd.f32 0.0, %v382
    %384 = vmatmul.f32.gmra.mxu0 %v311
    %v385 = vpop.f32.mrf.mxu0
    %v386 = vadd.f32 0.0, %v385
    %387 = vmatmul.f32.gmra.mxu0 %v314
    %v388 = vpop.f32.mrf.mxu0
    %v389 = vadd.f32 0.0, %v388
    %390 = vmatmul.f32.gmra.mxu0 %v317
    %v391 = vpop.f32.mrf.mxu0
    %v392 = vadd.f32 0.0, %v391
    %393 = vmatmul.f32.gmra.mxu0 %v320
    %v394 = vpop.f32.mrf.mxu0
    %v395 = vadd.f32 0.0, %v394
    %396 = vdwg.mxu0
    %v397 = vld [vmem:[%s6] sm:$0xff]
    %v398 = vld [vmem:[%s6 + $0x8] sm:$0xff]
    %v399 = vld [vmem:[%s6 + $0x10] sm:$0xff]
    %v400 = vld [vmem:[%s6 + $0x18] sm:$0xff]
    %401 = vmatpush.msra.mxu0 0.0
    %402 = vmatpush.msra.mxu0 0.0
    %403 = vmatpush.msra.mxu0 0.0
    %404 = vmatpush.msra.mxu0 0.0
    %405 = vmatpush.msra.mxu0 0.0
    %406 = vmatpush.msra.mxu0 0.0
    %407 = vmatpush.msra.mxu0 0.0
    %408 = vmatpush.msra.mxu0 0.0
    %409 = vmatpush.msra.mxu0 0.0
    %410 = vmatpush.msra.mxu0 0.0
    %411 = vmatpush.msra.mxu0 0.0
    %412 = vmatpush.msra.mxu0 0.0
    %413 = vmatpush.msra.mxu0 %v400
    %414 = vmatpush.msra.mxu0 %v399
    %415 = vmatpush.msra.mxu0 %v398
    %416 = vmatpush.msra.mxu0 %v397
    %417 = vmatmul.f32.gmra.mxu0 %v305
    %v418 = vpop.f32.mrf.mxu0
    %v419 = vadd.f32 0.0, %v418
    %420 = vmatmul.f32.gmra.mxu0 %v308
    %v421 = vpop.f32.mrf.mxu0
    %v422 = vadd.f32 0.0, %v421
    %423 = vmatmul.f32.gmra.mxu0 %v311
    %v424 = vpop.f32.mrf.mxu0
    %v425 = vadd.f32 0.0, %v424
    %426 = vmatmul.f32.gmra.mxu0 %v314
    %v427 = vpop.f32.mrf.mxu0
    %v428 = vadd.f32 0.0, %v427
    %429 = vmatmul.f32.gmra.mxu0 %v317
    %v430 = vpop.f32.mrf.mxu0
    %v431 = vadd.f32 0.0, %v430
    %432 = vmatmul.f32.gmra.mxu0 %v320
    %v433 = vpop.f32.mrf.mxu0
    %v434 = vadd.f32 0.0, %v433
    %435 = vdwg.mxu0
    %s436 = scalar_lea.vmem %s6, 32
    %v437 = vld [vmem:[%s436] sm:$0xff]
    %v438 = vld [vmem:[%s436 + $0x8] sm:$0xff]
    %v439 = vld [vmem:[%s436 + $0x10] sm:$0xff]
    %v440 = vld [vmem:[%s436 + $0x18] sm:$0xff]
    %441 = vmatpush.msra.mxu0 0.0
    %442 = vmatpush.msra.mxu0 0.0
    %443 = vmatpush.msra.mxu0 0.0
    %444 = vmatpush.msra.mxu0 0.0
    %445 = vmatpush.msra.mxu0 0.0
    %446 = vmatpush.msra.mxu0 0.0
    %447 = vmatpush.msra.mxu0 0.0
    %448 = vmatpush.msra.mxu0 0.0
    %449 = vmatpush.msra.mxu0 0.0
    %450 = vmatpush.msra.mxu0 0.0
    %451 = vmatpush.msra.mxu0 0.0
    %452 = vmatpush.msra.mxu0 0.0
    %453 = vmatpush.msra.mxu0 %v440
    %454 = vmatpush.msra.mxu0 %v439
    %455 = vmatpush.msra.mxu0 %v438
    %456 = vmatpush.msra.mxu0 %v437
    %457 = vmatmul.f32.gmra.mxu0 %v305
    %v458 = vpop.f32.mrf.mxu0
    %v459 = vadd.f32 0.0, %v458
    %460 = vmatmul.f32.gmra.mxu0 %v308
    %v461 = vpop.f32.mrf.mxu0
    %v462 = vadd.f32 0.0, %v461
    %463 = vmatmul.f32.gmra.mxu0 %v311
    %v464 = vpop.f32.mrf.mxu0
    %v465 = vadd.f32 0.0, %v464
    %466 = vmatmul.f32.gmra.mxu0 %v314
    %v467 = vpop.f32.mrf.mxu0
    %v468 = vadd.f32 0.0, %v467
    %469 = vmatmul.f32.gmra.mxu0 %v317
    %v470 = vpop.f32.mrf.mxu0
    %v471 = vadd.f32 0.0, %v470
    %472 = vmatmul.f32.gmra.mxu0 %v320
    %v473 = vpop.f32.mrf.mxu0
    %v474 = vadd.f32 0.0, %v473
    %475 = vdwg.mxu0
    %v476 = vld [vmem:[%s7] sm:$0xff]
    %v477 = vld [vmem:[%s7 + $0x8] sm:$0xff]
    %v478 = vld [vmem:[%s7 + $0x10] sm:$0xff]
    %v479 = vld [vmem:[%s7 + $0x18] sm:$0xff]
    %480 = vmatpush.msra.mxu0 0.0
    %481 = vmatpush.msra.mxu0 0.0
    %482 = vmatpush.msra.mxu0 0.0
    %483 = vmatpush.msra.mxu0 0.0
    %484 = vmatpush.msra.mxu0 0.0
    %485 = vmatpush.msra.mxu0 0.0
    %486 = vmatpush.msra.mxu0 0.0
    %487 = vmatpush.msra.mxu0 0.0
    %488 = vmatpush.msra.mxu0 0.0
    %489 = vmatpush.msra.mxu0 0.0
    %490 = vmatpush.msra.mxu0 0.0
    %491 = vmatpush.msra.mxu0 0.0
    %492 = vmatpush.msra.mxu0 %v479
    %493 = vmatpush.msra.mxu0 %v478
    %494 = vmatpush.msra.mxu0 %v477
    %495 = vmatpush.msra.mxu0 %v476
    %496 = vmatmul.f32.gmra.mxu0 %v305
    %v497 = vpop.f32.mrf.mxu0
    %v498 = vadd.f32 0.0, %v497
    %499 = vmatmul.f32.gmra.mxu0 %v308
    %v500 = vpop.f32.mrf.mxu0
    %v501 = vadd.f32 0.0, %v500
    %502 = vmatmul.f32.gmra.mxu0 %v311
    %v503 = vpop.f32.mrf.mxu0
    %v504 = vadd.f32 0.0, %v503
    %505 = vmatmul.f32.gmra.mxu0 %v314
    %v506 = vpop.f32.mrf.mxu0
    %v507 = vadd.f32 0.0, %v506
    %508 = vmatmul.f32.gmra.mxu0 %v317
    %v509 = vpop.f32.mrf.mxu0
    %v510 = vadd.f32 0.0, %v509
    %511 = vmatmul.f32.gmra.mxu0 %v320
    %v512 = vpop.f32.mrf.mxu0
    %v513 = vadd.f32 0.0, %v512
    %514 = vdwg.mxu0
    %s515 = scalar_lea.vmem %s7, 32
    %v516 = vld [vmem:[%s515] sm:$0xff]
    %v517 = vld [vmem:[%s515 + $0x8] sm:$0xff]
    %v518 = vld [vmem:[%s515 + $0x10] sm:$0xff]
    %v519 = vld [vmem:[%s515 + $0x18] sm:$0xff]
    %520 = vmatpush.msra.mxu0 0.0
    %521 = vmatpush.msra.mxu0 0.0
    %522 = vmatpush.msra.mxu0 0.0
    %523 = vmatpush.msra.mxu0 0.0
    %524 = vmatpush.msra.mxu0 0.0
    %525 = vmatpush.msra.mxu0 0.0
    %526 = vmatpush.msra.mxu0 0.0
    %527 = vmatpush.msra.mxu0 0.0
    %528 = vmatpush.msra.mxu0 0.0
    %529 = vmatpush.msra.mxu0 0.0
    %530 = vmatpush.msra.mxu0 0.0
    %531 = vmatpush.msra.mxu0 0.0
    %532 = vmatpush.msra.mxu0 %v519
    %533 = vmatpush.msra.mxu0 %v518
    %534 = vmatpush.msra.mxu0 %v517
    %535 = vmatpush.msra.mxu0 %v516
    %536 = vmatmul.f32.gmra.mxu0 %v305
    %v537 = vpop.f32.mrf.mxu0
    %v538 = vadd.f32 0.0, %v537
    %539 = vmatmul.f32.gmra.mxu0 %v308
    %v540 = vpop.f32.mrf.mxu0
    %v541 = vadd.f32 0.0, %v540
    %542 = vmatmul.f32.gmra.mxu0 %v311
    %v543 = vpop.f32.mrf.mxu0
    %v544 = vadd.f32 0.0, %v543
    %545 = vmatmul.f32.gmra.mxu0 %v314
    %v546 = vpop.f32.mrf.mxu0
    %v547 = vadd.f32 0.0, %v546
    %548 = vmatmul.f32.gmra.mxu0 %v317
    %v549 = vpop.f32.mrf.mxu0
    %v550 = vadd.f32 0.0, %v549
    %551 = vmatmul.f32.gmra.mxu0 %v320
    %v552 = vpop.f32.mrf.mxu0
    %v553 = vadd.f32 0.0, %v552
    %554 = vdwg.mxu0
    %vm555 = vcmask 130048
    %v557 = vsel %vm555, %v340, 0
    %v560 = vsel %vm555, %v343, 0
    %v563 = vsel %vm555, %v346, 0
    %v566 = vsel %vm555, %v419, 0
    %v569 = vsel %vm555, %v422, 0
    %v572 = vsel %vm555, %v425, 0
    %574 = vmatpush.xpose.msra.mxu0 0.0
    %575 = vmatpush.xpose.msra.mxu0 0.0
    %576 = vmatpush.xpose.msra.mxu0 0.0
    %577 = vmatpush.xpose.msra.mxu0 0.0
    %578 = vmatpush.xpose.msra.mxu0 0.0
    %579 = vmatpush.xpose.msra.mxu0 0.0
    %580 = vmatpush.xpose.msra.mxu0 0.0
    %581 = vmatpush.xpose.msra.mxu0 0.0
    %582 = vmatpush.xpose.msra.mxu0 0.0
    %583 = vmatpush.xpose.msra.mxu0 0.0
    %584 = vmatpush.xpose.msra.mxu0 0.0
    %585 = vmatpush.xpose.msra.mxu0 0.0
    %586 = vmatpush.xpose.msra.mxu0 0.0
    %587 = vmatpush.xpose.msra.mxu0 %v572
    %588 = vmatpush.xpose.msra.mxu0 %v569
    %589 = vmatpush.xpose.msra.mxu0 %v566
    %590 = vmatmul.f32.gmra.mxu0 %v557
    %v591 = vpop.f32.mrf.mxu0
    %v592 = vadd.f32 0.0, %v591
    %593 = vmatmul.f32.gmra.mxu0 %v560
    %v594 = vpop.f32.mrf.mxu0
    %v595 = vadd.f32 0.0, %v594
    %596 = vmatmul.f32.gmra.mxu0 %v563
    %v597 = vpop.f32.mrf.mxu0
    %v598 = vadd.f32 0.0, %v597
    %599 = vdwg.mxu0
    %v601 = vsel %vm555, %v380, 0
    %v604 = vsel %vm555, %v383, 0
    %v607 = vsel %vm555, %v386, 0
    %v610 = vsel %vm555, %v459, 0
    %v613 = vsel %vm555, %v462, 0
    %v616 = vsel %vm555, %v465, 0
    %618 = vmatpush.xpose.msra.mxu0 0.0
    %619 = vmatpush.xpose.msra.mxu0 0.0
    %620 = vmatpush.xpose.msra.mxu0 0.0
    %621 = vmatpush.xpose.msra.mxu0 0.0
    %622 = vmatpush.xpose.msra.mxu0 0.0
    %623 = vmatpush.xpose.msra.mxu0 0.0
    %624 = vmatpush.xpose.msra.mxu0 0.0
    %625 = vmatpush.xpose.msra.mxu0 0.0
    %626 = vmatpush.xpose.msra.mxu0 0.0
    %627 = vmatpush.xpose.msra.mxu0 0.0
    %628 = vmatpush.xpose.msra.mxu0 0.0
    %629 = vmatpush.xpose.msra.mxu0 0.0
    %630 = vmatpush.xpose.msra.mxu0 0.0
    %631 = vmatpush.xpose.msra.mxu0 %v616
    %632 = vmatpush.xpose.msra.mxu0 %v613
    %633 = vmatpush.xpose.msra.mxu0 %v610
    %634 = vmatmul.f32.gmra.mxu0 %v601
    %v635 = vpop.f32.mrf.mxu0
    %v636 = vadd.f32 0.0, %v635
    %637 = vmatmul.f32.gmra.mxu0 %v604
    %v638 = vpop.f32.mrf.mxu0
    %v639 = vadd.f32 0.0, %v638
    %640 = vmatmul.f32.gmra.mxu0 %v607
    %v641 = vpop.f32.mrf.mxu0
    %v642 = vadd.f32 0.0, %v641
    %643 = vdwg.mxu0
    %v645 = vsel %vm555, %v349, 0
    %v648 = vsel %vm555, %v352, 0
    %v651 = vsel %vm555, %v355, 0
    %v654 = vsel %vm555, %v428, 0
    %v657 = vsel %vm555, %v431, 0
    %v660 = vsel %vm555, %v434, 0
    %662 = vmatpush.xpose.msra.mxu0 0.0
    %663 = vmatpush.xpose.msra.mxu0 0.0
    %664 = vmatpush.xpose.msra.mxu0 0.0
    %665 = vmatpush.xpose.msra.mxu0 0.0
    %666 = vmatpush.xpose.msra.mxu0 0.0
    %667 = vmatpush.xpose.msra.mxu0 0.0
    %668 = vmatpush.xpose.msra.mxu0 0.0
    %669 = vmatpush.xpose.msra.mxu0 0.0
    %670 = vmatpush.xpose.msra.mxu0 0.0
    %671 = vmatpush.xpose.msra.mxu0 0.0
    %672 = vmatpush.xpose.msra.mxu0 0.0
    %673 = vmatpush.xpose.msra.mxu0 0.0
    %674 = vmatpush.xpose.msra.mxu0 0.0
    %675 = vmatpush.xpose.msra.mxu0 %v660
    %676 = vmatpush.xpose.msra.mxu0 %v657
    %677 = vmatpush.xpose.msra.mxu0 %v654
    %678 = vmatmul.f32.gmra.mxu0 %v645
    %v679 = vpop.f32.mrf.mxu0
    %v680 = vadd.f32 0.0, %v679
    %681 = vmatmul.f32.gmra.mxu0 %v648
    %v682 = vpop.f32.mrf.mxu0
    %v683 = vadd.f32 0.0, %v682
    %684 = vmatmul.f32.gmra.mxu0 %v651
    %v685 = vpop.f32.mrf.mxu0
    %v686 = vadd.f32 0.0, %v685
    %687 = vdwg.mxu0
    %v689 = vsel %vm555, %v389, 0
    %v692 = vsel %vm555, %v392, 0
    %v695 = vsel %vm555, %v395, 0
    %v698 = vsel %vm555, %v468, 0
    %v701 = vsel %vm555, %v471, 0
    %v704 = vsel %vm555, %v474, 0
    %706 = vmatpush.xpose.msra.mxu0 0.0
    %707 = vmatpush.xpose.msra.mxu0 0.0
    %708 = vmatpush.xpose.msra.mxu0 0.0
    %709 = vmatpush.xpose.msra.mxu0 0.0
    %710 = vmatpush.xpose.msra.mxu0 0.0
    %711 = vmatpush.xpose.msra.mxu0 0.0
    %712 = vmatpush.xpose.msra.mxu0 0.0
    %713 = vmatpush.xpose.msra.mxu0 0.0
    %714 = vmatpush.xpose.msra.mxu0 0.0
    %715 = vmatpush.xpose.msra.mxu0 0.0
    %716 = vmatpush.xpose.msra.mxu0 0.0
    %717 = vmatpush.xpose.msra.mxu0 0.0
    %718 = vmatpush.xpose.msra.mxu0 0.0
    %719 = vmatpush.xpose.msra.mxu0 %v704
    %720 = vmatpush.xpose.msra.mxu0 %v701
    %721 = vmatpush.xpose.msra.mxu0 %v698
    %722 = vmatmul.f32.gmra.mxu0 %v689
    %v723 = vpop.f32.mrf.mxu0
    %v724 = vadd.f32 0.0, %v723
    %725 = vmatmul.f32.gmra.mxu0 %v692
    %v726 = vpop.f32.mrf.mxu0
    %v727 = vadd.f32 0.0, %v726
    %728 = vmatmul.f32.gmra.mxu0 %v695
    %v729 = vpop.f32.mrf.mxu0
    %v730 = vadd.f32 0.0, %v729
    %731 = vdwg.mxu0
    %v732 = vmul.f32 %v592, 0.25
    %v733 = vmul.f32 %v595, 0.25
    %v734 = vmul.f32 %v598, 0.25
    %v735 = vmul.f32 %v636, 0.25
    %v736 = vmul.f32 %v639, 0.25
    %v737 = vmul.f32 %v642, 0.25
    %v738 = vmul.f32 %v680, 0.25
    %v739 = vmul.f32 %v683, 0.25
    %v740 = vmul.f32 %v686, 0.25
    %v741 = vmul.f32 %v724, 0.25
    %v742 = vmul.f32 %v727, 0.25
    %v743 = vmul.f32 %v730, 0.25
    %v744 = vlaneseq
    %v745 = vand.u32 %v744, 127
    %vm746 = vcmp.lt.s32.totalorder %v745, 17
    %v747 = vsel %vm746, %v732, -1e+30
    %v748 = vsel %vm746, %v733, -1e+30
    %v749 = vsel %vm746, %v734, -1e+30
    %v750 = vsel %vm746, %v735, -1e+30
    %v751 = vsel %vm746, %v736, -1e+30
    %v752 = vsel %vm746, %v737, -1e+30
    %v753 = vsel %vm746, %v738, -1e+30
    %v754 = vsel %vm746, %v739, -1e+30
    %v755 = vsel %vm746, %v740, -1e+30
    %v756 = vsel %vm746, %v741, -1e+30
    %v757 = vsel %vm746, %v742, -1e+30
    %v758 = vsel %vm746, %v743, -1e+30
    %vm759 = vcmask 195584
    %v760 = vsel %vm759, %v747, -inf
    %761 = vmax.xlane.f32.xlu0 %v760
    %v762 = vpop.xlane.xlu0 %761
    %v763 = vsel %vm759, %v748, -inf
    %764 = vmax.xlane.f32.xlu0 %v763
    %v765 = vpop.xlane.xlu0 %764
    %v766 = vsel %vm759, %v749, -inf
    %767 = vmax.xlane.f32.xlu0 %v766
    %v768 = vpop.xlane.xlu0 %767
    %v769 = vsel %vm759, %v750, -inf
    %770 = vmax.xlane.f32.xlu0 %v769
    %v771 = vpop.xlane.xlu0 %770
    %v772 = vsel %vm759, %v751, -inf
    %773 = vmax.xlane.f32.xlu0 %v772
    %v774 = vpop.xlane.xlu0 %773
    %v775 = vsel %vm759, %v752, -inf
    %776 = vmax.xlane.f32.xlu0 %v775
    %v777 = vpop.xlane.xlu0 %776
    %v778 = vsel %vm759, %v753, -inf
    %779 = vmax.xlane.f32.xlu0 %v778
    %v780 = vpop.xlane.xlu0 %779
    %v781 = vsel %vm759, %v754, -inf
    %782 = vmax.xlane.f32.xlu0 %v781
    %v783 = vpop.xlane.xlu0 %782
    %v784 = vsel %vm759, %v755, -inf
    %785 = vmax.xlane.f32.xlu0 %v784
    %v786 = vpop.xlane.xlu0 %785
    %v787 = vsel %vm759, %v756, -inf
    %788 = vmax.xlane.f32.xlu0 %v787
    %v789 = vpop.xlane.xlu0 %788
    %v790 = vsel %vm759, %v757, -inf
    %791 = vmax.xlane.f32.xlu0 %v790
    %v792 = vpop.xlane.xlu0 %791
    %v793 = vsel %vm759, %v758, -inf
    %794 = vmax.xlane.f32.xlu0 %v793
    %v795 = vpop.xlane.xlu0 %794
    %v796 = vsub.f32 %v747, %v762
    %v797 = vsub.f32 %v748, %v765
    %v798 = vsub.f32 %v749, %v768
    %v799 = vsub.f32 %v750, %v771
    %v800 = vsub.f32 %v751, %v774
    %v801 = vsub.f32 %v752, %v777
    %v802 = vsub.f32 %v753, %v780
    %v803 = vsub.f32 %v754, %v783
    %v804 = vsub.f32 %v755, %v786
    %v805 = vsub.f32 %v756, %v789
    %v806 = vsub.f32 %v757, %v792
    %v807 = vsub.f32 %v758, %v795
    %v808 = vmul.f32 %v796, 1.442695
    %v809 = vpow.pop %v808
    %v810 = vmul.f32 %v797, 1.442695
    %v811 = vpow.pop %v810
    %v812 = vmul.f32 %v798, 1.442695
    %v813 = vpow.pop %v812
    %v814 = vmul.f32 %v799, 1.442695
    %v815 = vpow.pop %v814
    %v816 = vmul.f32 %v800, 1.442695
    %v817 = vpow.pop %v816
    %v818 = vmul.f32 %v801, 1.442695
    %v819 = vpow.pop %v818
    %v820 = vmul.f32 %v802, 1.442695
    %v821 = vpow.pop %v820
    %v822 = vmul.f32 %v803, 1.442695
    %v823 = vpow.pop %v822
    %v824 = vmul.f32 %v804, 1.442695
    %v825 = vpow.pop %v824
    %v826 = vmul.f32 %v805, 1.442695
    %v827 = vpow.pop %v826
    %v828 = vmul.f32 %v806, 1.442695
    %v829 = vpow.pop %v828
    %v830 = vmul.f32 %v807, 1.442695
    %v831 = vpow.pop %v830
    %v832 = vsel %vm759, %v809, 0.0
    %833 = vadd.xlane.f32.xlu0 %v832
    %v834 = vpop.xlane.xlu0 %833
    %v835 = vsel %vm759, %v811, 0.0
    %836 = vadd.xlane.f32.xlu0 %v835
    %v837 = vpop.xlane.xlu0 %836
    %v838 = vsel %vm759, %v813, 0.0
    %839 = vadd.xlane.f32.xlu0 %v838
    %v840 = vpop.xlane.xlu0 %839
    %v841 = vsel %vm759, %v815, 0.0
    %842 = vadd.xlane.f32.xlu0 %v841
    %v843 = vpop.xlane.xlu0 %842
    %v844 = vsel %vm759, %v817, 0.0
    %845 = vadd.xlane.f32.xlu0 %v844
    %v846 = vpop.xlane.xlu0 %845
    %v847 = vsel %vm759, %v819, 0.0
    %848 = vadd.xlane.f32.xlu0 %v847
    %v849 = vpop.xlane.xlu0 %848
    %v850 = vsel %vm759, %v821, 0.0
    %851 = vadd.xlane.f32.xlu0 %v850
    %v852 = vpop.xlane.xlu0 %851
    %v853 = vsel %vm759, %v823, 0.0
    %854 = vadd.xlane.f32.xlu0 %v853
    %v855 = vpop.xlane.xlu0 %854
    %v856 = vsel %vm759, %v825, 0.0
    %857 = vadd.xlane.f32.xlu0 %v856
    %v858 = vpop.xlane.xlu0 %857
    %v859 = vsel %vm759, %v827, 0.0
    %860 = vadd.xlane.f32.xlu0 %v859
    %v861 = vpop.xlane.xlu0 %860
    %v862 = vsel %vm759, %v829, 0.0
    %863 = vadd.xlane.f32.xlu0 %v862
    %v864 = vpop.xlane.xlu0 %863
    %v865 = vsel %vm759, %v831, 0.0
    %866 = vadd.xlane.f32.xlu0 %v865
    %v867 = vpop.xlane.xlu0 %866
    %v868 = vrcp.pop %v834
    %v869 = vrcp.pop %v837
    %v870 = vrcp.pop %v840
    %v871 = vrcp.pop %v843
    %v872 = vrcp.pop %v846
    %v873 = vrcp.pop %v849
    %v874 = vrcp.pop %v852
    %v875 = vrcp.pop %v855
    %v876 = vrcp.pop %v858
    %v877 = vrcp.pop %v861
    %v878 = vrcp.pop %v864
    %v879 = vrcp.pop %v867
    %v880 = vmul.f32 %v809, %v868
    %v881 = vmul.f32 %v811, %v869
    %v882 = vmul.f32 %v813, %v870
    %v883 = vmul.f32 %v815, %v871
    %v884 = vmul.f32 %v817, %v872
    %v885 = vmul.f32 %v819, %v873
    %v886 = vmul.f32 %v821, %v874
    %v887 = vmul.f32 %v823, %v875
    %v888 = vmul.f32 %v825, %v876
    %v889 = vmul.f32 %v827, %v877
    %v890 = vmul.f32 %v829, %v878
    %v891 = vmul.f32 %v831, %v879
    %v893 = vsel %vm759, %v880, 0
    %v896 = vsel %vm759, %v881, 0
    %v899 = vsel %vm759, %v882, 0
    %901 = vmatpush.msra.mxu0 0.0
    %902 = vmatpush.msra.mxu0 0.0
    %903 = vmatpush.msra.mxu0 0.0
    %904 = vmatpush.msra.mxu0 0.0
    %905 = vmatpush.msra.mxu0 0.0
    %906 = vmatpush.msra.mxu0 0.0
    %907 = vmatpush.msra.mxu0 0.0
    %908 = vmatpush.msra.mxu0 0.0
    %909 = vmatpush.msra.mxu0 0.0
    %910 = vmatpush.msra.mxu0 0.0
    %911 = vmatpush.msra.mxu0 0.0
    %912 = vmatpush.msra.mxu0 0.0
    %913 = vmatpush.msra.mxu0 0.0
    %914 = vmatpush.msra.mxu0 %v504
    %915 = vmatpush.msra.mxu0 %v501
    %916 = vmatpush.msra.mxu0 %v498
    %917 = vmatmul.f32.gmra.mxu0 %v893
    %v918 = vpop.f32.mrf.mxu0
    %v919 = vadd.f32 0.0, %v918
    %920 = vmatmul.f32.gmra.mxu0 %v896
    %v921 = vpop.f32.mrf.mxu0
    %v922 = vadd.f32 0.0, %v921
    %923 = vmatmul.f32.gmra.mxu0 %v899
    %v924 = vpop.f32.mrf.mxu0
    %v925 = vadd.f32 0.0, %v924
    %926 = vdwg.mxu0
    %v927 = vld [vmem:[%s8] sm:$0xff]
    %v928 = vld [vmem:[%s8 + $0x8] sm:$0xff]
    %v930 = vsel %vm759, %v883, 0
    %v933 = vsel %vm759, %v884, 0
    %v936 = vsel %vm759, %v885, 0
    %938 = vmatpush.msra.mxu0 0.0
    %939 = vmatpush.msra.mxu0 0.0
    %940 = vmatpush.msra.mxu0 0.0
    %941 = vmatpush.msra.mxu0 0.0
    %942 = vmatpush.msra.mxu0 0.0
    %943 = vmatpush.msra.mxu0 0.0
    %944 = vmatpush.msra.mxu0 0.0
    %945 = vmatpush.msra.mxu0 0.0
    %946 = vmatpush.msra.mxu0 0.0
    %947 = vmatpush.msra.mxu0 0.0
    %948 = vmatpush.msra.mxu0 0.0
    %949 = vmatpush.msra.mxu0 0.0
    %950 = vmatpush.msra.mxu0 0.0
    %951 = vmatpush.msra.mxu0 %v544
    %952 = vmatpush.msra.mxu0 %v541
    %953 = vmatpush.msra.mxu0 %v538
    %954 = vmatmul.f32.gmra.mxu0 %v930
    %v955 = vpop.f32.mrf.mxu0
    %v956 = vadd.f32 0.0, %v955
    %957 = vmatmul.f32.gmra.mxu0 %v933
    %v958 = vpop.f32.mrf.mxu0
    %v959 = vadd.f32 0.0, %v958
    %960 = vmatmul.f32.gmra.mxu0 %v936
    %v961 = vpop.f32.mrf.mxu0
    %v962 = vadd.f32 0.0, %v961
    %963 = vdwg.mxu0
    %s964 = scalar_lea.vmem %s8, 16
    %v965 = vld [vmem:[%s964] sm:$0xff]
    %v966 = vld [vmem:[%s964 + $0x8] sm:$0xff]
    %v968 = vsel %vm555, %v956, 0
    %v971 = vsel %vm555, %v959, 0
    %v974 = vsel %vm555, %v962, 0
    %976 = vmatpush.msra.mxu0 0.0
    %977 = vmatpush.msra.mxu0 0.0
    %978 = vmatpush.msra.mxu0 0.0
    %979 = vmatpush.msra.mxu0 0.0
    %980 = vmatpush.msra.mxu0 0.0
    %981 = vmatpush.msra.mxu0 0.0
    %982 = vmatpush.msra.mxu0 0.0
    %983 = vmatpush.msra.mxu0 0.0
    %984 = vmatpush.msra.mxu0 0.0
    %985 = vmatpush.msra.mxu0 0.0
    %986 = vmatpush.msra.mxu0 0.0
    %987 = vmatpush.msra.mxu0 0.0
    %988 = vmatpush.msra.mxu0 0.0
    %989 = vmatpush.msra.mxu0 0.0
    %990 = vmatpush.msra.mxu0 %v966
    %991 = vmatpush.msra.mxu0 %v965
    %992 = vmatmul.f32.gmra.mxu0 %v968
    %v993 = vpop.f32.mrf.mxu0
    %v994 = vadd.f32 0.0, %v993
    %995 = vmatmul.f32.gmra.mxu0 %v971
    %v996 = vpop.f32.mrf.mxu0
    %v997 = vadd.f32 0.0, %v996
    %998 = vmatmul.f32.gmra.mxu0 %v974
    %v999 = vpop.f32.mrf.mxu0
    %v1000 = vadd.f32 0.0, %v999
    %1001 = vdwg.mxu0
    %v1003 = vsel %vm555, %v919, 0
    %v1006 = vsel %vm555, %v922, 0
    %v1009 = vsel %vm555, %v925, 0
    %1011 = vmatpush.msra.mxu0 0.0
    %1012 = vmatpush.msra.mxu0 0.0
    %1013 = vmatpush.msra.mxu0 0.0
    %1014 = vmatpush.msra.mxu0 0.0
    %1015 = vmatpush.msra.mxu0 0.0
    %1016 = vmatpush.msra.mxu0 0.0
    %1017 = vmatpush.msra.mxu0 0.0
    %1018 = vmatpush.msra.mxu0 0.0
    %1019 = vmatpush.msra.mxu0 0.0
    %1020 = vmatpush.msra.mxu0 0.0
    %1021 = vmatpush.msra.mxu0 0.0
    %1022 = vmatpush.msra.mxu0 0.0
    %1023 = vmatpush.msra.mxu0 0.0
    %1024 = vmatpush.msra.mxu0 0.0
    %1025 = vmatpush.msra.mxu0 %v928
    %1026 = vmatpush.msra.mxu0 %v927
    %1027 = vmatmul.f32.gmra.mxu0 %v1003
    %v1028 = vpop.f32.mrf.mxu0
    %v1029 = vadd.f32 %v994, %v1028
    %1030 = vmatmul.f32.gmra.mxu0 %v1006
    %v1031 = vpop.f32.mrf.mxu0
    %v1032 = vadd.f32 %v997, %v1031
    %1033 = vmatmul.f32.gmra.mxu0 %v1009
    %v1034 = vpop.f32.mrf.mxu0
    %v1035 = vadd.f32 %v1000, %v1034
    %1036 = vdwg.mxu0
    %v1038 = vsel %vm759, %v886, 0
    %v1041 = vsel %vm759, %v887, 0
    %v1044 = vsel %vm759, %v888, 0
    %1046 = vmatpush.msra.mxu0 0.0
    %1047 = vmatpush.msra.mxu0 0.0
    %1048 = vmatpush.msra.mxu0 0.0
    %1049 = vmatpush.msra.mxu0 0.0
    %1050 = vmatpush.msra.mxu0 0.0
    %1051 = vmatpush.msra.mxu0 0.0
    %1052 = vmatpush.msra.mxu0 0.0
    %1053 = vmatpush.msra.mxu0 0.0
    %1054 = vmatpush.msra.mxu0 0.0
    %1055 = vmatpush.msra.mxu0 0.0
    %1056 = vmatpush.msra.mxu0 0.0
    %1057 = vmatpush.msra.mxu0 0.0
    %1058 = vmatpush.msra.mxu0 0.0
    %1059 = vmatpush.msra.mxu0 %v513
    %1060 = vmatpush.msra.mxu0 %v510
    %1061 = vmatpush.msra.mxu0 %v507
    %1062 = vmatmul.f32.gmra.mxu0 %v1038
    %v1063 = vpop.f32.mrf.mxu0
    %v1064 = vadd.f32 0.0, %v1063
    %1065 = vmatmul.f32.gmra.mxu0 %v1041
    %v1066 = vpop.f32.mrf.mxu0
    %v1067 = vadd.f32 0.0, %v1066
    %1068 = vmatmul.f32.gmra.mxu0 %v1044
    %v1069 = vpop.f32.mrf.mxu0
    %v1070 = vadd.f32 0.0, %v1069
    %1071 = vdwg.mxu0
    %v1073 = vsel %vm759, %v889, 0
    %v1076 = vsel %vm759, %v890, 0
    %v1079 = vsel %vm759, %v891, 0
    %1081 = vmatpush.msra.mxu0 0.0
    %1082 = vmatpush.msra.mxu0 0.0
    %1083 = vmatpush.msra.mxu0 0.0
    %1084 = vmatpush.msra.mxu0 0.0
    %1085 = vmatpush.msra.mxu0 0.0
    %1086 = vmatpush.msra.mxu0 0.0
    %1087 = vmatpush.msra.mxu0 0.0
    %1088 = vmatpush.msra.mxu0 0.0
    %1089 = vmatpush.msra.mxu0 0.0
    %1090 = vmatpush.msra.mxu0 0.0
    %1091 = vmatpush.msra.mxu0 0.0
    %1092 = vmatpush.msra.mxu0 0.0
    %1093 = vmatpush.msra.mxu0 0.0
    %1094 = vmatpush.msra.mxu0 %v553
    %1095 = vmatpush.msra.mxu0 %v550
    %1096 = vmatpush.msra.mxu0 %v547
    %1097 = vmatmul.f32.gmra.mxu0 %v1073
    %v1098 = vpop.f32.mrf.mxu0
    %v1099 = vadd.f32 0.0, %v1098
    %1100 = vmatmul.f32.gmra.mxu0 %v1076
    %v1101 = vpop.f32.mrf.mxu0
    %v1102 = vadd.f32 0.0, %v1101
    %1103 = vmatmul.f32.gmra.mxu0 %v1079
    %v1104 = vpop.f32.mrf.mxu0
    %v1105 = vadd.f32 0.0, %v1104
    %1106 = vdwg.mxu0
    %v1108 = vsel %vm555, %v1099, 0
    %v1111 = vsel %vm555, %v1102, 0
    %v1114 = vsel %vm555, %v1105, 0
    %1116 = vmatpush.msra.mxu0 0.0
    %1117 = vmatpush.msra.mxu0 0.0
    %1118 = vmatpush.msra.mxu0 0.0
    %1119 = vmatpush.msra.mxu0 0.0
    %1120 = vmatpush.msra.mxu0 0.0
    %1121 = vmatpush.msra.mxu0 0.0
    %1122 = vmatpush.msra.mxu0 0.0
    %1123 = vmatpush.msra.mxu0 0.0
    %1124 = vmatpush.msra.mxu0 0.0
    %1125 = vmatpush.msra.mxu0 0.0
    %1126 = vmatpush.msra.mxu0 0.0
    %1127 = vmatpush.msra.mxu0 0.0
    %1128 = vmatpush.msra.mxu0 0.0
    %1129 = vmatpush.msra.mxu0 0.0
    %1130 = vmatpush.msra.mxu0 %v966
    %1131 = vmatpush.msra.mxu0 %v965
    %1132 = vmatmul.f32.gmra.mxu0 %v1108
    %v1133 = vpop.f32.mrf.mxu0
    %v1134 = vadd.f32 0.0, %v1133
    %1135 = vmatmul.f32.gmra.mxu0 %v1111
    %v1136 = vpop.f32.mrf.mxu0
    %v1137 = vadd.f32 0.0, %v1136
    %1138 = vmatmul.f32.gmra.mxu0 %v1114
    %v1139 = vpop.f32.mrf.mxu0
    %v1140 = vadd.f32 0.0, %v1139
    %1141 = vdwg.mxu0
    %v1143 = vsel %vm555, %v1064, 0
    %v1146 = vsel %vm555, %v1067, 0
    %v1149 = vsel %vm555, %v1070, 0
    %1151 = vmatpush.msra.mxu0 0.0
    %1152 = vmatpush.msra.mxu0 0.0
    %1153 = vmatpush.msra.mxu0 0.0
    %1154 = vmatpush.msra.mxu0 0.0
    %1155 = vmatpush.msra.mxu0 0.0
    %1156 = vmatpush.msra.mxu0 0.0
    %1157 = vmatpush.msra.mxu0 0.0
    %1158 = vmatpush.msra.mxu0 0.0
    %1159 = vmatpush.msra.mxu0 0.0
    %1160 = vmatpush.msra.mxu0 0.0
    %1161 = vmatpush.msra.mxu0 0.0
    %1162 = vmatpush.msra.mxu0 0.0
    %1163 = vmatpush.msra.mxu0 0.0
    %1164 = vmatpush.msra.mxu0 0.0
    %1165 = vmatpush.msra.mxu0 %v928
    %1166 = vmatpush.msra.mxu0 %v927
    %1167 = vmatmul.f32.gmra.mxu0 %v1143
    %v1168 = vpop.f32.mrf.mxu0
    %v1169 = vadd.f32 %v1134, %v1168
    %1170 = vmatmul.f32.gmra.mxu0 %v1146
    %v1171 = vpop.f32.mrf.mxu0
    %v1172 = vadd.f32 %v1137, %v1171
    %1173 = vmatmul.f32.gmra.mxu0 %v1149
    %v1174 = vpop.f32.mrf.mxu0
    %v1175 = vadd.f32 %v1140, %v1174
    %1176 = vdwg.mxu0
    %v1177 = vadd.f32 %v123, %v1029
    %v1178 = vadd.f32 %v126, %v1032
    %v1179 = vadd.f32 %v129, %v1035
    %v1180 = vadd.f32 %v132, %v1169
    %v1181 = vadd.f32 %v135, %v1172
    %v1182 = vadd.f32 %v138, %v1175
    %v1183 = vld [vmem:[%s9] sm:$0x1]
    %v1185 = vperm.slane %v1183, 0
    %v1187 = vadd.f32 %v1177, %v1185
    %v1188 = vadd.f32 %v1178, %v1185
    %v1189 = vadd.f32 %v1179, %v1185
    %v1190 = vadd.f32 %v1180, %v1185
    %v1191 = vadd.f32 %v1181, %v1185
    %v1192 = vadd.f32 %v1182, %v1185
    %v1193 = vld [vmem:[%s10] sm:$0x1]
    %v1194 = vld [vmem:[%s11] sm:$0x1]
    %v1195 = vsel %vm142, %v1187, 0.0
    %1196 = vadd.xlane.f32.xlu0 %v1195
    %v1197 = vpop.xlane.xlu0 %1196
    %v1198 = vsel %vm142, %v1188, 0.0
    %1199 = vadd.xlane.f32.xlu0 %v1198
    %v1200 = vpop.xlane.xlu0 %1199
    %v1201 = vsel %vm142, %v1189, 0.0
    %1202 = vadd.xlane.f32.xlu0 %v1201
    %v1203 = vpop.xlane.xlu0 %1202
    %v1204 = vsel %vm142, %v1190, 0.0
    %1205 = vadd.xlane.f32.xlu0 %v1204
    %v1206 = vpop.xlane.xlu0 %1205
    %v1207 = vsel %vm142, %v1191, 0.0
    %1208 = vadd.xlane.f32.xlu0 %v1207
    %v1209 = vpop.xlane.xlu0 %1208
    %v1210 = vsel %vm142, %v1192, 0.0
    %1211 = vadd.xlane.f32.xlu0 %v1210
    %v1212 = vpop.xlane.xlu0 %1211
    %v1213 = vmul.f32 %v1197, %v167
    %v1214 = vmul.f32 %v1200, %v167
    %v1215 = vmul.f32 %v1203, %v167
    %v1216 = vmul.f32 %v1206, %v167
    %v1217 = vmul.f32 %v1209, %v167
    %v1218 = vmul.f32 %v1212, %v167
    %v1219 = vsub.f32 %v1187, %v1213
    %v1220 = vsub.f32 %v1188, %v1214
    %v1221 = vsub.f32 %v1189, %v1215
    %v1222 = vsub.f32 %v1190, %v1216
    %v1223 = vsub.f32 %v1191, %v1217
    %v1224 = vsub.f32 %v1192, %v1218
    %v1225 = vmul.f32 %v1219, %v1219
    %v1226 = vmul.f32 %v1220, %v1220
    %v1227 = vmul.f32 %v1221, %v1221
    %v1228 = vmul.f32 %v1222, %v1222
    %v1229 = vmul.f32 %v1223, %v1223
    %v1230 = vmul.f32 %v1224, %v1224
    %v1231 = vsel %vm142, %v1225, 0.0
    %1232 = vadd.xlane.f32.xlu0 %v1231
    %v1233 = vpop.xlane.xlu0 %1232
    %v1234 = vsel %vm142, %v1226, 0.0
    %1235 = vadd.xlane.f32.xlu0 %v1234
    %v1236 = vpop.xlane.xlu0 %1235
    %v1237 = vsel %vm142, %v1227, 0.0
    %1238 = vadd.xlane.f32.xlu0 %v1237
    %v1239 = vpop.xlane.xlu0 %1238
    %v1240 = vsel %vm142, %v1228, 0.0
    %1241 = vadd.xlane.f32.xlu0 %v1240
    %v1242 = vpop.xlane.xlu0 %1241
    %v1243 = vsel %vm142, %v1229, 0.0
    %1244 = vadd.xlane.f32.xlu0 %v1243
    %v1245 = vpop.xlane.xlu0 %1244
    %v1246 = vsel %vm142, %v1230, 0.0
    %1247 = vadd.xlane.f32.xlu0 %v1246
    %v1248 = vpop.xlane.xlu0 %1247
    %v1249 = vmul.f32 %v1233, %v167
    %v1250 = vmul.f32 %v1236, %v167
    %v1251 = vmul.f32 %v1239, %v167
    %v1252 = vmul.f32 %v1242, %v167
    %v1253 = vmul.f32 %v1245, %v167
    %v1254 = vmul.f32 %v1248, %v167
    %v1255 = vadd.f32 %v1249, 1e-05
    %v1256 = vadd.f32 %v1250, 1e-05
    %v1257 = vadd.f32 %v1251, 1e-05
    %v1258 = vadd.f32 %v1252, 1e-05
    %v1259 = vadd.f32 %v1253, 1e-05
    %v1260 = vadd.f32 %v1254, 1e-05
    %v1261 = vrsqrt.pop %v1255
    %v1262 = vmul.f32 %v1261, %v1255
    %v1263 = vmul.f32 %v1262, %v1261
    %v1264 = vmul.f32 0.5, %v1263
    %v1265 = vsub.f32 1.5, %v1264
    %v1266 = vmul.f32 %v1261, %v1265
    %vm1267 = vweird.f32 %v1255
    %vm1268 = vweird.f32 %v1261
    %vm1269 = vmor %vm1267, %vm1268
    %v1270 = vsel %vm1269, %v1261, %v1266
    %v1271 = vrsqrt.pop %v1256
    %v1272 = vmul.f32 %v1271, %v1256
    %v1273 = vmul.f32 %v1272, %v1271
    %v1274 = vmul.f32 0.5, %v1273
    %v1275 = vsub.f32 1.5, %v1274
    %v1276 = vmul.f32 %v1271, %v1275
    %vm1277 = vweird.f32 %v1256
    %vm1278 = vweird.f32 %v1271
    %vm1279 = vmor %vm1277, %vm1278
    %v1280 = vsel %vm1279, %v1271, %v1276
    %v1281 = vrsqrt.pop %v1257
    %v1282 = vmul.f32 %v1281, %v1257
    %v1283 = vmul.f32 %v1282, %v1281
    %v1284 = vmul.f32 0.5, %v1283
    %v1285 = vsub.f32 1.5, %v1284
    %v1286 = vmul.f32 %v1281, %v1285
    %vm1287 = vweird.f32 %v1257
    %vm1288 = vweird.f32 %v1281
    %vm1289 = vmor %vm1287, %vm1288
    %v1290 = vsel %vm1289, %v1281, %v1286
    %v1291 = vrsqrt.pop %v1258
    %v1292 = vmul.f32 %v1291, %v1258
    %v1293 = vmul.f32 %v1292, %v1291
    %v1294 = vmul.f32 0.5, %v1293
    %v1295 = vsub.f32 1.5, %v1294
    %v1296 = vmul.f32 %v1291, %v1295
    %vm1297 = vweird.f32 %v1258
    %vm1298 = vweird.f32 %v1291
    %vm1299 = vmor %vm1297, %vm1298
    %v1300 = vsel %vm1299, %v1291, %v1296
    %v1301 = vrsqrt.pop %v1259
    %v1302 = vmul.f32 %v1301, %v1259
    %v1303 = vmul.f32 %v1302, %v1301
    %v1304 = vmul.f32 0.5, %v1303
    %v1305 = vsub.f32 1.5, %v1304
    %v1306 = vmul.f32 %v1301, %v1305
    %vm1307 = vweird.f32 %v1259
    %vm1308 = vweird.f32 %v1301
    %vm1309 = vmor %vm1307, %vm1308
    %v1310 = vsel %vm1309, %v1301, %v1306
    %v1311 = vrsqrt.pop %v1260
    %v1312 = vmul.f32 %v1311, %v1260
    %v1313 = vmul.f32 %v1312, %v1311
    %v1314 = vmul.f32 0.5, %v1313
    %v1315 = vsub.f32 1.5, %v1314
    %v1316 = vmul.f32 %v1311, %v1315
    %vm1317 = vweird.f32 %v1260
    %vm1318 = vweird.f32 %v1311
    %vm1319 = vmor %vm1317, %vm1318
    %v1320 = vsel %vm1319, %v1311, %v1316
    %v1321 = vmul.f32 %v1219, %v1270
    %v1322 = vmul.f32 %v1220, %v1280
    %v1323 = vmul.f32 %v1221, %v1290
    %v1324 = vmul.f32 %v1222, %v1300
    %v1325 = vmul.f32 %v1223, %v1310
    %v1326 = vmul.f32 %v1224, %v1320
    %v1328 = vperm.slane %v1193, 0
    %v1330 = vmul.f32 %v1321, %v1328
    %v1331 = vmul.f32 %v1322, %v1328
    %v1332 = vmul.f32 %v1323, %v1328
    %v1333 = vmul.f32 %v1324, %v1328
    %v1334 = vmul.f32 %v1325, %v1328
    %v1335 = vmul.f32 %v1326, %v1328
    %v1337 = vperm.slane %v1194, 0
    %v1339 = vadd.f32 %v1330, %v1337
    %v1340 = vadd.f32 %v1331, %v1337
    %v1341 = vadd.f32 %v1332, %v1337
    %v1342 = vadd.f32 %v1333, %v1337
    %v1343 = vadd.f32 %v1334, %v1337
    %v1344 = vadd.f32 %v1335, %v1337
    %v1345 = vld [vmem:[%s12] sm:$0xff]
    %v1346 = vld [vmem:[%s12 + $0x8] sm:$0xff]
    %v1347 = vld [vmem:[%s12 + $0x10] sm:$0xff]
    %v1348 = vld [vmem:[%s12 + $0x18] sm:$0xff]
    %v1349 = vld [vmem:[%s13] sm:$0x1]
    %v1351 = vperm.slane %v1349, 0
    %v1354 = vsel %vm142, %v1339, 0
    %v1357 = vsel %vm142, %v1340, 0
    %v1360 = vsel %vm142, %v1341, 0
    %v1363 = vsel %vm142, %v1342, 0
    %v1366 = vsel %vm142, %v1343, 0
    %v1369 = vsel %vm142, %v1344, 0
    %1371 = vmatpush.msra.mxu0 0.0
    %1372 = vmatpush.msra.mxu0 0.0
    %1373 = vmatpush.msra.mxu0 0.0
    %1374 = vmatpush.msra.mxu0 0.0
    %1375 = vmatpush.msra.mxu0 0.0
    %1376 = vmatpush.msra.mxu0 0.0
    %1377 = vmatpush.msra.mxu0 0.0
    %1378 = vmatpush.msra.mxu0 0.0
    %1379 = vmatpush.msra.mxu0 0.0
    %1380 = vmatpush.msra.mxu0 0.0
    %1381 = vmatpush.msra.mxu0 0.0
    %1382 = vmatpush.msra.mxu0 0.0
    %1383 = vmatpush.msra.mxu0 %v1348
    %1384 = vmatpush.msra.mxu0 %v1347
    %1385 = vmatpush.msra.mxu0 %v1346
    %1386 = vmatpush.msra.mxu0 %v1345
    %1387 = vmatmul.f32.gmra.mxu0 %v1354
    %v1388 = vpop.f32.mrf.mxu0
    %v1389 = vadd.f32 %v1351, %v1388
    %1390 = vmatmul.f32.gmra.mxu0 %v1357
    %v1391 = vpop.f32.mrf.mxu0
    %v1392 = vadd.f32 %v1351, %v1391
    %1393 = vmatmul.f32.gmra.mxu0 %v1360
    %v1394 = vpop.f32.mrf.mxu0
    %v1395 = vadd.f32 %v1351, %v1394
    %1396 = vmatmul.f32.gmra.mxu0 %v1363
    %v1397 = vpop.f32.mrf.mxu0
    %v1398 = vadd.f32 %v1351, %v1397
    %1399 = vmatmul.f32.gmra.mxu0 %v1366
    %v1400 = vpop.f32.mrf.mxu0
    %v1401 = vadd.f32 %v1351, %v1400
    %1402 = vmatmul.f32.gmra.mxu0 %v1369
    %v1403 = vpop.f32.mrf.mxu0
    %v1404 = vadd.f32 %v1351, %v1403
    %1405 = vdwg.mxu0
    %v1406 = vmul.f32 %v1389, 0.5
    %v1407 = vmul.f32 %v1392, 0.5
    %v1408 = vmul.f32 %v1395, 0.5
    %v1409 = vmul.f32 %v1398, 0.5
    %v1410 = vmul.f32 %v1401, 0.5
    %v1411 = vmul.f32 %v1404, 0.5
    %v1412 = vmul.f32 %v1389, 0.70710677
    %v1413 = vmul.f32 %v1392, 0.70710677
    %v1414 = vmul.f32 %v1395, 0.70710677
    %v1415 = vmul.f32 %v1398, 0.70710677
    %v1416 = vmul.f32 %v1401, 0.70710677
    %v1417 = vmul.f32 %v1404, 0.70710677
    %v1418 = vmax.f32 %v1412, -3.832507
    %v1419 = vmax.f32 %v1413, -3.832507
    %v1420 = vmax.f32 %v1414, -3.832507
    %v1421 = vmax.f32 %v1415, -3.832507
    %v1422 = vmax.f32 %v1416, -3.832507
    %v1423 = vmax.f32 %v1417, -3.832507
    %v1424 = vmin.f32 %v1418, 3.832507
    %v1425 = vmin.f32 %v1419, 3.832507
    %v1426 = vmin.f32 %v1420, 3.832507
    %v1427 = vmin.f32 %v1421, 3.832507
    %v1428 = vmin.f32 %v1422, 3.832507
    %v1429 = vmin.f32 %v1423, 3.832507
    %v1430 = vmul.f32 %v1424, %v1424
    %v1431 = vmul.f32 %v1425, %v1425
    %v1432 = vmul.f32 %v1426, %v1426
    %v1433 = vmul.f32 %v1427, %v1427
    %v1434 = vmul.f32 %v1428, %v1428
    %v1435 = vmul.f32 %v1429, %v1429
    %v1436 = vmul.f32 %v1430, -2.7261424e-10
    %v1437 = vmul.f32 %v1431, -2.7261424e-10
    %v1438 = vmul.f32 %v1432, -2.7261424e-10
    %v1439 = vmul.f32 %v1433, -2.7261424e-10
    %v1440 = vmul.f32 %v1434, -2.7261424e-10
    %v1441 = vmul.f32 %v1435, -2.7261424e-10
    %v1442 = vadd.f32 %v1436, 2.7706815e-08
    %v1443 = vadd.f32 %v1437, 2.7706815e-08
    %v1444 = vadd.f32 %v1438, 2.7706815e-08
    %v1445 = vadd.f32 %v1439, 2.7706815e-08
    %v1446 = vadd.f32 %v1440, 2.7706815e-08
    %v1447 = vadd.f32 %v1441, 2.7706815e-08
    %v1448 = vmul.f32 %v1442, %v1430
    %v1449 = vmul.f32 %v1443, %v1431
    %v1450 = vmul.f32 %v1444, %v1432
    %v1451 = vmul.f32 %v1445, %v1433
    %v1452 = vmul.f32 %v1446, %v1434
    %v1453 = vmul.f32 %v1447, %v1435
    %v1454 = vadd.f32 %v1448, -2.101024e-06
    %v1455 = vadd.f32 %v1449, -2.101024e-06
    %v1456 = vadd.f32 %v1450, -2.101024e-06
    %v1457 = vadd.f32 %v1451, -2.101024e-06
    %v1458 = vadd.f32 %v1452, -2.101024e-06
    %v1459 = vadd.f32 %v1453, -2.101024e-06
    %v1460 = vmul.f32 %v1454, %v1430
    %v1461 = vmul.f32 %v1455, %v1431
    %v1462 = vmul.f32 %v1456, %v1432
    %v1463 = vmul.f32 %v1457, %v1433
    %v1464 = vmul.f32 %v1458, %v1434
    %v1465 = vmul.f32 %v1459, %v1435
    %v1466 = vadd.f32 %v1460, -5.6925062e-05
    %v1467 = vadd.f32 %v1461, -5.6925062e-05
    %v1468 = vadd.f32 %v1462, -5.6925062e-05
    %v1469 = vadd.f32 %v1463, -5.6925062e-05
    %v1470 = vadd.f32 %v1464, -5.6925062e-05
    %v1471 = vadd.f32 %v1465, -5.6925062e-05
    %v1472 = vmul.f32 %v1466, %v1430
    %v1473 = vmul.f32 %v1467, %v1431
    %v1474 = vmul.f32 %v1468, %v1432
    %v1475 = vmul.f32 %v1469, %v1433
    %v1476 = vmul.f32 %v1470, %v1434
    %v1477 = vmul.f32 %v1471, %v1435
    %v1478 = vadd.f32 %v1472, -0.00073499064
    %v1479 = vadd.f32 %v1473, -0.00073499064
    %v1480 = vadd.f32 %v1474, -0.00073499064
    %v1481 = vadd.f32 %v1475, -0.00073499064
    %v1482 = vadd.f32 %v1476, -0.00073499064
    %v1483 = vadd.f32 %v1477, -0.00073499064
    %v1484 = vmul.f32 %v1478, %v1430
    %v1485 = vmul.f32 %v1479, %v1431
    %v1486 = vmul.f32 %v1480, %v1432
    %v1487 = vmul.f32 %v1481, %v1433
    %v1488 = vmul.f32 %v1482, %v1434
    %v1489 = vmul.f32 %v1483, %v1435
    %v1490 = vadd.f32 %v1484, -0.0029546
    %v1491 = vadd.f32 %v1485, -0.0029546
    %v1492 = vadd.f32 %v1486, -0.0029546
    %v1493 = vadd.f32 %v1487, -0.0029546
    %v1494 = vadd.f32 %v1488, -0.0029546
    %v1495 = vadd.f32 %v1489, -0.0029546
    %v1496 = vmul.f32 %v1490, %v1430
    %v1497 = vmul.f32 %v1491, %v1431
    %v1498 = vmul.f32 %v1492, %v1432
    %v1499 = vmul.f32 %v1493, %v1433
    %v1500 = vmul.f32 %v1494, %v1434
    %v1501 = vmul.f32 %v1495, %v1435
    %v1502 = vadd.f32 %v1496, -0.016096033
    %v1503 = vadd.f32 %v1497, -0.016096033
    %v1504 = vadd.f32 %v1498, -0.016096033
    %v1505 = vadd.f32 %v1499, -0.016096033
    %v1506 = vadd.f32 %v1500, -0.016096033
    %v1507 = vadd.f32 %v1501, -0.016096033
    %v1508 = vmul.f32 %v1430, -1.45660715e-05
    %v1509 = vmul.f32 %v1431, -1.45660715e-05
    %v1510 = vmul.f32 %v1432, -1.45660715e-05
    %v1511 = vmul.f32 %v1433, -1.45660715e-05
    %v1512 = vmul.f32 %v1434, -1.45660715e-05
    %v1513 = vmul.f32 %v1435, -1.45660715e-05
    %v1514 = vadd.f32 %v1508, -0.00021337405
    %v1515 = vadd.f32 %v1509, -0.00021337405
    %v1516 = vadd.f32 %v1510, -0.00021337405
    %v1517 = vadd.f32 %v1511, -0.00021337405
    %v1518 = vadd.f32 %v1512, -0.00021337405
    %v1519 = vadd.f32 %v1513, -0.00021337405
    %v1520 = vmul.f32 %v1514, %v1430
    %v1521 = vmul.f32 %v1515, %v1431
    %v1522 = vmul.f32 %v1516, %v1432
    %v1523 = vmul.f32 %v1517, %v1433
    %v1524 = vmul.f32 %v1518, %v1434
    %v1525 = vmul.f32 %v1519, %v1435
    %v1526 = vadd.f32 %v1520, -0.001682827
    %v1527 = vadd.f32 %v1521, -0.001682827
    %v1528 = vadd.f32 %v1522, -0.001682827
    %v1529 = vadd.f32 %v1523, -0.001682827
    %v1530 = vadd.f32 %v1524, -0.001682827
    %v1531 = vadd.f32 %v1525, -0.001682827
    %v1532 = vmul.f32 %v1526, %v1430
    %v1533 = vmul.f32 %v1527, %v1431
    %v1534 = vmul.f32 %v1528, %v1432
    %v1535 = vmul.f32 %v1529, %v1433
    %v1536 = vmul.f32 %v1530, %v1434
    %v1537 = vmul.f32 %v1531, %v1435
    %v1538 = vadd.f32 %v1532, -0.0073733293
    %v1539 = vadd.f32 %v1533, -0.0073733293
    %v1540 = vadd.f32 %v1534, -0.0073733293
    %v1541 = vadd.f32 %v1535, -0.0073733293
    %v1542 = vadd.f32 %v1536, -0.0073733293
    %v1543 = vadd.f32 %v1537, -0.0073733293
    %v1544 = vmul.f32 %v1538, %v1430
    %v1545 = vmul.f32 %v1539, %v1431
    %v1546 = vmul.f32 %v1540, %v1432
    %v1547 = vmul.f32 %v1541, %v1433
    %v1548 = vmul.f32 %v1542, %v1434
    %v1549 = vmul.f32 %v1543, %v1435
    %v1550 = vadd.f32 %v1544, -0.014264739
    %v1551 = vadd.f32 %v1545, -0.014264739
    %v1552 = vadd.f32 %v1546, -0.014264739
    %v1553 = vadd.f32 %v1547, -0.014264739
    %v1554 = vadd.f32 %v1548, -0.014264739
    %v1555 = vadd.f32 %v1549, -0.014264739
    %v1556 = vmul.f32 %v1424, %v1502
    %v1557 = vmul.f32 %v1425, %v1503
    %v1558 = vmul.f32 %v1426, %v1504
    %v1559 = vmul.f32 %v1427, %v1505
    %v1560 = vmul.f32 %v1428, %v1506
    %v1561 = vmul.f32 %v1429, %v1507
    %v1562 = vrcp.pop %v1550
    %v1563 = vmul.f32 %v1550, %v1562
    %v1564 = vsub.f32 1.0, %v1563
    %v1565 = vmul.f32 %v1562, %v1564
    %v1566 = vadd.f32 %v1562, %v1565
    %vm1567 = vweird.f32 %v1550
    %vm1568 = vweird.f32 %v1562
    %vm1569 = vmor %vm1567, %vm1568
    %v1570 = vsel %vm1569, %v1562, %v1566
    %v1571 = vand.u32 2147483647, %v1550
    %vm1572 = vcmp.eq.f32.partialorder %v1571, 8.507059e+37
    %v1573 = vand.u32 %v1550, 2147483648
    %v1574 = vor.u32 1.1754944e-38, %v1573
    %v1575 = vsel %vm1572, %v1574, %v1570
    %v1576 = vrcp.pop %v1551
    %v1577 = vmul.f32 %v1551, %v1576
    %v1578 = vsub.f32 1.0, %v1577
    %v1579 = vmul.f32 %v1576, %v1578
    %v1580 = vadd.f32 %v1576, %v1579
    %vm1581 = vweird.f32 %v1551
    %vm1582 = vweird.f32 %v1576
    %vm1583 = vmor %vm1581, %vm1582
    %v1584 = vsel %vm1583, %v1576, %v1580
    %v1585 = vand.u32 2147483647, %v1551
    %vm1586 = vcmp.eq.f32.partialorder %v1585, 8.507059e+37
    %v1587 = vand.u32 %v1551, 2147483648
    %v1588 = vor.u32 1.1754944e-38, %v1587
    %v1589 = vsel %vm1586, %v1588, %v1584
    %v1590 = vrcp.pop %v1552
    %v1591 = vmul.f32 %v1552, %v1590
    %v1592 = vsub.f32 1.0, %v1591
    %v1593 = vmul.f32 %v1590, %v1592
    %v1594 = vadd.f32 %v1590, %v1593
    %vm1595 = vweird.f32 %v1552
    %vm1596 = vweird.f32 %v1590
    %vm1597 = vmor %vm1595, %vm1596
    %v1598 = vsel %vm1597, %v1590, %v1594
    %v1599 = vand.u32 2147483647, %v1552
    %vm1600 = vcmp.eq.f32.partialorder %v1599, 8.507059e+37
    %v1601 = vand.u32 %v1552, 2147483648
    %v1602 = vor.u32 1.1754944e-38, %v1601
    %v1603 = vsel %vm1600, %v1602, %v1598
    %v1604 = vrcp.pop %v1553
    %v1605 = vmul.f32 %v1553, %v1604
    %v1606 = vsub.f32 1.0, %v1605
    %v1607 = vmul.f32 %v1604, %v1606
    %v1608 = vadd.f32 %v1604, %v1607
    %vm1609 = vweird.f32 %v1553
    %vm1610 = vweird.f32 %v1604
    %vm1611 = vmor %vm1609, %vm1610
    %v1612 = vsel %vm1611, %v1604, %v1608
    %v1613 = vand.u32 2147483647, %v1553
    %vm1614 = vcmp.eq.f32.partialorder %v1613, 8.507059e+37
    %v1615 = vand.u32 %v1553, 2147483648
    %v1616 = vor.u32 1.1754944e-38, %v1615
    %v1617 = vsel %vm1614, %v1616, %v1612
    %v1618 = vrcp.pop %v1554
    %v1619 = vmul.f32 %v1554, %v1618
    %v1620 = vsub.f32 1.0, %v1619
    %v1621 = vmul.f32 %v1618, %v1620
    %v1622 = vadd.f32 %v1618, %v1621
    %vm1623 = vweird.f32 %v1554
    %vm1624 = vweird.f32 %v1618
    %vm1625 = vmor %vm1623, %vm1624
    %v1626 = vsel %vm1625, %v1618, %v1622
    %v1627 = vand.u32 2147483647, %v1554
    %vm1628 = vcmp.eq.f32.partialorder %v1627, 8.507059e+37
    %v1629 = vand.u32 %v1554, 2147483648
    %v1630 = vor.u32 1.1754944e-38, %v1629
    %v1631 = vsel %vm1628, %v1630, %v1626
    %v1632 = vrcp.pop %v1555
    %v1633 = vmul.f32 %v1555, %v1632
    %v1634 = vsub.f32 1.0, %v1633
    %v1635 = vmul.f32 %v1632, %v1634
    %v1636 = vadd.f32 %v1632, %v1635
    %vm1637 = vweird.f32 %v1555
    %vm1638 = vweird.f32 %v1632
    %vm1639 = vmor %vm1637, %vm1638
    %v1640 = vsel %vm1639, %v1632, %v1636
    %v1641 = vand.u32 2147483647, %v1555
    %vm1642 = vcmp.eq.f32.partialorder %v1641, 8.507059e+37
    %v1643 = vand.u32 %v1555, 2147483648
    %v1644 = vor.u32 1.1754944e-38, %v1643
    %v1645 = vsel %vm1642, %v1644, %v1640
    %v1646 = vmul.f32 %v1556, %v1575
    %v1647 = vmul.f32 %v1557, %v1589
    %v1648 = vmul.f32 %v1558, %v1603
    %v1649 = vmul.f32 %v1559, %v1617
    %v1650 = vmul.f32 %v1560, %v1631
    %v1651 = vmul.f32 %v1561, %v1645
    %v1652 = vadd.f32 %v1646, 1.0
    %v1653 = vadd.f32 %v1647, 1.0
    %v1654 = vadd.f32 %v1648, 1.0
    %v1655 = vadd.f32 %v1649, 1.0
    %v1656 = vadd.f32 %v1650, 1.0
    %v1657 = vadd.f32 %v1651, 1.0
    %v1658 = vmul.f32 %v1406, %v1652
    %v1659 = vmul.f32 %v1407, %v1653
    %v1660 = vmul.f32 %v1408, %v1654
    %v1661 = vmul.f32 %v1409, %v1655
    %v1662 = vmul.f32 %v1410, %v1656
    %v1663 = vmul.f32 %v1411, %v1657
    %v1664 = vld [vmem:[%s14] sm:$0xff]
    %v1665 = vld [vmem:[%s14 + $0x8] sm:$0xff]
    %v1666 = vld [vmem:[%s14 + $0x10] sm:$0xff]
    %v1667 = vld [vmem:[%s14 + $0x18] sm:$0xff]
    %v1668 = vld [vmem:[%s14 + $0x20] sm:$0xff]
    %v1669 = vld [vmem:[%s14 + $0x28] sm:$0xff]
    %v1670 = vld [vmem:[%s14 + $0x30] sm:$0xff]
    %v1671 = vld [vmem:[%s14 + $0x38] sm:$0xff]
    %v1673 = vsel %vm86, %v1658, 0
    %v1676 = vsel %vm86, %v1659, 0
    %v1679 = vsel %vm86, %v1660, 0
    %v1682 = vsel %vm86, %v1661, 0
    %v1685 = vsel %vm86, %v1662, 0
    %v1688 = vsel %vm86, %v1663, 0
    %1690 = vmatpush.msra.mxu0 0.0
    %1691 = vmatpush.msra.mxu0 0.0
    %1692 = vmatpush.msra.mxu0 0.0
    %1693 = vmatpush.msra.mxu0 0.0
    %1694 = vmatpush.msra.mxu0 0.0
    %1695 = vmatpush.msra.mxu0 0.0
    %1696 = vmatpush.msra.mxu0 0.0
    %1697 = vmatpush.msra.mxu0 0.0
    %1698 = vmatpush.msra.mxu0 %v1671
    %1699 = vmatpush.msra.mxu0 %v1670
    %1700 = vmatpush.msra.mxu0 %v1669
    %1701 = vmatpush.msra.mxu0 %v1668
    %1702 = vmatpush.msra.mxu0 %v1667
    %1703 = vmatpush.msra.mxu0 %v1666
    %1704 = vmatpush.msra.mxu0 %v1665
    %1705 = vmatpush.msra.mxu0 %v1664
    %1706 = vmatmul.f32.gmra.mxu0 %v1673
    %v1707 = vpop.f32.mrf.mxu0
    %v1708 = vadd.f32 0.0, %v1707
    %1709 = vmatmul.f32.gmra.mxu0 %v1676
    %v1710 = vpop.f32.mrf.mxu0
    %v1711 = vadd.f32 0.0, %v1710
    %1712 = vmatmul.f32.gmra.mxu0 %v1679
    %v1713 = vpop.f32.mrf.mxu0
    %v1714 = vadd.f32 0.0, %v1713
    %1715 = vmatmul.f32.gmra.mxu0 %v1682
    %v1716 = vpop.f32.mrf.mxu0
    %v1717 = vadd.f32 0.0, %v1716
    %1718 = vmatmul.f32.gmra.mxu0 %v1685
    %v1719 = vpop.f32.mrf.mxu0
    %v1720 = vadd.f32 0.0, %v1719
    %1721 = vmatmul.f32.gmra.mxu0 %v1688
    %v1722 = vpop.f32.mrf.mxu0
    %v1723 = vadd.f32 0.0, %v1722
    %1724 = vdwg.mxu0
    %v1725 = vadd.f32 %v1187, %v1708
    %v1726 = vadd.f32 %v1188, %v1711
    %v1727 = vadd.f32 %v1189, %v1714
    %v1728 = vadd.f32 %v1190, %v1717
    %v1729 = vadd.f32 %v1191, %v1720
    %v1730 = vadd.f32 %v1192, %v1723
    %v1731 = vld [vmem:[%s15] sm:$0x1]
    %v1733 = vperm.slane %v1731, 0
    %v1735 = vadd.f32 %v1725, %v1733
    %v1736 = vadd.f32 %v1726, %v1733
    %v1737 = vadd.f32 %v1727, %v1733
    %v1738 = vadd.f32 %v1728, %v1733
    %v1739 = vadd.f32 %v1729, %v1733
    %v1740 = vadd.f32 %v1730, %v1733
    %s1741 = scalar_lea.vmem %s3, 1
    %v1742 = vld [vmem:[%s1741] sm:$0x1]
    %s1743 = scalar_lea.vmem %s4, 1
    %v1744 = vld [vmem:[%s1743] sm:$0x1]
    %v1745 = vsel %vm142, %v1735, 0.0
    %1746 = vadd.xlane.f32.xlu0 %v1745
    %v1747 = vpop.xlane.xlu0 %1746
    %v1748 = vsel %vm142, %v1736, 0.0
    %1749 = vadd.xlane.f32.xlu0 %v1748
    %v1750 = vpop.xlane.xlu0 %1749
    %v1751 = vsel %vm142, %v1737, 0.0
    %1752 = vadd.xlane.f32.xlu0 %v1751
    %v1753 = vpop.xlane.xlu0 %1752
    %v1754 = vsel %vm142, %v1738, 0.0
    %1755 = vadd.xlane.f32.xlu0 %v1754
    %v1756 = vpop.xlane.xlu0 %1755
    %v1757 = vsel %vm142, %v1739, 0.0
    %1758 = vadd.xlane.f32.xlu0 %v1757
    %v1759 = vpop.xlane.xlu0 %1758
    %v1760 = vsel %vm142, %v1740, 0.0
    %1761 = vadd.xlane.f32.xlu0 %v1760
    %v1762 = vpop.xlane.xlu0 %1761
    %v1763 = vmul.f32 %v1747, %v167
    %v1764 = vmul.f32 %v1750, %v167
    %v1765 = vmul.f32 %v1753, %v167
    %v1766 = vmul.f32 %v1756, %v167
    %v1767 = vmul.f32 %v1759, %v167
    %v1768 = vmul.f32 %v1762, %v167
    %v1769 = vsub.f32 %v1735, %v1763
    %v1770 = vsub.f32 %v1736, %v1764
    %v1771 = vsub.f32 %v1737, %v1765
    %v1772 = vsub.f32 %v1738, %v1766
    %v1773 = vsub.f32 %v1739, %v1767
    %v1774 = vsub.f32 %v1740, %v1768
    %v1775 = vmul.f32 %v1769, %v1769
    %v1776 = vmul.f32 %v1770, %v1770
    %v1777 = vmul.f32 %v1771, %v1771
    %v1778 = vmul.f32 %v1772, %v1772
    %v1779 = vmul.f32 %v1773, %v1773
    %v1780 = vmul.f32 %v1774, %v1774
    %v1781 = vsel %vm142, %v1775, 0.0
    %1782 = vadd.xlane.f32.xlu0 %v1781
    %v1783 = vpop.xlane.xlu0 %1782
    %v1784 = vsel %vm142, %v1776, 0.0
    %1785 = vadd.xlane.f32.xlu0 %v1784
    %v1786 = vpop.xlane.xlu0 %1785
    %v1787 = vsel %vm142, %v1777, 0.0
    %1788 = vadd.xlane.f32.xlu0 %v1787
    %v1789 = vpop.xlane.xlu0 %1788
    %v1790 = vsel %vm142, %v1778, 0.0
    %1791 = vadd.xlane.f32.xlu0 %v1790
    %v1792 = vpop.xlane.xlu0 %1791
    %v1793 = vsel %vm142, %v1779, 0.0
    %1794 = vadd.xlane.f32.xlu0 %v1793
    %v1795 = vpop.xlane.xlu0 %1794
    %v1796 = vsel %vm142, %v1780, 0.0
    %1797 = vadd.xlane.f32.xlu0 %v1796
    %v1798 = vpop.xlane.xlu0 %1797
    %v1799 = vmul.f32 %v1783, %v167
    %v1800 = vmul.f32 %v1786, %v167
    %v1801 = vmul.f32 %v1789, %v167
    %v1802 = vmul.f32 %v1792, %v167
    %v1803 = vmul.f32 %v1795, %v167
    %v1804 = vmul.f32 %v1798, %v167
    %v1805 = vadd.f32 %v1799, 1e-05
    %v1806 = vadd.f32 %v1800, 1e-05
    %v1807 = vadd.f32 %v1801, 1e-05
    %v1808 = vadd.f32 %v1802, 1e-05
    %v1809 = vadd.f32 %v1803, 1e-05
    %v1810 = vadd.f32 %v1804, 1e-05
    %v1811 = vrsqrt.pop %v1805
    %v1812 = vmul.f32 %v1811, %v1805
    %v1813 = vmul.f32 %v1812, %v1811
    %v1814 = vmul.f32 0.5, %v1813
    %v1815 = vsub.f32 1.5, %v1814
    %v1816 = vmul.f32 %v1811, %v1815
    %vm1817 = vweird.f32 %v1805
    %vm1818 = vweird.f32 %v1811
    %vm1819 = vmor %vm1817, %vm1818
    %v1820 = vsel %vm1819, %v1811, %v1816
    %v1821 = vrsqrt.pop %v1806
    %v1822 = vmul.f32 %v1821, %v1806
    %v1823 = vmul.f32 %v1822, %v1821
    %v1824 = vmul.f32 0.5, %v1823
    %v1825 = vsub.f32 1.5, %v1824
    %v1826 = vmul.f32 %v1821, %v1825
    %vm1827 = vweird.f32 %v1806
    %vm1828 = vweird.f32 %v1821
    %vm1829 = vmor %vm1827, %vm1828
    %v1830 = vsel %vm1829, %v1821, %v1826
    %v1831 = vrsqrt.pop %v1807
    %v1832 = vmul.f32 %v1831, %v1807
    %v1833 = vmul.f32 %v1832, %v1831
    %v1834 = vmul.f32 0.5, %v1833
    %v1835 = vsub.f32 1.5, %v1834
    %v1836 = vmul.f32 %v1831, %v1835
    %vm1837 = vweird.f32 %v1807
    %vm1838 = vweird.f32 %v1831
    %vm1839 = vmor %vm1837, %vm1838
    %v1840 = vsel %vm1839, %v1831, %v1836
    %v1841 = vrsqrt.pop %v1808
    %v1842 = vmul.f32 %v1841, %v1808
    %v1843 = vmul.f32 %v1842, %v1841
    %v1844 = vmul.f32 0.5, %v1843
    %v1845 = vsub.f32 1.5, %v1844
    %v1846 = vmul.f32 %v1841, %v1845
    %vm1847 = vweird.f32 %v1808
    %vm1848 = vweird.f32 %v1841
    %vm1849 = vmor %vm1847, %vm1848
    %v1850 = vsel %vm1849, %v1841, %v1846
    %v1851 = vrsqrt.pop %v1809
    %v1852 = vmul.f32 %v1851, %v1809
    %v1853 = vmul.f32 %v1852, %v1851
    %v1854 = vmul.f32 0.5, %v1853
    %v1855 = vsub.f32 1.5, %v1854
    %v1856 = vmul.f32 %v1851, %v1855
    %vm1857 = vweird.f32 %v1809
    %vm1858 = vweird.f32 %v1851
    %vm1859 = vmor %vm1857, %vm1858
    %v1860 = vsel %vm1859, %v1851, %v1856
    %v1861 = vrsqrt.pop %v1810
    %v1862 = vmul.f32 %v1861, %v1810
    %v1863 = vmul.f32 %v1862, %v1861
    %v1864 = vmul.f32 0.5, %v1863
    %v1865 = vsub.f32 1.5, %v1864
    %v1866 = vmul.f32 %v1861, %v1865
    %vm1867 = vweird.f32 %v1810
    %vm1868 = vweird.f32 %v1861
    %vm1869 = vmor %vm1867, %vm1868
    %v1870 = vsel %vm1869, %v1861, %v1866
    %v1871 = vmul.f32 %v1769, %v1820
    %v1872 = vmul.f32 %v1770, %v1830
    %v1873 = vmul.f32 %v1771, %v1840
    %v1874 = vmul.f32 %v1772, %v1850
    %v1875 = vmul.f32 %v1773, %v1860
    %v1876 = vmul.f32 %v1774, %v1870
    %v1878 = vperm.slane %v1742, 0
    %v1880 = vmul.f32 %v1871, %v1878
    %v1881 = vmul.f32 %v1872, %v1878
    %v1882 = vmul.f32 %v1873, %v1878
    %v1883 = vmul.f32 %v1874, %v1878
    %v1884 = vmul.f32 %v1875, %v1878
    %v1885 = vmul.f32 %v1876, %v1878
    %v1887 = vperm.slane %v1744, 0
    %v1889 = vadd.f32 %v1880, %v1887
    %v1890 = vadd.f32 %v1881, %v1887
    %v1891 = vadd.f32 %v1882, %v1887
    %v1892 = vadd.f32 %v1883, %v1887
    %v1893 = vadd.f32 %v1884, %v1887
    %v1894 = vadd.f32 %v1885, %v1887
    %s1895 = scalar_lea.vmem %s5, 64
    %v1896 = vld [vmem:[%s1895] sm:$0xff]
    %v1897 = vld [vmem:[%s1895 + $0x8] sm:$0xff]
    %v1898 = vld [vmem:[%s1895 + $0x10] sm:$0xff]
    %v1899 = vld [vmem:[%s1895 + $0x18] sm:$0xff]
    %v1901 = vsel %vm142, %v1889, 0
    %v1904 = vsel %vm142, %v1890, 0
    %v1907 = vsel %vm142, %v1891, 0
    %v1910 = vsel %vm142, %v1892, 0
    %v1913 = vsel %vm142, %v1893, 0
    %v1916 = vsel %vm142, %v1894, 0
    %1918 = vmatpush.msra.mxu0 0.0
    %1919 = vmatpush.msra.mxu0 0.0
    %1920 = vmatpush.msra.mxu0 0.0
    %1921 = vmatpush.msra.mxu0 0.0
    %1922 = vmatpush.msra.mxu0 0.0
    %1923 = vmatpush.msra.mxu0 0.0
    %1924 = vmatpush.msra.mxu0 0.0
    %1925 = vmatpush.msra.mxu0 0.0
    %1926 = vmatpush.msra.mxu0 0.0
    %1927 = vmatpush.msra.mxu0 0.0
    %1928 = vmatpush.msra.mxu0 0.0
    %1929 = vmatpush.msra.mxu0 0.0
    %1930 = vmatpush.msra.mxu0 %v1899
    %1931 = vmatpush.msra.mxu0 %v1898
    %1932 = vmatpush.msra.mxu0 %v1897
    %1933 = vmatpush.msra.mxu0 %v1896
    %1934 = vmatmul.f32.gmra.mxu0 %v1901
    %v1935 = vpop.f32.mrf.mxu0
    %v1936 = vadd.f32 0.0, %v1935
    %1937 = vmatmul.f32.gmra.mxu0 %v1904
    %v1938 = vpop.f32.mrf.mxu0
    %v1939 = vadd.f32 0.0, %v1938
    %1940 = vmatmul.f32.gmra.mxu0 %v1907
    %v1941 = vpop.f32.mrf.mxu0
    %v1942 = vadd.f32 0.0, %v1941
    %1943 = vmatmul.f32.gmra.mxu0 %v1910
    %v1944 = vpop.f32.mrf.mxu0
    %v1945 = vadd.f32 0.0, %v1944
    %1946 = vmatmul.f32.gmra.mxu0 %v1913
    %v1947 = vpop.f32.mrf.mxu0
    %v1948 = vadd.f32 0.0, %v1947
    %1949 = vmatmul.f32.gmra.mxu0 %v1916
    %v1950 = vpop.f32.mrf.mxu0
    %v1951 = vadd.f32 0.0, %v1950
    %1952 = vdwg.mxu0
    %s1953 = scalar_lea.vmem %s5, 96
    %v1954 = vld [vmem:[%s1953] sm:$0xff]
    %v1955 = vld [vmem:[%s1953 + $0x8] sm:$0xff]
    %v1956 = vld [vmem:[%s1953 + $0x10] sm:$0xff]
    %v1957 = vld [vmem:[%s1953 + $0x18] sm:$0xff]
    %1958 = vmatpush.msra.mxu0 0.0
    %1959 = vmatpush.msra.mxu0 0.0
    %1960 = vmatpush.msra.mxu0 0.0
    %1961 = vmatpush.msra.mxu0 0.0
    %1962 = vmatpush.msra.mxu0 0.0
    %1963 = vmatpush.msra.mxu0 0.0
    %1964 = vmatpush.msra.mxu0 0.0
    %1965 = vmatpush.msra.mxu0 0.0
    %1966 = vmatpush.msra.mxu0 0.0
    %1967 = vmatpush.msra.mxu0 0.0
    %1968 = vmatpush.msra.mxu0 0.0
    %1969 = vmatpush.msra.mxu0 0.0
    %1970 = vmatpush.msra.mxu0 %v1957
    %1971 = vmatpush.msra.mxu0 %v1956
    %1972 = vmatpush.msra.mxu0 %v1955
    %1973 = vmatpush.msra.mxu0 %v1954
    %1974 = vmatmul.f32.gmra.mxu0 %v1901
    %v1975 = vpop.f32.mrf.mxu0
    %v1976 = vadd.f32 0.0, %v1975
    %1977 = vmatmul.f32.gmra.mxu0 %v1904
    %v1978 = vpop.f32.mrf.mxu0
    %v1979 = vadd.f32 0.0, %v1978
    %1980 = vmatmul.f32.gmra.mxu0 %v1907
    %v1981 = vpop.f32.mrf.mxu0
    %v1982 = vadd.f32 0.0, %v1981
    %1983 = vmatmul.f32.gmra.mxu0 %v1910
    %v1984 = vpop.f32.mrf.mxu0
    %v1985 = vadd.f32 0.0, %v1984
    %1986 = vmatmul.f32.gmra.mxu0 %v1913
    %v1987 = vpop.f32.mrf.mxu0
    %v1988 = vadd.f32 0.0, %v1987
    %1989 = vmatmul.f32.gmra.mxu0 %v1916
    %v1990 = vpop.f32.mrf.mxu0
    %v1991 = vadd.f32 0.0, %v1990
    %1992 = vdwg.mxu0
    %s1993 = scalar_lea.vmem %s6, 64
    %v1994 = vld [vmem:[%s1993] sm:$0xff]
    %v1995 = vld [vmem:[%s1993 + $0x8] sm:$0xff]
    %v1996 = vld [vmem:[%s1993 + $0x10] sm:$0xff]
    %v1997 = vld [vmem:[%s1993 + $0x18] sm:$0xff]
    %1998 = vmatpush.msra.mxu0 0.0
    %1999 = vmatpush.msra.mxu0 0.0
    %2000 = vmatpush.msra.mxu0 0.0
    %2001 = vmatpush.msra.mxu0 0.0
    %2002 = vmatpush.msra.mxu0 0.0
    %2003 = vmatpush.msra.mxu0 0.0
    %2004 = vmatpush.msra.mxu0 0.0
    %2005 = vmatpush.msra.mxu0 0.0
    %2006 = vmatpush.msra.mxu0 0.0
    %2007 = vmatpush.msra.mxu0 0.0
    %2008 = vmatpush.msra.mxu0 0.0
    %2009 = vmatpush.msra.mxu0 0.0
    %2010 = vmatpush.msra.mxu0 %v1997
    %2011 = vmatpush.msra.mxu0 %v1996
    %2012 = vmatpush.msra.mxu0 %v1995
    %2013 = vmatpush.msra.mxu0 %v1994
    %2014 = vmatmul.f32.gmra.mxu0 %v1901
    %v2015 = vpop.f32.mrf.mxu0
    %v2016 = vadd.f32 0.0, %v2015
    %2017 = vmatmul.f32.gmra.mxu0 %v1904
    %v2018 = vpop.f32.mrf.mxu0
    %v2019 = vadd.f32 0.0, %v2018
    %2020 = vmatmul.f32.gmra.mxu0 %v1907
    %v2021 = vpop.f32.mrf.mxu0
    %v2022 = vadd.f32 0.0, %v2021
    %2023 = vmatmul.f32.gmra.mxu0 %v1910
    %v2024 = vpop.f32.mrf.mxu0
    %v2025 = vadd.f32 0.0, %v2024
    %2026 = vmatmul.f32.gmra.mxu0 %v1913
    %v2027 = vpop.f32.mrf.mxu0
    %v2028 = vadd.f32 0.0, %v2027
    %2029 = vmatmul.f32.gmra.mxu0 %v1916
    %v2030 = vpop.f32.mrf.mxu0
    %v2031 = vadd.f32 0.0, %v2030
    %2032 = vdwg.mxu0
    %s2033 = scalar_lea.vmem %s6, 96
    %v2034 = vld [vmem:[%s2033] sm:$0xff]
    %v2035 = vld [vmem:[%s2033 + $0x8] sm:$0xff]
    %v2036 = vld [vmem:[%s2033 + $0x10] sm:$0xff]
    %v2037 = vld [vmem:[%s2033 + $0x18] sm:$0xff]
    %2038 = vmatpush.msra.mxu0 0.0
    %2039 = vmatpush.msra.mxu0 0.0
    %2040 = vmatpush.msra.mxu0 0.0
    %2041 = vmatpush.msra.mxu0 0.0
    %2042 = vmatpush.msra.mxu0 0.0
    %2043 = vmatpush.msra.mxu0 0.0
    %2044 = vmatpush.msra.mxu0 0.0
    %2045 = vmatpush.msra.mxu0 0.0
    %2046 = vmatpush.msra.mxu0 0.0
    %2047 = vmatpush.msra.mxu0 0.0
    %2048 = vmatpush.msra.mxu0 0.0
    %2049 = vmatpush.msra.mxu0 0.0
    %2050 = vmatpush.msra.mxu0 %v2037
    %2051 = vmatpush.msra.mxu0 %v2036
    %2052 = vmatpush.msra.mxu0 %v2035
    %2053 = vmatpush.msra.mxu0 %v2034
    %2054 = vmatmul.f32.gmra.mxu0 %v1901
    %v2055 = vpop.f32.mrf.mxu0
    %v2056 = vadd.f32 0.0, %v2055
    %2057 = vmatmul.f32.gmra.mxu0 %v1904
    %v2058 = vpop.f32.mrf.mxu0
    %v2059 = vadd.f32 0.0, %v2058
    %2060 = vmatmul.f32.gmra.mxu0 %v1907
    %v2061 = vpop.f32.mrf.mxu0
    %v2062 = vadd.f32 0.0, %v2061
    %2063 = vmatmul.f32.gmra.mxu0 %v1910
    %v2064 = vpop.f32.mrf.mxu0
    %v2065 = vadd.f32 0.0, %v2064
    %2066 = vmatmul.f32.gmra.mxu0 %v1913
    %v2067 = vpop.f32.mrf.mxu0
    %v2068 = vadd.f32 0.0, %v2067
    %2069 = vmatmul.f32.gmra.mxu0 %v1916
    %v2070 = vpop.f32.mrf.mxu0
    %v2071 = vadd.f32 0.0, %v2070
    %2072 = vdwg.mxu0
    %s2073 = scalar_lea.vmem %s7, 64
    %v2074 = vld [vmem:[%s2073] sm:$0xff]
    %v2075 = vld [vmem:[%s2073 + $0x8] sm:$0xff]
    %v2076 = vld [vmem:[%s2073 + $0x10] sm:$0xff]
    %v2077 = vld [vmem:[%s2073 + $0x18] sm:$0xff]
    %2078 = vmatpush.msra.mxu0 0.0
    %2079 = vmatpush.msra.mxu0 0.0
    %2080 = vmatpush.msra.mxu0 0.0
    %2081 = vmatpush.msra.mxu0 0.0
    %2082 = vmatpush.msra.mxu0 0.0
    %2083 = vmatpush.msra.mxu0 0.0
    %2084 = vmatpush.msra.mxu0 0.0
    %2085 = vmatpush.msra.mxu0 0.0
    %2086 = vmatpush.msra.mxu0 0.0
    %2087 = vmatpush.msra.mxu0 0.0
    %2088 = vmatpush.msra.mxu0 0.0
    %2089 = vmatpush.msra.mxu0 0.0
    %2090 = vmatpush.msra.mxu0 %v2077
    %2091 = vmatpush.msra.mxu0 %v2076
    %2092 = vmatpush.msra.mxu0 %v2075
    %2093 = vmatpush.msra.mxu0 %v2074
    %2094 = vmatmul.f32.gmra.mxu0 %v1901
    %v2095 = vpop.f32.mrf.mxu0
    %v2096 = vadd.f32 0.0, %v2095
    %2097 = vmatmul.f32.gmra.mxu0 %v1904
    %v2098 = vpop.f32.mrf.mxu0
    %v2099 = vadd.f32 0.0, %v2098
    %2100 = vmatmul.f32.gmra.mxu0 %v1907
    %v2101 = vpop.f32.mrf.mxu0
    %v2102 = vadd.f32 0.0, %v2101
    %2103 = vmatmul.f32.gmra.mxu0 %v1910
    %v2104 = vpop.f32.mrf.mxu0
    %v2105 = vadd.f32 0.0, %v2104
    %2106 = vmatmul.f32.gmra.mxu0 %v1913
    %v2107 = vpop.f32.mrf.mxu0
    %v2108 = vadd.f32 0.0, %v2107
    %2109 = vmatmul.f32.gmra.mxu0 %v1916
    %v2110 = vpop.f32.mrf.mxu0
    %v2111 = vadd.f32 0.0, %v2110
    %2112 = vdwg.mxu0
    %s2113 = scalar_lea.vmem %s7, 96
    %v2114 = vld [vmem:[%s2113] sm:$0xff]
    %v2115 = vld [vmem:[%s2113 + $0x8] sm:$0xff]
    %v2116 = vld [vmem:[%s2113 + $0x10] sm:$0xff]
    %v2117 = vld [vmem:[%s2113 + $0x18] sm:$0xff]
    %2118 = vmatpush.msra.mxu0 0.0
    %2119 = vmatpush.msra.mxu0 0.0
    %2120 = vmatpush.msra.mxu0 0.0
    %2121 = vmatpush.msra.mxu0 0.0
    %2122 = vmatpush.msra.mxu0 0.0
    %2123 = vmatpush.msra.mxu0 0.0
    %2124 = vmatpush.msra.mxu0 0.0
    %2125 = vmatpush.msra.mxu0 0.0
    %2126 = vmatpush.msra.mxu0 0.0
    %2127 = vmatpush.msra.mxu0 0.0
    %2128 = vmatpush.msra.mxu0 0.0
    %2129 = vmatpush.msra.mxu0 0.0
    %2130 = vmatpush.msra.mxu0 %v2117
    %2131 = vmatpush.msra.mxu0 %v2116
    %2132 = vmatpush.msra.mxu0 %v2115
    %2133 = vmatpush.msra.mxu0 %v2114
    %2134 = vmatmul.f32.gmra.mxu0 %v1901
    %v2135 = vpop.f32.mrf.mxu0
    %v2136 = vadd.f32 0.0, %v2135
    %2137 = vmatmul.f32.gmra.mxu0 %v1904
    %v2138 = vpop.f32.mrf.mxu0
    %v2139 = vadd.f32 0.0, %v2138
    %2140 = vmatmul.f32.gmra.mxu0 %v1907
    %v2141 = vpop.f32.mrf.mxu0
    %v2142 = vadd.f32 0.0, %v2141
    %2143 = vmatmul.f32.gmra.mxu0 %v1910
    %v2144 = vpop.f32.mrf.mxu0
    %v2145 = vadd.f32 0.0, %v2144
    %2146 = vmatmul.f32.gmra.mxu0 %v1913
    %v2147 = vpop.f32.mrf.mxu0
    %v2148 = vadd.f32 0.0, %v2147
    %2149 = vmatmul.f32.gmra.mxu0 %v1916
    %v2150 = vpop.f32.mrf.mxu0
    %v2151 = vadd.f32 0.0, %v2150
    %2152 = vdwg.mxu0
    %v2154 = vsel %vm555, %v1936, 0
    %v2157 = vsel %vm555, %v1939, 0
    %v2160 = vsel %vm555, %v1942, 0
    %v2163 = vsel %vm555, %v2016, 0
    %v2166 = vsel %vm555, %v2019, 0
    %v2169 = vsel %vm555, %v2022, 0
    %2171 = vmatpush.xpose.msra.mxu0 0.0
    %2172 = vmatpush.xpose.msra.mxu0 0.0
    %2173 = vmatpush.xpose.msra.mxu0 0.0
    %2174 = vmatpush.xpose.msra.mxu0 0.0
    %2175 = vmatpush.xpose.msra.mxu0 0.0
    %2176 = vmatpush.xpose.msra.mxu0 0.0
    %2177 = vmatpush.xpose.msra.mxu0 0.0
    %2178 = vmatpush.xpose.msra.mxu0 0.0
    %2179 = vmatpush.xpose.msra.mxu0 0.0
    %2180 = vmatpush.xpose.msra.mxu0 0.0
    %2181 = vmatpush.xpose.msra.mxu0 0.0
    %2182 = vmatpush.xpose.msra.mxu0 0.0
    %2183 = vmatpush.xpose.msra.mxu0 0.0
    %2184 = vmatpush.xpose.msra.mxu0 %v2169
    %2185 = vmatpush.xpose.msra.mxu0 %v2166
    %2186 = vmatpush.xpose.msra.mxu0 %v2163
    %2187 = vmatmul.f32.gmra.mxu0 %v2154
    %v2188 = vpop.f32.mrf.mxu0
    %v2189 = vadd.f32 0.0, %v2188
    %2190 = vmatmul.f32.gmra.mxu0 %v2157
    %v2191 = vpop.f32.mrf.mxu0
    %v2192 = vadd.f32 0.0, %v2191
    %2193 = vmatmul.f32.gmra.mxu0 %v2160
    %v2194 = vpop.f32.mrf.mxu0
    %v2195 = vadd.f32 0.0, %v2194
    %2196 = vdwg.mxu0
    %v2198 = vsel %vm555, %v1976, 0
    %v2201 = vsel %vm555, %v1979, 0
    %v2204 = vsel %vm555, %v1982, 0
    %v2207 = vsel %vm555, %v2056, 0
    %v2210 = vsel %vm555, %v2059, 0
    %v2213 = vsel %vm555, %v2062, 0
    %2215 = vmatpush.xpose.msra.mxu0 0.0
    %2216 = vmatpush.xpose.msra.mxu0 0.0
    %2217 = vmatpush.xpose.msra.mxu0 0.0
    %2218 = vmatpush.xpose.msra.mxu0 0.0
    %2219 = vmatpush.xpose.msra.mxu0 0.0
    %2220 = vmatpush.xpose.msra.mxu0 0.0
    %2221 = vmatpush.xpose.msra.mxu0 0.0
    %2222 = vmatpush.xpose.msra.mxu0 0.0
    %2223 = vmatpush.xpose.msra.mxu0 0.0
    %2224 = vmatpush.xpose.msra.mxu0 0.0
    %2225 = vmatpush.xpose.msra.mxu0 0.0
    %2226 = vmatpush.xpose.msra.mxu0 0.0
    %2227 = vmatpush.xpose.msra.mxu0 0.0
    %2228 = vmatpush.xpose.msra.mxu0 %v2213
    %2229 = vmatpush.xpose.msra.mxu0 %v2210
    %2230 = vmatpush.xpose.msra.mxu0 %v2207
    %2231 = vmatmul.f32.gmra.mxu0 %v2198
    %v2232 = vpop.f32.mrf.mxu0
    %v2233 = vadd.f32 0.0, %v2232
    %2234 = vmatmul.f32.gmra.mxu0 %v2201
    %v2235 = vpop.f32.mrf.mxu0
    %v2236 = vadd.f32 0.0, %v2235
    %2237 = vmatmul.f32.gmra.mxu0 %v2204
    %v2238 = vpop.f32.mrf.mxu0
    %v2239 = vadd.f32 0.0, %v2238
    %2240 = vdwg.mxu0
    %v2242 = vsel %vm555, %v1945, 0
    %v2245 = vsel %vm555, %v1948, 0
    %v2248 = vsel %vm555, %v1951, 0
    %v2251 = vsel %vm555, %v2025, 0
    %v2254 = vsel %vm555, %v2028, 0
    %v2257 = vsel %vm555, %v2031, 0
    %2259 = vmatpush.xpose.msra.mxu0 0.0
    %2260 = vmatpush.xpose.msra.mxu0 0.0
    %2261 = vmatpush.xpose.msra.mxu0 0.0
    %2262 = vmatpush.xpose.msra.mxu0 0.0
    %2263 = vmatpush.xpose.msra.mxu0 0.0
    %2264 = vmatpush.xpose.msra.mxu0 0.0
    %2265 = vmatpush.xpose.msra.mxu0 0.0
    %2266 = vmatpush.xpose.msra.mxu0 0.0
    %2267 = vmatpush.xpose.msra.mxu0 0.0
    %2268 = vmatpush.xpose.msra.mxu0 0.0
    %2269 = vmatpush.xpose.msra.mxu0 0.0
    %2270 = vmatpush.xpose.msra.mxu0 0.0
    %2271 = vmatpush.xpose.msra.mxu0 0.0
    %2272 = vmatpush.xpose.msra.mxu0 %v2257
    %2273 = vmatpush.xpose.msra.mxu0 %v2254
    %2274 = vmatpush.xpose.msra.mxu0 %v2251
    %2275 = vmatmul.f32.gmra.mxu0 %v2242
    %v2276 = vpop.f32.mrf.mxu0
    %v2277 = vadd.f32 0.0, %v2276
    %2278 = vmatmul.f32.gmra.mxu0 %v2245
    %v2279 = vpop.f32.mrf.mxu0
    %v2280 = vadd.f32 0.0, %v2279
    %2281 = vmatmul.f32.gmra.mxu0 %v2248
    %v2282 = vpop.f32.mrf.mxu0
    %v2283 = vadd.f32 0.0, %v2282
    %2284 = vdwg.mxu0
    %v2286 = vsel %vm555, %v1985, 0
    %v2289 = vsel %vm555, %v1988, 0
    %v2292 = vsel %vm555, %v1991, 0
    %v2295 = vsel %vm555, %v2065, 0
    %v2298 = vsel %vm555, %v2068, 0
    %v2301 = vsel %vm555, %v2071, 0
    %2303 = vmatpush.xpose.msra.mxu0 0.0
    %2304 = vmatpush.xpose.msra.mxu0 0.0
    %2305 = vmatpush.xpose.msra.mxu0 0.0
    %2306 = vmatpush.xpose.msra.mxu0 0.0
    %2307 = vmatpush.xpose.msra.mxu0 0.0
    %2308 = vmatpush.xpose.msra.mxu0 0.0
    %2309 = vmatpush.xpose.msra.mxu0 0.0
    %2310 = vmatpush.xpose.msra.mxu0 0.0
    %2311 = vmatpush.xpose.msra.mxu0 0.0
    %2312 = vmatpush.xpose.msra.mxu0 0.0
    %2313 = vmatpush.xpose.msra.mxu0 0.0
    %2314 = vmatpush.xpose.msra.mxu0 0.0
    %2315 = vmatpush.xpose.msra.mxu0 0.0
    %2316 = vmatpush.xpose.msra.mxu0 %v2301
    %2317 = vmatpush.xpose.msra.mxu0 %v2298
    %2318 = vmatpush.xpose.msra.mxu0 %v2295
    %2319 = vmatmul.f32.gmra.mxu0 %v2286
    %v2320 = vpop.f32.mrf.mxu0
    %v2321 = vadd.f32 0.0, %v2320
    %2322 = vmatmul.f32.gmra.mxu0 %v2289
    %v2323 = vpop.f32.mrf.mxu0
    %v2324 = vadd.f32 0.0, %v2323
    %2325 = vmatmul.f32.gmra.mxu0 %v2292
    %v2326 = vpop.f32.mrf.mxu0
    %v2327 = vadd.f32 0.0, %v2326
    %2328 = vdwg.mxu0
    %v2329 = vmul.f32 %v2189, 0.25
    %v2330 = vmul.f32 %v2192, 0.25
    %v2331 = vmul.f32 %v2195, 0.25
    %v2332 = vmul.f32 %v2233, 0.25
    %v2333 = vmul.f32 %v2236, 0.25
    %v2334 = vmul.f32 %v2239, 0.25
    %v2335 = vmul.f32 %v2277, 0.25
    %v2336 = vmul.f32 %v2280, 0.25
    %v2337 = vmul.f32 %v2283, 0.25
    %v2338 = vmul.f32 %v2321, 0.25
    %v2339 = vmul.f32 %v2324, 0.25
    %v2340 = vmul.f32 %v2327, 0.25
    %v2341 = vsel %vm746, %v2329, -1e+30
    %v2342 = vsel %vm746, %v2330, -1e+30
    %v2343 = vsel %vm746, %v2331, -1e+30
    %v2344 = vsel %vm746, %v2332, -1e+30
    %v2345 = vsel %vm746, %v2333, -1e+30
    %v2346 = vsel %vm746, %v2334, -1e+30
    %v2347 = vsel %vm746, %v2335, -1e+30
    %v2348 = vsel %vm746, %v2336, -1e+30
    %v2349 = vsel %vm746, %v2337, -1e+30
    %v2350 = vsel %vm746, %v2338, -1e+30
    %v2351 = vsel %vm746, %v2339, -1e+30
    %v2352 = vsel %vm746, %v2340, -1e+30
    %v2353 = vsel %vm759, %v2341, -inf
    %2354 = vmax.xlane.f32.xlu0 %v2353
    %v2355 = vpop.xlane.xlu0 %2354
    %v2356 = vsel %vm759, %v2342, -inf
    %2357 = vmax.xlane.f32.xlu0 %v2356
    %v2358 = vpop.xlane.xlu0 %2357
    %v2359 = vsel %vm759, %v2343, -inf
    %2360 = vmax.xlane.f32.xlu0 %v2359
    %v2361 = vpop.xlane.xlu0 %2360
    %v2362 = vsel %vm759, %v2344, -inf
    %2363 = vmax.xlane.f32.xlu0 %v2362
    %v2364 = vpop.xlane.xlu0 %2363
    %v2365 = vsel %vm759, %v2345, -inf
    %2366 = vmax.xlane.f32.xlu0 %v2365
    %v2367 = vpop.xlane.xlu0 %2366
    %v2368 = vsel %vm759, %v2346, -inf
    %2369 = vmax.xlane.f32.xlu0 %v2368
    %v2370 = vpop.xlane.xlu0 %2369
    %v2371 = vsel %vm759, %v2347, -inf
    %2372 = vmax.xlane.f32.xlu0 %v2371
    %v2373 = vpop.xlane.xlu0 %2372
    %v2374 = vsel %vm759, %v2348, -inf
    %2375 = vmax.xlane.f32.xlu0 %v2374
    %v2376 = vpop.xlane.xlu0 %2375
    %v2377 = vsel %vm759, %v2349, -inf
    %2378 = vmax.xlane.f32.xlu0 %v2377
    %v2379 = vpop.xlane.xlu0 %2378
    %v2380 = vsel %vm759, %v2350, -inf
    %2381 = vmax.xlane.f32.xlu0 %v2380
    %v2382 = vpop.xlane.xlu0 %2381
    %v2383 = vsel %vm759, %v2351, -inf
    %2384 = vmax.xlane.f32.xlu0 %v2383
    %v2385 = vpop.xlane.xlu0 %2384
    %v2386 = vsel %vm759, %v2352, -inf
    %2387 = vmax.xlane.f32.xlu0 %v2386
    %v2388 = vpop.xlane.xlu0 %2387
    %v2389 = vsub.f32 %v2341, %v2355
    %v2390 = vsub.f32 %v2342, %v2358
    %v2391 = vsub.f32 %v2343, %v2361
    %v2392 = vsub.f32 %v2344, %v2364
    %v2393 = vsub.f32 %v2345, %v2367
    %v2394 = vsub.f32 %v2346, %v2370
    %v2395 = vsub.f32 %v2347, %v2373
    %v2396 = vsub.f32 %v2348, %v2376
    %v2397 = vsub.f32 %v2349, %v2379
    %v2398 = vsub.f32 %v2350, %v2382
    %v2399 = vsub.f32 %v2351, %v2385
    %v2400 = vsub.f32 %v2352, %v2388
    %v2401 = vmul.f32 %v2389, 1.442695
    %v2402 = vpow.pop %v2401
    %v2403 = vmul.f32 %v2390, 1.442695
    %v2404 = vpow.pop %v2403
    %v2405 = vmul.f32 %v2391, 1.442695
    %v2406 = vpow.pop %v2405
    %v2407 = vmul.f32 %v2392, 1.442695
    %v2408 = vpow.pop %v2407
    %v2409 = vmul.f32 %v2393, 1.442695
    %v2410 = vpow.pop %v2409
    %v2411 = vmul.f32 %v2394, 1.442695
    %v2412 = vpow.pop %v2411
    %v2413 = vmul.f32 %v2395, 1.442695
    %v2414 = vpow.pop %v2413
    %v2415 = vmul.f32 %v2396, 1.442695
    %v2416 = vpow.pop %v2415
    %v2417 = vmul.f32 %v2397, 1.442695
    %v2418 = vpow.pop %v2417
    %v2419 = vmul.f32 %v2398, 1.442695
    %v2420 = vpow.pop %v2419
    %v2421 = vmul.f32 %v2399, 1.442695
    %v2422 = vpow.pop %v2421
    %v2423 = vmul.f32 %v2400, 1.442695
    %v2424 = vpow.pop %v2423
    %v2425 = vsel %vm759, %v2402, 0.0
    %2426 = vadd.xlane.f32.xlu0 %v2425
    %v2427 = vpop.xlane.xlu0 %2426
    %v2428 = vsel %vm759, %v2404, 0.0
    %2429 = vadd.xlane.f32.xlu0 %v2428
    %v2430 = vpop.xlane.xlu0 %2429
    %v2431 = vsel %vm759, %v2406, 0.0
    %2432 = vadd.xlane.f32.xlu0 %v2431
    %v2433 = vpop.xlane.xlu0 %2432
    %v2434 = vsel %vm759, %v2408, 0.0
    %2435 = vadd.xlane.f32.xlu0 %v2434
    %v2436 = vpop.xlane.xlu0 %2435
    %v2437 = vsel %vm759, %v2410, 0.0
    %2438 = vadd.xlane.f32.xlu0 %v2437
    %v2439 = vpop.xlane.xlu0 %2438
    %v2440 = vsel %vm759, %v2412, 0.0
    %2441 = vadd.xlane.f32.xlu0 %v2440
    %v2442 = vpop.xlane.xlu0 %2441
    %v2443 = vsel %vm759, %v2414, 0.0
    %2444 = vadd.xlane.f32.xlu0 %v2443
    %v2445 = vpop.xlane.xlu0 %2444
    %v2446 = vsel %vm759, %v2416, 0.0
    %2447 = vadd.xlane.f32.xlu0 %v2446
    %v2448 = vpop.xlane.xlu0 %2447
    %v2449 = vsel %vm759, %v2418, 0.0
    %2450 = vadd.xlane.f32.xlu0 %v2449
    %v2451 = vpop.xlane.xlu0 %2450
    %v2452 = vsel %vm759, %v2420, 0.0
    %2453 = vadd.xlane.f32.xlu0 %v2452
    %v2454 = vpop.xlane.xlu0 %2453
    %v2455 = vsel %vm759, %v2422, 0.0
    %2456 = vadd.xlane.f32.xlu0 %v2455
    %v2457 = vpop.xlane.xlu0 %2456
    %v2458 = vsel %vm759, %v2424, 0.0
    %2459 = vadd.xlane.f32.xlu0 %v2458
    %v2460 = vpop.xlane.xlu0 %2459
    %v2461 = vrcp.pop %v2427
    %v2462 = vrcp.pop %v2430
    %v2463 = vrcp.pop %v2433
    %v2464 = vrcp.pop %v2436
    %v2465 = vrcp.pop %v2439
    %v2466 = vrcp.pop %v2442
    %v2467 = vrcp.pop %v2445
    %v2468 = vrcp.pop %v2448
    %v2469 = vrcp.pop %v2451
    %v2470 = vrcp.pop %v2454
    %v2471 = vrcp.pop %v2457
    %v2472 = vrcp.pop %v2460
    %v2473 = vmul.f32 %v2402, %v2461
    %v2474 = vmul.f32 %v2404, %v2462
    %v2475 = vmul.f32 %v2406, %v2463
    %v2476 = vmul.f32 %v2408, %v2464
    %v2477 = vmul.f32 %v2410, %v2465
    %v2478 = vmul.f32 %v2412, %v2466
    %v2479 = vmul.f32 %v2414, %v2467
    %v2480 = vmul.f32 %v2416, %v2468
    %v2481 = vmul.f32 %v2418, %v2469
    %v2482 = vmul.f32 %v2420, %v2470
    %v2483 = vmul.f32 %v2422, %v2471
    %v2484 = vmul.f32 %v2424, %v2472
    %v2486 = vsel %vm759, %v2473, 0
    %v2489 = vsel %vm759, %v2474, 0
    %v2492 = vsel %vm759, %v2475, 0
    %2494 = vmatpush.msra.mxu0 0.0
    %2495 = vmatpush.msra.mxu0 0.0
    %2496 = vmatpush.msra.mxu0 0.0
    %2497 = vmatpush.msra.mxu0 0.0
    %2498 = vmatpush.msra.mxu0 0.0
    %2499 = vmatpush.msra.mxu0 0.0
    %2500 = vmatpush.msra.mxu0 0.0
    %2501 = vmatpush.msra.mxu0 0.0
    %2502 = vmatpush.msra.mxu0 0.0
    %2503 = vmatpush.msra.mxu0 0.0
    %2504 = vmatpush.msra.mxu0 0.0
    %2505 = vmatpush.msra.mxu0 0.0
    %2506 = vmatpush.msra.mxu0 0.0
    %2507 = vmatpush.msra.mxu0 %v2102
    %2508 = vmatpush.msra.mxu0 %v2099
    %2509 = vmatpush.msra.mxu0 %v2096
    %2510 = vmatmul.f32.gmra.mxu0 %v2486
    %v2511 = vpop.f32.mrf.mxu0
    %v2512 = vadd.f32 0.0, %v2511
    %2513 = vmatmul.f32.gmra.mxu0 %v2489
    %v2514 = vpop.f32.mrf.mxu0
    %v2515 = vadd.f32 0.0, %v2514
    %2516 = vmatmul.f32.gmra.mxu0 %v2492
    %v2517 = vpop.f32.mrf.mxu0
    %v2518 = vadd.f32 0.0, %v2517
    %2519 = vdwg.mxu0
    %s2520 = scalar_lea.vmem %s8, 32
    %v2521 = vld [vmem:[%s2520] sm:$0xff]
    %v2522 = vld [vmem:[%s2520 + $0x8] sm:$0xff]
    %v2524 = vsel %vm759, %v2476, 0
    %v2527 = vsel %vm759, %v2477, 0
    %v2530 = vsel %vm759, %v2478, 0
    %2532 = vmatpush.msra.mxu0 0.0
    %2533 = vmatpush.msra.mxu0 0.0
    %2534 = vmatpush.msra.mxu0 0.0
    %2535 = vmatpush.msra.mxu0 0.0
    %2536 = vmatpush.msra.mxu0 0.0
    %2537 = vmatpush.msra.mxu0 0.0
    %2538 = vmatpush.msra.mxu0 0.0
    %2539 = vmatpush.msra.mxu0 0.0
    %2540 = vmatpush.msra.mxu0 0.0
    %2541 = vmatpush.msra.mxu0 0.0
    %2542 = vmatpush.msra.mxu0 0.0
    %2543 = vmatpush.msra.mxu0 0.0
    %2544 = vmatpush.msra.mxu0 0.0
    %2545 = vmatpush.msra.mxu0 %v2142
    %2546 = vmatpush.msra.mxu0 %v2139
    %2547 = vmatpush.msra.mxu0 %v2136
    %2548 = vmatmul.f32.gmra.mxu0 %v2524
    %v2549 = vpop.f32.mrf.mxu0
    %v2550 = vadd.f32 0.0, %v2549
    %2551 = vmatmul.f32.gmra.mxu0 %v2527
    %v2552 = vpop.f32.mrf.mxu0
    %v2553 = vadd.f32 0.0, %v2552
    %2554 = vmatmul.f32.gmra.mxu0 %v2530
    %v2555 = vpop.f32.mrf.mxu0
    %v2556 = vadd.f32 0.0, %v2555
    %2557 = vdwg.mxu0
    %s2558 = scalar_lea.vmem %s8, 48
    %v2559 = vld [vmem:[%s2558] sm:$0xff]
    %v2560 = vld [vmem:[%s2558 + $0x8] sm:$0xff]
    %v2562 = vsel %vm555, %v2550, 0
    %v2565 = vsel %vm555, %v2553, 0
    %v2568 = vsel %vm555, %v2556, 0
    %2570 = vmatpush.msra.mxu0 0.0
    %2571 = vmatpush.msra.mxu0 0.0
    %2572 = vmatpush.msra.mxu0 0.0
    %2573 = vmatpush.msra.mxu0 0.0
    %2574 = vmatpush.msra.mxu0 0.0
    %2575 = vmatpush.msra.mxu0 0.0
    %2576 = vmatpush.msra.mxu0 0.0
    %2577 = vmatpush.msra.mxu0 0.0
    %2578 = vmatpush.msra.mxu0 0.0
    %2579 = vmatpush.msra.mxu0 0.0
    %2580 = vmatpush.msra.mxu0 0.0
    %2581 = vmatpush.msra.mxu0 0.0
    %2582 = vmatpush.msra.mxu0 0.0
    %2583 = vmatpush.msra.mxu0 0.0
    %2584 = vmatpush.msra.mxu0 %v2560
    %2585 = vmatpush.msra.mxu0 %v2559
    %2586 = vmatmul.f32.gmra.mxu0 %v2562
    %v2587 = vpop.f32.mrf.mxu0
    %v2588 = vadd.f32 0.0, %v2587
    %2589 = vmatmul.f32.gmra.mxu0 %v2565
    %v2590 = vpop.f32.mrf.mxu0
    %v2591 = vadd.f32 0.0, %v2590
    %2592 = vmatmul.f32.gmra.mxu0 %v2568
    %v2593 = vpop.f32.mrf.mxu0
    %v2594 = vadd.f32 0.0, %v2593
    %2595 = vdwg.mxu0
    %v2597 = vsel %vm555, %v2512, 0
    %v2600 = vsel %vm555, %v2515, 0
    %v2603 = vsel %vm555, %v2518, 0
    %2605 = vmatpush.msra.mxu0 0.0
    %2606 = vmatpush.msra.mxu0 0.0
    %2607 = vmatpush.msra.mxu0 0.0
    %2608 = vmatpush.msra.mxu0 0.0
    %2609 = vmatpush.msra.mxu0 0.0
    %2610 = vmatpush.msra.mxu0 0.0
    %2611 = vmatpush.msra.mxu0 0.0
    %2612 = vmatpush.msra.mxu0 0.0
    %2613 = vmatpush.msra.mxu0 0.0
    %2614 = vmatpush.msra.mxu0 0.0
    %2615 = vmatpush.msra.mxu0 0.0
    %2616 = vmatpush.msra.mxu0 0.0
    %2617 = vmatpush.msra.mxu0 0.0
    %2618 = vmatpush.msra.mxu0 0.0
    %2619 = vmatpush.msra.mxu0 %v2522
    %2620 = vmatpush.msra.mxu0 %v2521
    %2621 = vmatmul.f32.gmra.mxu0 %v2597
    %v2622 = vpop.f32.mrf.mxu0
    %v2623 = vadd.f32 %v2588, %v2622
    %2624 = vmatmul.f32.gmra.mxu0 %v2600
    %v2625 = vpop.f32.mrf.mxu0
    %v2626 = vadd.f32 %v2591, %v2625
    %2627 = vmatmul.f32.gmra.mxu0 %v2603
    %v2628 = vpop.f32.mrf.mxu0
    %v2629 = vadd.f32 %v2594, %v2628
    %2630 = vdwg.mxu0
    %v2632 = vsel %vm759, %v2479, 0
    %v2635 = vsel %vm759, %v2480, 0
    %v2638 = vsel %vm759, %v2481, 0
    %2640 = vmatpush.msra.mxu0 0.0
    %2641 = vmatpush.msra.mxu0 0.0
    %2642 = vmatpush.msra.mxu0 0.0
    %2643 = vmatpush.msra.mxu0 0.0
    %2644 = vmatpush.msra.mxu0 0.0
    %2645 = vmatpush.msra.mxu0 0.0
    %2646 = vmatpush.msra.mxu0 0.0
    %2647 = vmatpush.msra.mxu0 0.0
    %2648 = vmatpush.msra.mxu0 0.0
    %2649 = vmatpush.msra.mxu0 0.0
    %2650 = vmatpush.msra.mxu0 0.0
    %2651 = vmatpush.msra.mxu0 0.0
    %2652 = vmatpush.msra.mxu0 0.0
    %2653 = vmatpush.msra.mxu0 %v2111
    %2654 = vmatpush.msra.mxu0 %v2108
    %2655 = vmatpush.msra.mxu0 %v2105
    %2656 = vmatmul.f32.gmra.mxu0 %v2632
    %v2657 = vpop.f32.mrf.mxu0
    %v2658 = vadd.f32 0.0, %v2657
    %2659 = vmatmul.f32.gmra.mxu0 %v2635
    %v2660 = vpop.f32.mrf.mxu0
    %v2661 = vadd.f32 0.0, %v2660
    %2662 = vmatmul.f32.gmra.mxu0 %v2638
    %v2663 = vpop.f32.mrf.mxu0
    %v2664 = vadd.f32 0.0, %v2663
    %2665 = vdwg.mxu0
    %v2667 = vsel %vm759, %v2482, 0
    %v2670 = vsel %vm759, %v2483, 0
    %v2673 = vsel %vm759, %v2484, 0
    %2675 = vmatpush.msra.mxu0 0.0
    %2676 = vmatpush.msra.mxu0 0.0
    %2677 = vmatpush.msra.mxu0 0.0
    %2678 = vmatpush.msra.mxu0 0.0
    %2679 = vmatpush.msra.mxu0 0.0
    %2680 = vmatpush.msra.mxu0 0.0
    %2681 = vmatpush.msra.mxu0 0.0
    %2682 = vmatpush.msra.mxu0 0.0
    %2683 = vmatpush.msra.mxu0 0.0
    %2684 = vmatpush.msra.mxu0 0.0
    %2685 = vmatpush.msra.mxu0 0.0
    %2686 = vmatpush.msra.mxu0 0.0
    %2687 = vmatpush.msra.mxu0 0.0
    %2688 = vmatpush.msra.mxu0 %v2151
    %2689 = vmatpush.msra.mxu0 %v2148
    %2690 = vmatpush.msra.mxu0 %v2145
    %2691 = vmatmul.f32.gmra.mxu0 %v2667
    %v2692 = vpop.f32.mrf.mxu0
    %v2693 = vadd.f32 0.0, %v2692
    %2694 = vmatmul.f32.gmra.mxu0 %v2670
    %v2695 = vpop.f32.mrf.mxu0
    %v2696 = vadd.f32 0.0, %v2695
    %2697 = vmatmul.f32.gmra.mxu0 %v2673
    %v2698 = vpop.f32.mrf.mxu0
    %v2699 = vadd.f32 0.0, %v2698
    %2700 = vdwg.mxu0
    %v2702 = vsel %vm555, %v2693, 0
    %v2705 = vsel %vm555, %v2696, 0
    %v2708 = vsel %vm555, %v2699, 0
    %2710 = vmatpush.msra.mxu0 0.0
    %2711 = vmatpush.msra.mxu0 0.0
    %2712 = vmatpush.msra.mxu0 0.0
    %2713 = vmatpush.msra.mxu0 0.0
    %2714 = vmatpush.msra.mxu0 0.0
    %2715 = vmatpush.msra.mxu0 0.0
    %2716 = vmatpush.msra.mxu0 0.0
    %2717 = vmatpush.msra.mxu0 0.0
    %2718 = vmatpush.msra.mxu0 0.0
    %2719 = vmatpush.msra.mxu0 0.0
    %2720 = vmatpush.msra.mxu0 0.0
    %2721 = vmatpush.msra.mxu0 0.0
    %2722 = vmatpush.msra.mxu0 0.0
    %2723 = vmatpush.msra.mxu0 0.0
    %2724 = vmatpush.msra.mxu0 %v2560
    %2725 = vmatpush.msra.mxu0 %v2559
    %2726 = vmatmul.f32.gmra.mxu0 %v2702
    %v2727 = vpop.f32.mrf.mxu0
    %v2728 = vadd.f32 0.0, %v2727
    %2729 = vmatmul.f32.gmra.mxu0 %v2705
    %v2730 = vpop.f32.mrf.mxu0
    %v2731 = vadd.f32 0.0, %v2730
    %2732 = vmatmul.f32.gmra.mxu0 %v2708
    %v2733 = vpop.f32.mrf.mxu0
    %v2734 = vadd.f32 0.0, %v2733
    %2735 = vdwg.mxu0
    %v2737 = vsel %vm555, %v2658, 0
    %v2740 = vsel %vm555, %v2661, 0
    %v2743 = vsel %vm555, %v2664, 0
    %2745 = vmatpush.msra.mxu0 0.0
    %2746 = vmatpush.msra.mxu0 0.0
    %2747 = vmatpush.msra.mxu0 0.0
    %2748 = vmatpush.msra.mxu0 0.0
    %2749 = vmatpush.msra.mxu0 0.0
    %2750 = vmatpush.msra.mxu0 0.0
    %2751 = vmatpush.msra.mxu0 0.0
    %2752 = vmatpush.msra.mxu0 0.0
    %2753 = vmatpush.msra.mxu0 0.0
    %2754 = vmatpush.msra.mxu0 0.0
    %2755 = vmatpush.msra.mxu0 0.0
    %2756 = vmatpush.msra.mxu0 0.0
    %2757 = vmatpush.msra.mxu0 0.0
    %2758 = vmatpush.msra.mxu0 0.0
    %2759 = vmatpush.msra.mxu0 %v2522
    %2760 = vmatpush.msra.mxu0 %v2521
    %2761 = vmatmul.f32.gmra.mxu0 %v2737
    %v2762 = vpop.f32.mrf.mxu0
    %v2763 = vadd.f32 %v2728, %v2762
    %2764 = vmatmul.f32.gmra.mxu0 %v2740
    %v2765 = vpop.f32.mrf.mxu0
    %v2766 = vadd.f32 %v2731, %v2765
    %2767 = vmatmul.f32.gmra.mxu0 %v2743
    %v2768 = vpop.f32.mrf.mxu0
    %v2769 = vadd.f32 %v2734, %v2768
    %2770 = vdwg.mxu0
    %v2771 = vadd.f32 %v1735, %v2623
    %v2772 = vadd.f32 %v1736, %v2626
    %v2773 = vadd.f32 %v1737, %v2629
    %v2774 = vadd.f32 %v1738, %v2763
    %v2775 = vadd.f32 %v1739, %v2766
    %v2776 = vadd.f32 %v1740, %v2769
    %s2777 = scalar_lea.vmem %s9, 1
    %v2778 = vld [vmem:[%s2777] sm:$0x1]
    %v2780 = vperm.slane %v2778, 0
    %v2782 = vadd.f32 %v2771, %v2780
    %v2783 = vadd.f32 %v2772, %v2780
    %v2784 = vadd.f32 %v2773, %v2780
    %v2785 = vadd.f32 %v2774, %v2780
    %v2786 = vadd.f32 %v2775, %v2780
    %v2787 = vadd.f32 %v2776, %v2780
    %s2788 = scalar_lea.vmem %s10, 1
    %v2789 = vld [vmem:[%s2788] sm:$0x1]
    %s2790 = scalar_lea.vmem %s11, 1
    %v2791 = vld [vmem:[%s2790] sm:$0x1]
    %v2792 = vsel %vm142, %v2782, 0.0
    %2793 = vadd.xlane.f32.xlu0 %v2792
    %v2794 = vpop.xlane.xlu0 %2793
    %v2795 = vsel %vm142, %v2783, 0.0
    %2796 = vadd.xlane.f32.xlu0 %v2795
    %v2797 = vpop.xlane.xlu0 %2796
    %v2798 = vsel %vm142, %v2784, 0.0
    %2799 = vadd.xlane.f32.xlu0 %v2798
    %v2800 = vpop.xlane.xlu0 %2799
    %v2801 = vsel %vm142, %v2785, 0.0
    %2802 = vadd.xlane.f32.xlu0 %v2801
    %v2803 = vpop.xlane.xlu0 %2802
    %v2804 = vsel %vm142, %v2786, 0.0
    %2805 = vadd.xlane.f32.xlu0 %v2804
    %v2806 = vpop.xlane.xlu0 %2805
    %v2807 = vsel %vm142, %v2787, 0.0
    %2808 = vadd.xlane.f32.xlu0 %v2807
    %v2809 = vpop.xlane.xlu0 %2808
    %v2810 = vmul.f32 %v2794, %v167
    %v2811 = vmul.f32 %v2797, %v167
    %v2812 = vmul.f32 %v2800, %v167
    %v2813 = vmul.f32 %v2803, %v167
    %v2814 = vmul.f32 %v2806, %v167
    %v2815 = vmul.f32 %v2809, %v167
    %v2816 = vsub.f32 %v2782, %v2810
    %v2817 = vsub.f32 %v2783, %v2811
    %v2818 = vsub.f32 %v2784, %v2812
    %v2819 = vsub.f32 %v2785, %v2813
    %v2820 = vsub.f32 %v2786, %v2814
    %v2821 = vsub.f32 %v2787, %v2815
    %v2822 = vmul.f32 %v2816, %v2816
    %v2823 = vmul.f32 %v2817, %v2817
    %v2824 = vmul.f32 %v2818, %v2818
    %v2825 = vmul.f32 %v2819, %v2819
    %v2826 = vmul.f32 %v2820, %v2820
    %v2827 = vmul.f32 %v2821, %v2821
    %v2828 = vsel %vm142, %v2822, 0.0
    %2829 = vadd.xlane.f32.xlu0 %v2828
    %v2830 = vpop.xlane.xlu0 %2829
    %v2831 = vsel %vm142, %v2823, 0.0
    %2832 = vadd.xlane.f32.xlu0 %v2831
    %v2833 = vpop.xlane.xlu0 %2832
    %v2834 = vsel %vm142, %v2824, 0.0
    %2835 = vadd.xlane.f32.xlu0 %v2834
    %v2836 = vpop.xlane.xlu0 %2835
    %v2837 = vsel %vm142, %v2825, 0.0
    %2838 = vadd.xlane.f32.xlu0 %v2837
    %v2839 = vpop.xlane.xlu0 %2838
    %v2840 = vsel %vm142, %v2826, 0.0
    %2841 = vadd.xlane.f32.xlu0 %v2840
    %v2842 = vpop.xlane.xlu0 %2841
    %v2843 = vsel %vm142, %v2827, 0.0
    %2844 = vadd.xlane.f32.xlu0 %v2843
    %v2845 = vpop.xlane.xlu0 %2844
    %v2846 = vmul.f32 %v2830, %v167
    %v2847 = vmul.f32 %v2833, %v167
    %v2848 = vmul.f32 %v2836, %v167
    %v2849 = vmul.f32 %v2839, %v167
    %v2850 = vmul.f32 %v2842, %v167
    %v2851 = vmul.f32 %v2845, %v167
    %v2852 = vadd.f32 %v2846, 1e-05
    %v2853 = vadd.f32 %v2847, 1e-05
    %v2854 = vadd.f32 %v2848, 1e-05
    %v2855 = vadd.f32 %v2849, 1e-05
    %v2856 = vadd.f32 %v2850, 1e-05
    %v2857 = vadd.f32 %v2851, 1e-05
    %v2858 = vrsqrt.pop %v2852
    %v2859 = vmul.f32 %v2858, %v2852
    %v2860 = vmul.f32 %v2859, %v2858
    %v2861 = vmul.f32 0.5, %v2860
    %v2862 = vsub.f32 1.5, %v2861
    %v2863 = vmul.f32 %v2858, %v2862
    %vm2864 = vweird.f32 %v2852
    %vm2865 = vweird.f32 %v2858
    %vm2866 = vmor %vm2864, %vm2865
    %v2867 = vsel %vm2866, %v2858, %v2863
    %v2868 = vrsqrt.pop %v2853
    %v2869 = vmul.f32 %v2868, %v2853
    %v2870 = vmul.f32 %v2869, %v2868
    %v2871 = vmul.f32 0.5, %v2870
    %v2872 = vsub.f32 1.5, %v2871
    %v2873 = vmul.f32 %v2868, %v2872
    %vm2874 = vweird.f32 %v2853
    %vm2875 = vweird.f32 %v2868
    %vm2876 = vmor %vm2874, %vm2875
    %v2877 = vsel %vm2876, %v2868, %v2873
    %v2878 = vrsqrt.pop %v2854
    %v2879 = vmul.f32 %v2878, %v2854
    %v2880 = vmul.f32 %v2879, %v2878
    %v2881 = vmul.f32 0.5, %v2880
    %v2882 = vsub.f32 1.5, %v2881
    %v2883 = vmul.f32 %v2878, %v2882
    %vm2884 = vweird.f32 %v2854
    %vm2885 = vweird.f32 %v2878
    %vm2886 = vmor %vm2884, %vm2885
    %v2887 = vsel %vm2886, %v2878, %v2883
    %v2888 = vrsqrt.pop %v2855
    %v2889 = vmul.f32 %v2888, %v2855
    %v2890 = vmul.f32 %v2889, %v2888
    %v2891 = vmul.f32 0.5, %v2890
    %v2892 = vsub.f32 1.5, %v2891
    %v2893 = vmul.f32 %v2888, %v2892
    %vm2894 = vweird.f32 %v2855
    %vm2895 = vweird.f32 %v2888
    %vm2896 = vmor %vm2894, %vm2895
    %v2897 = vsel %vm2896, %v2888, %v2893
    %v2898 = vrsqrt.pop %v2856
    %v2899 = vmul.f32 %v2898, %v2856
    %v2900 = vmul.f32 %v2899, %v2898
    %v2901 = vmul.f32 0.5, %v2900
    %v2902 = vsub.f32 1.5, %v2901
    %v2903 = vmul.f32 %v2898, %v2902
    %vm2904 = vweird.f32 %v2856
    %vm2905 = vweird.f32 %v2898
    %vm2906 = vmor %vm2904, %vm2905
    %v2907 = vsel %vm2906, %v2898, %v2903
    %v2908 = vrsqrt.pop %v2857
    %v2909 = vmul.f32 %v2908, %v2857
    %v2910 = vmul.f32 %v2909, %v2908
    %v2911 = vmul.f32 0.5, %v2910
    %v2912 = vsub.f32 1.5, %v2911
    %v2913 = vmul.f32 %v2908, %v2912
    %vm2914 = vweird.f32 %v2857
    %vm2915 = vweird.f32 %v2908
    %vm2916 = vmor %vm2914, %vm2915
    %v2917 = vsel %vm2916, %v2908, %v2913
    %v2918 = vmul.f32 %v2816, %v2867
    %v2919 = vmul.f32 %v2817, %v2877
    %v2920 = vmul.f32 %v2818, %v2887
    %v2921 = vmul.f32 %v2819, %v2897
    %v2922 = vmul.f32 %v2820, %v2907
    %v2923 = vmul.f32 %v2821, %v2917
    %v2925 = vperm.slane %v2789, 0
    %v2927 = vmul.f32 %v2918, %v2925
    %v2928 = vmul.f32 %v2919, %v2925
    %v2929 = vmul.f32 %v2920, %v2925
    %v2930 = vmul.f32 %v2921, %v2925
    %v2931 = vmul.f32 %v2922, %v2925
    %v2932 = vmul.f32 %v2923, %v2925
    %v2934 = vperm.slane %v2791, 0
    %v2936 = vadd.f32 %v2927, %v2934
    %v2937 = vadd.f32 %v2928, %v2934
    %v2938 = vadd.f32 %v2929, %v2934
    %v2939 = vadd.f32 %v2930, %v2934
    %v2940 = vadd.f32 %v2931, %v2934
    %v2941 = vadd.f32 %v2932, %v2934
    %s2942 = scalar_lea.vmem %s12, 32
    %v2943 = vld [vmem:[%s2942] sm:$0xff]
    %v2944 = vld [vmem:[%s2942 + $0x8] sm:$0xff]
    %v2945 = vld [vmem:[%s2942 + $0x10] sm:$0xff]
    %v2946 = vld [vmem:[%s2942 + $0x18] sm:$0xff]
    %s2947 = scalar_lea.vmem %s13, 1
    %v2948 = vld [vmem:[%s2947] sm:$0x1]
    %v2950 = vperm.slane %v2948, 0
    %v2953 = vsel %vm142, %v2936, 0
    %v2956 = vsel %vm142, %v2937, 0
    %v2959 = vsel %vm142, %v2938, 0
    %v2962 = vsel %vm142, %v2939, 0
    %v2965 = vsel %vm142, %v2940, 0
    %v2968 = vsel %vm142, %v2941, 0
    %2970 = vmatpush.msra.mxu0 0.0
    %2971 = vmatpush.msra.mxu0 0.0
    %2972 = vmatpush.msra.mxu0 0.0
    %2973 = vmatpush.msra.mxu0 0.0
    %2974 = vmatpush.msra.mxu0 0.0
    %2975 = vmatpush.msra.mxu0 0.0
    %2976 = vmatpush.msra.mxu0 0.0
    %2977 = vmatpush.msra.mxu0 0.0
    %2978 = vmatpush.msra.mxu0 0.0
    %2979 = vmatpush.msra.mxu0 0.0
    %2980 = vmatpush.msra.mxu0 0.0
    %2981 = vmatpush.msra.mxu0 0.0
    %2982 = vmatpush.msra.mxu0 %v2946
    %2983 = vmatpush.msra.mxu0 %v2945
    %2984 = vmatpush.msra.mxu0 %v2944
    %2985 = vmatpush.msra.mxu0 %v2943
    %2986 = vmatmul.f32.gmra.mxu0 %v2953
    %v2987 = vpop.f32.mrf.mxu0
    %v2988 = vadd.f32 %v2950, %v2987
    %2989 = vmatmul.f32.gmra.mxu0 %v2956
    %v2990 = vpop.f32.mrf.mxu0
    %v2991 = vadd.f32 %v2950, %v2990
    %2992 = vmatmul.f32.gmra.mxu0 %v2959
    %v2993 = vpop.f32.mrf.mxu0
    %v2994 = vadd.f32 %v2950, %v2993
    %2995 = vmatmul.f32.gmra.mxu0 %v2962
    %v2996 = vpop.f32.mrf.mxu0
    %v2997 = vadd.f32 %v2950, %v2996
    %2998 = vmatmul.f32.gmra.mxu0 %v2965
    %v2999 = vpop.f32.mrf.mxu0
    %v3000 = vadd.f32 %v2950, %v2999
    %3001 = vmatmul.f32.gmra.mxu0 %v2968
    %v3002 = vpop.f32.mrf.mxu0
    %v3003 = vadd.f32 %v2950, %v3002
    %3004 = vdwg.mxu0
    %v3005 = vmul.f32 %v2988, 0.5
    %v3006 = vmul.f32 %v2991, 0.5
    %v3007 = vmul.f32 %v2994, 0.5
    %v3008 = vmul.f32 %v2997, 0.5
    %v3009 = vmul.f32 %v3000, 0.5
    %v3010 = vmul.f32 %v3003, 0.5
    %v3011 = vmul.f32 %v2988, 0.70710677
    %v3012 = vmul.f32 %v2991, 0.70710677
    %v3013 = vmul.f32 %v2994, 0.70710677
    %v3014 = vmul.f32 %v2997, 0.70710677
    %v3015 = vmul.f32 %v3000, 0.70710677
    %v3016 = vmul.f32 %v3003, 0.70710677
    %v3017 = vmax.f32 %v3011, -3.832507
    %v3018 = vmax.f32 %v3012, -3.832507
    %v3019 = vmax.f32 %v3013, -3.832507
    %v3020 = vmax.f32 %v3014, -3.832507
    %v3021 = vmax.f32 %v3015, -3.832507
    %v3022 = vmax.f32 %v3016, -3.832507
    %v3023 = vmin.f32 %v3017, 3.832507
    %v3024 = vmin.f32 %v3018, 3.832507
    %v3025 = vmin.f32 %v3019, 3.832507
    %v3026 = vmin.f32 %v3020, 3.832507
    %v3027 = vmin.f32 %v3021, 3.832507
    %v3028 = vmin.f32 %v3022, 3.832507
    %v3029 = vmul.f32 %v3023, %v3023
    %v3030 = vmul.f32 %v3024, %v3024
    %v3031 = vmul.f32 %v3025, %v3025
    %v3032 = vmul.f32 %v3026, %v3026
    %v3033 = vmul.f32 %v3027, %v3027
    %v3034 = vmul.f32 %v3028, %v3028
    %v3035 = vmul.f32 %v3029, -2.7261424e-10
    %v3036 = vmul.f32 %v3030, -2.7261424e-10
    %v3037 = vmul.f32 %v3031, -2.7261424e-10
    %v3038 = vmul.f32 %v3032, -2.7261424e-10
    %v3039 = vmul.f32 %v3033, -2.7261424e-10
    %v3040 = vmul.f32 %v3034, -2.7261424e-10
    %v3041 = vadd.f32 %v3035, 2.7706815e-08
    %v3042 = vadd.f32 %v3036, 2.7706815e-08
    %v3043 = vadd.f32 %v3037, 2.7706815e-08
    %v3044 = vadd.f32 %v3038, 2.7706815e-08
    %v3045 = vadd.f32 %v3039, 2.7706815e-08
    %v3046 = vadd.f32 %v3040, 2.7706815e-08
    %v3047 = vmul.f32 %v3041, %v3029
    %v3048 = vmul.f32 %v3042, %v3030
    %v3049 = vmul.f32 %v3043, %v3031
    %v3050 = vmul.f32 %v3044, %v3032
    %v3051 = vmul.f32 %v3045, %v3033
    %v3052 = vmul.f32 %v3046, %v3034
    %v3053 = vadd.f32 %v3047, -2.101024e-06
    %v3054 = vadd.f32 %v3048, -2.101024e-06
    %v3055 = vadd.f32 %v3049, -2.101024e-06
    %v3056 = vadd.f32 %v3050, -2.101024e-06
    %v3057 = vadd.f32 %v3051, -2.101024e-06
    %v3058 = vadd.f32 %v3052, -2.101024e-06
    %v3059 = vmul.f32 %v3053, %v3029
    %v3060 = vmul.f32 %v3054, %v3030
    %v3061 = vmul.f32 %v3055, %v3031
    %v3062 = vmul.f32 %v3056, %v3032
    %v3063 = vmul.f32 %v3057, %v3033
    %v3064 = vmul.f32 %v3058, %v3034
    %v3065 = vadd.f32 %v3059, -5.6925062e-05
    %v3066 = vadd.f32 %v3060, -5.6925062e-05
    %v3067 = vadd.f32 %v3061, -5.6925062e-05
    %v3068 = vadd.f32 %v3062, -5.6925062e-05
    %v3069 = vadd.f32 %v3063, -5.6925062e-05
    %v3070 = vadd.f32 %v3064, -5.6925062e-05
    %v3071 = vmul.f32 %v3065, %v3029
    %v3072 = vmul.f32 %v3066, %v3030
    %v3073 = vmul.f32 %v3067, %v3031
    %v3074 = vmul.f32 %v3068, %v3032
    %v3075 = vmul.f32 %v3069, %v3033
    %v3076 = vmul.f32 %v3070, %v3034
    %v3077 = vadd.f32 %v3071, -0.00073499064
    %v3078 = vadd.f32 %v3072, -0.00073499064
    %v3079 = vadd.f32 %v3073, -0.00073499064
    %v3080 = vadd.f32 %v3074, -0.00073499064
    %v3081 = vadd.f32 %v3075, -0.00073499064
    %v3082 = vadd.f32 %v3076, -0.00073499064
    %v3083 = vmul.f32 %v3077, %v3029
    %v3084 = vmul.f32 %v3078, %v3030
    %v3085 = vmul.f32 %v3079, %v3031
    %v3086 = vmul.f32 %v3080, %v3032
    %v3087 = vmul.f32 %v3081, %v3033
    %v3088 = vmul.f32 %v3082, %v3034
    %v3089 = vadd.f32 %v3083, -0.0029546
    %v3090 = vadd.f32 %v3084, -0.0029546
    %v3091 = vadd.f32 %v3085, -0.0029546
    %v3092 = vadd.f32 %v3086, -0.0029546
    %v3093 = vadd.f32 %v3087, -0.0029546
    %v3094 = vadd.f32 %v3088, -0.0029546
    %v3095 = vmul.f32 %v3089, %v3029
    %v3096 = vmul.f32 %v3090, %v3030
    %v3097 = vmul.f32 %v3091, %v3031
    %v3098 = vmul.f32 %v3092, %v3032
    %v3099 = vmul.f32 %v3093, %v3033
    %v3100 = vmul.f32 %v3094, %v3034
    %v3101 = vadd.f32 %v3095, -0.016096033
    %v3102 = vadd.f32 %v3096, -0.016096033
    %v3103 = vadd.f32 %v3097, -0.016096033
    %v3104 = vadd.f32 %v3098, -0.016096033
    %v3105 = vadd.f32 %v3099, -0.016096033
    %v3106 = vadd.f32 %v3100, -0.016096033
    %v3107 = vmul.f32 %v3029, -1.45660715e-05
    %v3108 = vmul.f32 %v3030, -1.45660715e-05
    %v3109 = vmul.f32 %v3031, -1.45660715e-05
    %v3110 = vmul.f32 %v3032, -1.45660715e-05
    %v3111 = vmul.f32 %v3033, -1.45660715e-05
    %v3112 = vmul.f32 %v3034, -1.45660715e-05
    %v3113 = vadd.f32 %v3107, -0.00021337405
    %v3114 = vadd.f32 %v3108, -0.00021337405
    %v3115 = vadd.f32 %v3109, -0.00021337405
    %v3116 = vadd.f32 %v3110, -0.00021337405
    %v3117 = vadd.f32 %v3111, -0.00021337405
    %v3118 = vadd.f32 %v3112, -0.00021337405
    %v3119 = vmul.f32 %v3113, %v3029
    %v3120 = vmul.f32 %v3114, %v3030
    %v3121 = vmul.f32 %v3115, %v3031
    %v3122 = vmul.f32 %v3116, %v3032
    %v3123 = vmul.f32 %v3117, %v3033
    %v3124 = vmul.f32 %v3118, %v3034
    %v3125 = vadd.f32 %v3119, -0.001682827
    %v3126 = vadd.f32 %v3120, -0.001682827
    %v3127 = vadd.f32 %v3121, -0.001682827
    %v3128 = vadd.f32 %v3122, -0.001682827
    %v3129 = vadd.f32 %v3123, -0.001682827
    %v3130 = vadd.f32 %v3124, -0.001682827
    %v3131 = vmul.f32 %v3125, %v3029
    %v3132 = vmul.f32 %v3126, %v3030
    %v3133 = vmul.f32 %v3127, %v3031
    %v3134 = vmul.f32 %v3128, %v3032
    %v3135 = vmul.f32 %v3129, %v3033
    %v3136 = vmul.f32 %v3130, %v3034
    %v3137 = vadd.f32 %v3131, -0.0073733293
    %v3138 = vadd.f32 %v3132, -0.0073733293
    %v3139 = vadd.f32 %v3133, -0.0073733293
    %v3140 = vadd.f32 %v3134, -0.0073733293
    %v3141 = vadd.f32 %v3135, -0.0073733293
    %v3142 = vadd.f32 %v3136, -0.0073733293
    %v3143 = vmul.f32 %v3137, %v3029
    %v3144 = vmul.f32 %v3138, %v3030
    %v3145 = vmul.f32 %v3139, %v3031
    %v3146 = vmul.f32 %v3140, %v3032
    %v3147 = vmul.f32 %v3141, %v3033
    %v3148 = vmul.f32 %v3142, %v3034
    %v3149 = vadd.f32 %v3143, -0.014264739
    %v3150 = vadd.f32 %v3144, -0.014264739
    %v3151 = vadd.f32 %v3145, -0.014264739
    %v3152 = vadd.f32 %v3146, -0.014264739
    %v3153 = vadd.f32 %v3147, -0.014264739
    %v3154 = vadd.f32 %v3148, -0.014264739
    %v3155 = vmul.f32 %v3023, %v3101
    %v3156 = vmul.f32 %v3024, %v3102
    %v3157 = vmul.f32 %v3025, %v3103
    %v3158 = vmul.f32 %v3026, %v3104
    %v3159 = vmul.f32 %v3027, %v3105
    %v3160 = vmul.f32 %v3028, %v3106
    %v3161 = vrcp.pop %v3149
    %v3162 = vmul.f32 %v3149, %v3161
    %v3163 = vsub.f32 1.0, %v3162
    %v3164 = vmul.f32 %v3161, %v3163
    %v3165 = vadd.f32 %v3161, %v3164
    %vm3166 = vweird.f32 %v3149
    %vm3167 = vweird.f32 %v3161
    %vm3168 = vmor %vm3166, %vm3167
    %v3169 = vsel %vm3168, %v3161, %v3165
    %v3170 = vand.u32 2147483647, %v3149
    %vm3171 = vcmp.eq.f32.partialorder %v3170, 8.507059e+37
    %v3172 = vand.u32 %v3149, 2147483648
    %v3173 = vor.u32 1.1754944e-38, %v3172
    %v3174 = vsel %vm3171, %v3173, %v3169
    %v3175 = vrcp.pop %v3150
    %v3176 = vmul.f32 %v3150, %v3175
    %v3177 = vsub.f32 1.0, %v3176
    %v3178 = vmul.f32 %v3175, %v3177
    %v3179 = vadd.f32 %v3175, %v3178
    %vm3180 = vweird.f32 %v3150
    %vm3181 = vweird.f32 %v3175
    %vm3182 = vmor %vm3180, %vm3181
    %v3183 = vsel %vm3182, %v3175, %v3179
    %v3184 = vand.u32 2147483647, %v3150
    %vm3185 = vcmp.eq.f32.partialorder %v3184, 8.507059e+37
    %v3186 = vand.u32 %v3150, 2147483648
    %v3187 = vor.u32 1.1754944e-38, %v3186
    %v3188 = vsel %vm3185, %v3187, %v3183
    %v3189 = vrcp.pop %v3151
    %v3190 = vmul.f32 %v3151, %v3189
    %v3191 = vsub.f32 1.0, %v3190
    %v3192 = vmul.f32 %v3189, %v3191
    %v3193 = vadd.f32 %v3189, %v3192
    %vm3194 = vweird.f32 %v3151
    %vm3195 = vweird.f32 %v3189
    %vm3196 = vmor %vm3194, %vm3195
    %v3197 = vsel %vm3196, %v3189, %v3193
    %v3198 = vand.u32 2147483647, %v3151
    %vm3199 = vcmp.eq.f32.partialorder %v3198, 8.507059e+37
    %v3200 = vand.u32 %v3151, 2147483648
    %v3201 = vor.u32 1.1754944e-38, %v3200
    %v3202 = vsel %vm3199, %v3201, %v3197
    %v3203 = vrcp.pop %v3152
    %v3204 = vmul.f32 %v3152, %v3203
    %v3205 = vsub.f32 1.0, %v3204
    %v3206 = vmul.f32 %v3203, %v3205
    %v3207 = vadd.f32 %v3203, %v3206
    %vm3208 = vweird.f32 %v3152
    %vm3209 = vweird.f32 %v3203
    %vm3210 = vmor %vm3208, %vm3209
    %v3211 = vsel %vm3210, %v3203, %v3207
    %v3212 = vand.u32 2147483647, %v3152
    %vm3213 = vcmp.eq.f32.partialorder %v3212, 8.507059e+37
    %v3214 = vand.u32 %v3152, 2147483648
    %v3215 = vor.u32 1.1754944e-38, %v3214
    %v3216 = vsel %vm3213, %v3215, %v3211
    %v3217 = vrcp.pop %v3153
    %v3218 = vmul.f32 %v3153, %v3217
    %v3219 = vsub.f32 1.0, %v3218
    %v3220 = vmul.f32 %v3217, %v3219
    %v3221 = vadd.f32 %v3217, %v3220
    %vm3222 = vweird.f32 %v3153
    %vm3223 = vweird.f32 %v3217
    %vm3224 = vmor %vm3222, %vm3223
    %v3225 = vsel %vm3224, %v3217, %v3221
    %v3226 = vand.u32 2147483647, %v3153
    %vm3227 = vcmp.eq.f32.partialorder %v3226, 8.507059e+37
    %v3228 = vand.u32 %v3153, 2147483648
    %v3229 = vor.u32 1.1754944e-38, %v3228
    %v3230 = vsel %vm3227, %v3229, %v3225
    %v3231 = vrcp.pop %v3154
    %v3232 = vmul.f32 %v3154, %v3231
    %v3233 = vsub.f32 1.0, %v3232
    %v3234 = vmul.f32 %v3231, %v3233
    %v3235 = vadd.f32 %v3231, %v3234
    %vm3236 = vweird.f32 %v3154
    %vm3237 = vweird.f32 %v3231
    %vm3238 = vmor %vm3236, %vm3237
    %v3239 = vsel %vm3238, %v3231, %v3235
    %v3240 = vand.u32 2147483647, %v3154
    %vm3241 = vcmp.eq.f32.partialorder %v3240, 8.507059e+37
    %v3242 = vand.u32 %v3154, 2147483648
    %v3243 = vor.u32 1.1754944e-38, %v3242
    %v3244 = vsel %vm3241, %v3243, %v3239
    %v3245 = vmul.f32 %v3155, %v3174
    %v3246 = vmul.f32 %v3156, %v3188
    %v3247 = vmul.f32 %v3157, %v3202
    %v3248 = vmul.f32 %v3158, %v3216
    %v3249 = vmul.f32 %v3159, %v3230
    %v3250 = vmul.f32 %v3160, %v3244
    %v3251 = vadd.f32 %v3245, 1.0
    %v3252 = vadd.f32 %v3246, 1.0
    %v3253 = vadd.f32 %v3247, 1.0
    %v3254 = vadd.f32 %v3248, 1.0
    %v3255 = vadd.f32 %v3249, 1.0
    %v3256 = vadd.f32 %v3250, 1.0
    %v3257 = vmul.f32 %v3005, %v3251
    %v3258 = vmul.f32 %v3006, %v3252
    %v3259 = vmul.f32 %v3007, %v3253
    %v3260 = vmul.f32 %v3008, %v3254
    %v3261 = vmul.f32 %v3009, %v3255
    %v3262 = vmul.f32 %v3010, %v3256
    %s3263 = scalar_lea.vmem %s14, 64
    %v3264 = vld [vmem:[%s3263] sm:$0xff]
    %v3265 = vld [vmem:[%s3263 + $0x8] sm:$0xff]
    %v3266 = vld [vmem:[%s3263 + $0x10] sm:$0xff]
    %v3267 = vld [vmem:[%s3263 + $0x18] sm:$0xff]
    %v3268 = vld [vmem:[%s3263 + $0x20] sm:$0xff]
    %v3269 = vld [vmem:[%s3263 + $0x28] sm:$0xff]
    %v3270 = vld [vmem:[%s3263 + $0x30] sm:$0xff]
    %v3271 = vld [vmem:[%s3263 + $0x38] sm:$0xff]
    %v3273 = vsel %vm86, %v3257, 0
    %v3276 = vsel %vm86, %v3258, 0
    %v3279 = vsel %vm86, %v3259, 0
    %v3282 = vsel %vm86, %v3260, 0
    %v3285 = vsel %vm86, %v3261, 0
    %v3288 = vsel %vm86, %v3262, 0
    %3290 = vmatpush.msra.mxu0 0.0
    %3291 = vmatpush.msra.mxu0 0.0
    %3292 = vmatpush.msra.mxu0 0.0
    %3293 = vmatpush.msra.mxu0 0.0
    %3294 = vmatpush.msra.mxu0 0.0
    %3295 = vmatpush.msra.mxu0 0.0
    %3296 = vmatpush.msra.mxu0 0.0
    %3297 = vmatpush.msra.mxu0 0.0
    %3298 = vmatpush.msra.mxu0 %v3271
    %3299 = vmatpush.msra.mxu0 %v3270
    %3300 = vmatpush.msra.mxu0 %v3269
    %3301 = vmatpush.msra.mxu0 %v3268
    %3302 = vmatpush.msra.mxu0 %v3267
    %3303 = vmatpush.msra.mxu0 %v3266
    %3304 = vmatpush.msra.mxu0 %v3265
    %3305 = vmatpush.msra.mxu0 %v3264
    %3306 = vmatmul.f32.gmra.mxu0 %v3273
    %v3307 = vpop.f32.mrf.mxu0
    %v3308 = vadd.f32 0.0, %v3307
    %3309 = vmatmul.f32.gmra.mxu0 %v3276
    %v3310 = vpop.f32.mrf.mxu0
    %3311 = vmatmul.f32.gmra.mxu0 %v3279
    %v3312 = vpop.f32.mrf.mxu0
    %3313 = vmatmul.f32.gmra.mxu0 %v3282
    %v3314 = vpop.f32.mrf.mxu0
    %v3315 = vadd.f32 0.0, %v3314
    %3316 = vmatmul.f32.gmra.mxu0 %v3285
    %v3317 = vpop.f32.mrf.mxu0
    %3318 = vmatmul.f32.gmra.mxu0 %v3288
    %v3319 = vpop.f32.mrf.mxu0
    %3320 = vdwg.mxu0
    %v3321 = vadd.f32 %v2782, %v3308
    %v3322 = vadd.f32 %v2785, %v3315
    %s3323 = scalar_lea.vmem %s15, 1
    %v3324 = vld [vmem:[%s3323] sm:$0x1]
    %v3326 = vperm.slane %v3324, 0
    %v3328 = vadd.f32 %v3321, %v3326
    %v3329 = vadd.f32 %v3322, %v3326
    %v3331 = vrot.slane %v3329, 7
    %vm3333 = vcmask 1040384
    %v3334 = vsel %vm3333, %v3328, %v3331
    %v3335 = vld [vmem:[%s16] sm:$0x1]
    %v3336 = vld [vmem:[%s17] sm:$0x1]
    %vm3337 = vcmask 254976
    %v3338 = vsel %vm3337, %v3334, 0.0
    %3339 = vadd.xlane.f32.xlu0 %v3338
    %v3340 = vpop.xlane.xlu0 %3339
    %v3341 = vmul.f32 %v3340, %v167
    %v3342 = vsub.f32 %v3334, %v3341
    %v3343 = vmul.f32 %v3342, %v3342
    %v3344 = vsel %vm3337, %v3343, 0.0
    %3345 = vadd.xlane.f32.xlu0 %v3344
    %v3346 = vpop.xlane.xlu0 %3345
    %v3347 = vmul.f32 %v3346, %v167
    %v3348 = vadd.f32 %v3347, 1e-05
    %v3349 = vrsqrt.pop %v3348
    %v3350 = vmul.f32 %v3349, %v3348
    %v3351 = vmul.f32 %v3350, %v3349
    %v3352 = vmul.f32 0.5, %v3351
    %v3353 = vsub.f32 1.5, %v3352
    %v3354 = vmul.f32 %v3349, %v3353
    %vm3355 = vweird.f32 %v3348
    %vm3356 = vweird.f32 %v3349
    %vm3357 = vmor %vm3355, %vm3356
    %v3358 = vsel %vm3357, %v3349, %v3354
    %v3359 = vmul.f32 %v3342, %v3358
    %v3361 = vperm.slane %v3335, 0
    %v3363 = vmul.f32 %v3359, %v3361
    %v3365 = vperm.slane %v3336, 0
    %v3367 = vadd.f32 %v3363, %v3365
    %v3368 = vld [vmem:[%s18] sm:$0xff]
    %v3369 = vld [vmem:[%s18 + $0x8] sm:$0xff]
    %v3370 = vld [vmem:[%s18 + $0x10] sm:$0xff]
    %v3371 = vld [vmem:[%s18 + $0x18] sm:$0xff]
    %v3372 = vld [vmem:[%s19] sm:$0x1]
    %v3374 = vperm.slane %v3372, 0
    %v3377 = vsel %vm142, %v3367, 0
    %3379 = vmatpush.msra.mxu0 0.0
    %3380 = vmatpush.msra.mxu0 0.0
    %3381 = vmatpush.msra.mxu0 0.0
    %3382 = vmatpush.msra.mxu0 0.0
    %3383 = vmatpush.msra.mxu0 0.0
    %3384 = vmatpush.msra.mxu0 0.0
    %3385 = vmatpush.msra.mxu0 0.0
    %3386 = vmatpush.msra.mxu0 0.0
    %3387 = vmatpush.msra.mxu0 0.0
    %3388 = vmatpush.msra.mxu0 0.0
    %3389 = vmatpush.msra.mxu0 0.0
    %3390 = vmatpush.msra.mxu0 0.0
    %3391 = vmatpush.msra.mxu0 %v3371
    %3392 = vmatpush.msra.mxu0 %v3370
    %3393 = vmatpush.msra.mxu0 %v3369
    %3394 = vmatpush.msra.mxu0 %v3368
    %3395 = vmatmul.f32.gmra.mxu0 %v3377
    %v3396 = vpop.f32.mrf.mxu0
    %v3397 = vadd.f32 %v3374, %v3396
    %3398 = vdwg.mxu0
    %vm3399 = vcmask 74752
    %3400 = vst.msk [vmem:[#allocation2] sm:$0x3] %vm3399, %v3397
    // Predicated region
    $region82: #{slvit_forward.1} parent=1 // pred_check
      _
    $region83: #{slvit_forward.1} parent=1 // pred_check_branch
      %3402 = sbr.rel (0) target = $region85
    $region84: #{slvit_forward.1} parent=1 // pred_region
      %3404 = vsyncadd [#allocation3], 0
      %s3406 = sshll.u32 [#allocation2], 4
      %s3407 = int_to_ptr.vmem [resolvable:$true] %s3406
      %s3408 = sshll.u32 %s20, 4
      %s3409 = int_to_ptr.hbm [resolvable:$true] %s3408
      %3411 = dma.vmem_to_hbm [thread:$0]  %s3407, 32, %s3409, [#allocation3]
    $region85: #{slvit_forward.1} parent=1 // pred_fallthru
      _
    // Predicated region
    $region86: #{slvit_forward.1} parent=1 // pred_check
      _
    $region87: #{slvit_forward.1} parent=1 // pred_check_branch
      %3413 = sbr.rel (0) target = $region89
    $region88: #{slvit_forward.1} parent=1 // pred_region
      %3415 = dma.done [#allocation3], 32
    $region89: #{slvit_forward.1} parent=1 // pred_fallthru
      _
    %3416 = vsyncpa [#allocation3], 1

</llo_original>
